<compile_context>
chip_gen: v7x
topology: tpu7x:2x2x1
jax: 0.10.0
libtpu: 0.0.40
codegen_flags: <defaults>
</compile_context>

<pallas_src>
import functools

import jax
import jax.numpy as jnp
from jax.experimental import pallas as pl
from jax.experimental.pallas import tpu as pltpu

IN_FEATURES = 28 * 28          # 784
HIDDEN = (1024, 512, 256)
OUT_FEATURES = 1
MAX_TILE_B = 512               # per-step row-tile cap (sized for v7x VMEM)


def _round_up(n, m):
    return ((n + m - 1) // m) * m


def _leaky_relu(x, slope=0.2):
    return jnp.where(x > 0, x, slope * x)


def _choose_tile_b(batch, max_tile=MAX_TILE_B):
    """Pick an 8-aligned batch tile: >=2 grid steps when possible (v7x megacore),
    re-derived from the tile count so batch-padding waste stays small."""
    b8 = _round_up(batch, 8)
    if b8 <= 8:
        return b8
    tile = min(max_tile, _round_up(pl.cdiv(b8, 2), 8))
    n_tiles = pl.cdiv(b8, tile)
    return _round_up(pl.cdiv(b8, n_tiles), 8)


def discriminator_kernel(x_ref,
                         w1_ref, b1_ref,
                         w2_ref, b2_ref,
                         w3_ref, b3_ref,
                         w4_ref, b4_ref,
                         o_ref):
    # One batch tile per grid step; all four layers fused.  Weights/biases use
    # constant index_maps so they are VMEM-resident across grid steps.
    # bf16 operands on the MXU, f32 accumulation, f32 element-wise epilogue.
    x = x_ref[...].astype(jnp.bfloat16)

    h = jnp.dot(x, w1_ref[...], preferred_element_type=jnp.float32) + b1_ref[...]
    h = _leaky_relu(h)
    # Dropout(0.3): identity in eval mode.

    h = jnp.dot(h.astype(jnp.bfloat16), w2_ref[...],
                preferred_element_type=jnp.float32) + b2_ref[...]
    h = _leaky_relu(h)

    h = jnp.dot(h.astype(jnp.bfloat16), w3_ref[...],
                preferred_element_type=jnp.float32) + b3_ref[...]
    h = _leaky_relu(h)

    # Final Linear(256, 1): N=1 wastes the MXU; do it on the VPU/XLU instead.
    logits = jnp.sum(h * w4_ref[...], axis=-1, keepdims=True) + b4_ref[...]
    o_ref[...] = jax.nn.sigmoid(logits).astype(o_ref.dtype)


def init_params(key, dtype=jnp.float32):
    """Deterministic PyTorch-Linear-style init: U(-1/sqrt(fan_in), 1/sqrt(fan_in))."""
    dims = [(IN_FEATURES, HIDDEN[0]),
            (HIDDEN[0], HIDDEN[1]),
            (HIDDEN[1], HIDDEN[2]),
            (HIDDEN[2], OUT_FEATURES)]
    params = []
    for fan_in, fan_out in dims:
        kw, kb, key = jax.random.split(key, 3)
        bound = 1.0 / jnp.sqrt(jnp.asarray(fan_in, jnp.float32))
        w = jax.random.uniform(kw, (fan_in, fan_out), dtype, -bound, bound)
        b = jax.random.uniform(kb, (1, fan_out), dtype, -bound, bound)
        params += [w, b]
    return params


def prepare_params(params):
    """One-time conversion to the kernel layout: W1..W3 in bf16 (MXU operands),
    W4 as a (1, 256) f32 row for the VPU dot, biases f32.  Call once, outside
    the per-step forward, so no per-call weight copies/casts are executed."""
    w1, b1, w2, b2, w3, b3, w4, b4 = params
    h3 = HIDDEN[2]
    return (w1.astype(jnp.bfloat16), b1.astype(jnp.float32),
            w2.astype(jnp.bfloat16), b2.astype(jnp.float32),
            w3.astype(jnp.bfloat16), b3.astype(jnp.float32),
            jnp.reshape(w4.astype(jnp.float32), (1, h3)),
            jnp.reshape(b4.astype(jnp.float32), (1, OUT_FEATURES)))


@functools.partial(jax.jit, static_argnames=("tile_b",))
def discriminator_forward(x_nchw, kernel_params, tile_b=None):
    """x_nchw: (B, 1, 28, 28) float -> (B, 1) float32 in [0, 1]."""
    B = x_nchw.shape[0]
    x = x_nchw.reshape(B, -1).astype(jnp.float32)     # same as torch .view(B, -1)
    assert x.shape[1] == IN_FEATURES

    w1, b1, w2, b2, w3, b3, w4r, b4 = kernel_params

    if tile_b is None:
        tile_b = _choose_tile_b(B)
    tile_b = min(_round_up(tile_b, 8), _round_up(B, 8))
    b_pad = _round_up(B, tile_b)
    if b_pad != B:
        x = jnp.pad(x, ((0, b_pad - B), (0, 0)))      # batch rows only (small)
    grid = (b_pad // tile_b,)

    h1, h2, h3 = HIDDEN

    in_specs = [
        # x: tiled over batch; K=784 unpadded (block dim == full array dim).
        pl.BlockSpec((tile_b, IN_FEATURES), lambda i: (i, 0)),
        # Weights / biases: constant index_map -> VMEM-resident across steps.
        pl.BlockSpec((IN_FEATURES, h1), lambda i: (0, 0)),
        pl.BlockSpec((1, h1), lambda i: (0, 0)),
        pl.BlockSpec((h1, h2), lambda i: (0, 0)),
        pl.BlockSpec((1, h2), lambda i: (0, 0)),
        pl.BlockSpec((h2, h3), lambda i: (0, 0)),
        pl.BlockSpec((1, h3), lambda i: (0, 0)),
        pl.BlockSpec((1, h3), lambda i: (0, 0)),          # W4 row (f32)
        pl.BlockSpec((1, OUT_FEATURES), lambda i: (0, 0)),
    ]
    out_specs = pl.BlockSpec((tile_b, OUT_FEATURES), lambda i: (i, 0))

    # Advisory cost hint for XLA's scheduler (weights read once, bf16).
    n_w_bf16 = IN_FEATURES * h1 + h1 * h2 + h2 * h3
    n_f32_small = h3 + h1 + h2 + h3 + OUT_FEATURES        # W4 row + biases
    cost = pl.CostEstimate(
        flops=2 * b_pad * (IN_FEATURES * h1 + h1 * h2 + h2 * h3 + h3),
        transcendentals=b_pad * OUT_FEATURES,              # sigmoid
        bytes_accessed=(2 * n_w_bf16 + 4 * n_f32_small
                        + 4 * b_pad * IN_FEATURES + 4 * b_pad * OUT_FEATURES),
    )

    out = pl.pallas_call(
        discriminator_kernel,
        out_shape=jax.ShapeDtypeStruct((b_pad, OUT_FEATURES), jnp.float32),
        grid=grid,
        in_specs=in_specs,
        out_specs=out_specs,
        compiler_params=pltpu.CompilerParams(
            dimension_semantics=("parallel",),   # independent batch tiles -> 2 TCs on v7x
            vmem_limit_bytes=32 << 20,           # stays under v7x's 64 MiB/TC
        ),
        cost_estimate=cost,
    )(x, w1, b1, w2, b2, w3, b3, w4r, b4)

    return out[:B]


def _reference_forward(x_nchw, params):
    x = x_nchw.reshape(x_nchw.shape[0], -1).astype(jnp.float32)
    w1, b1, w2, b2, w3, b3, w4, b4 = params
    h = _leaky_relu(x @ w1 + b1)
    h = _leaky_relu(h @ w2 + b2)
    h = _leaky_relu(h @ w3 + b3)
    return jax.nn.sigmoid(h @ w4 + b4)


if __name__ == "__main__":
    key = jax.random.PRNGKey(0)
    k_x, k_p = jax.random.split(key)

    B = 32                                      # small batch; yields a 2-step grid
    x = jax.random.normal(k_x, (B, 1, 28, 28), jnp.float32)   # NCHW, MNIST-like
    params = init_params(k_p)                   # f32, PyTorch-Linear-style
    kparams = prepare_params(params)            # one-time bf16 / layout conversion

    out = discriminator_forward(x, kparams)
    out = jax.block_until_ready(out)

    ref = _reference_forward(x, params)
    assert out.shape == (B, 1)
    # bf16 MXU operands with f32 accumulation: compare against f32 reference at 1e-2.
    assert jnp.allclose(out, ref, atol=1e-2, rtol=1e-2), "mismatch vs pure-JAX reference"

    print("KERNEL_OK")
</pallas_src>

<mosaic_0001>
module attributes {stable_mosaic.version = 11 : i64} {
  func.func @discriminator_kernel(%arg0: i32, %arg1: memref<16x784xf32, #tpu.memory_space<vmem>>, %arg2: memref<784x1024xbf16, #tpu.memory_space<vmem>>, %arg3: memref<1x1024xf32, #tpu.memory_space<vmem>>, %arg4: memref<1024x512xbf16, #tpu.memory_space<vmem>>, %arg5: memref<1x512xf32, #tpu.memory_space<vmem>>, %arg6: memref<512x256xbf16, #tpu.memory_space<vmem>>, %arg7: memref<1x256xf32, #tpu.memory_space<vmem>>, %arg8: memref<1x256xf32, #tpu.memory_space<vmem>>, %arg9: memref<1x1xf32, #tpu.memory_space<vmem>>, %arg10: memref<16x1xf32, #tpu.memory_space<vmem>>) attributes {dimension_semantics = [#tpu.dimension_semantics<parallel>], iteration_bounds = array<i64: 2>, scalar_prefetch = 0 : i64, scratch_operands = 0 : i64, tpu.core_type = #tpu.core_type<tc>, window_params = [{transform_indices = @transform_0, window_bounds = array<i64: 16, 784>}, {pipeline_mode = #tpu.pipeline_mode<synchronous>, transform_indices = @transform_1, window_bounds = array<i64: 784, 1024>}, {pipeline_mode = #tpu.pipeline_mode<synchronous>, transform_indices = @transform_2, window_bounds = array<i64: 1, 1024>}, {pipeline_mode = #tpu.pipeline_mode<synchronous>, transform_indices = @transform_3, window_bounds = array<i64: 1024, 512>}, {pipeline_mode = #tpu.pipeline_mode<synchronous>, transform_indices = @transform_4, window_bounds = array<i64: 1, 512>}, {pipeline_mode = #tpu.pipeline_mode<synchronous>, transform_indices = @transform_5, window_bounds = array<i64: 512, 256>}, {pipeline_mode = #tpu.pipeline_mode<synchronous>, transform_indices = @transform_6, window_bounds = array<i64: 1, 256>}, {pipeline_mode = #tpu.pipeline_mode<synchronous>, transform_indices = @transform_7, window_bounds = array<i64: 1, 256>}, {pipeline_mode = #tpu.pipeline_mode<synchronous>, transform_indices = @transform_8, window_bounds = array<i64: 1, 1>}, {transform_indices = @transform_9, window_bounds = array<i64: 16, 1>}]} {
    %c0 = arith.constant 0 : index
    %c0_0 = arith.constant 0 : index
    %0 = vector.load %arg1[%c0, %c0_0] : memref<16x784xf32, #tpu.memory_space<vmem>>, vector<16x784xf32>
    %1 = arith.truncf %0 : vector<16x784xf32> to vector<16x784xbf16>
    %c0_1 = arith.constant 0 : index
    %c0_2 = arith.constant 0 : index
    %2 = vector.load %arg2[%c0_1, %c0_2] : memref<784x1024xbf16, #tpu.memory_space<vmem>>, vector<784x1024xbf16>
    %cst = arith.constant dense<0.000000e+00> : vector<16x1024xf32>
    %3 = tpu.matmul %1, %2, %cst {dimension_numbers = #tpu.dot_dimension_numbers<[1], [0], [0], [1], [0, 0, 1, 1], [], []>} : vector<16x784xbf16>, vector<784x1024xbf16>, vector<16x1024xf32> -> vector<16x1024xf32>
    %c0_3 = arith.constant 0 : index
    %c0_4 = arith.constant 0 : index
    %4 = vector.load %arg3[%c0_3, %c0_4] : memref<1x1024xf32, #tpu.memory_space<vmem>>, vector<1x1024xf32>
    %5 = vector.broadcast %4 : vector<1x1024xf32> to vector<16x1024xf32>
    %6 = arith.addf %3, %5 : vector<16x1024xf32>
    %cst_5 = arith.constant 0.000000e+00 : f32
    %7 = vector.broadcast %cst_5 : f32 to vector<16x1024xf32>
    %8 = arith.cmpf ogt, %6, %7 : vector<16x1024xf32>
    %cst_6 = arith.constant 2.000000e-01 : f32
    %9 = vector.broadcast %cst_6 : f32 to vector<16x1024xf32>
    %10 = arith.mulf %9, %6 : vector<16x1024xf32>
    %11 = arith.select %8, %6, %10 : vector<16x1024xi1>, vector<16x1024xf32>
    %12 = arith.truncf %11 : vector<16x1024xf32> to vector<16x1024xbf16>
    %c0_7 = arith.constant 0 : index
    %c0_8 = arith.constant 0 : index
    %13 = vector.load %arg4[%c0_7, %c0_8] : memref<1024x512xbf16, #tpu.memory_space<vmem>>, vector<1024x512xbf16>
    %cst_9 = arith.constant dense<0.000000e+00> : vector<16x512xf32>
    %14 = tpu.matmul %12, %13, %cst_9 {dimension_numbers = #tpu.dot_dimension_numbers<[1], [0], [0], [1], [0, 0, 1, 1], [], []>} : vector<16x1024xbf16>, vector<1024x512xbf16>, vector<16x512xf32> -> vector<16x512xf32>
    %c0_10 = arith.constant 0 : index
    %c0_11 = arith.constant 0 : index
    %15 = vector.load %arg5[%c0_10, %c0_11] : memref<1x512xf32, #tpu.memory_space<vmem>>, vector<1x512xf32>
    %16 = vector.broadcast %15 : vector<1x512xf32> to vector<16x512xf32>
    %17 = arith.addf %14, %16 : vector<16x512xf32>
    %cst_12 = arith.constant 0.000000e+00 : f32
    %18 = vector.broadcast %cst_12 : f32 to vector<16x512xf32>
    %19 = arith.cmpf ogt, %17, %18 : vector<16x512xf32>
    %cst_13 = arith.constant 2.000000e-01 : f32
    %20 = vector.broadcast %cst_13 : f32 to vector<16x512xf32>
    %21 = arith.mulf %20, %17 : vector<16x512xf32>
    %22 = arith.select %19, %17, %21 : vector<16x512xi1>, vector<16x512xf32>
    %23 = arith.truncf %22 : vector<16x512xf32> to vector<16x512xbf16>
    %c0_14 = arith.constant 0 : index
    %c0_15 = arith.constant 0 : index
    %24 = vector.load %arg6[%c0_14, %c0_15] : memref<512x256xbf16, #tpu.memory_space<vmem>>, vector<512x256xbf16>
    %cst_16 = arith.constant dense<0.000000e+00> : vector<16x256xf32>
    %25 = tpu.matmul %23, %24, %cst_16 {dimension_numbers = #tpu.dot_dimension_numbers<[1], [0], [0], [1], [0, 0, 1, 1], [], []>} : vector<16x512xbf16>, vector<512x256xbf16>, vector<16x256xf32> -> vector<16x256xf32>
    %c0_17 = arith.constant 0 : index
    %c0_18 = arith.constant 0 : index
    %26 = vector.load %arg7[%c0_17, %c0_18] : memref<1x256xf32, #tpu.memory_space<vmem>>, vector<1x256xf32>
    %27 = vector.broadcast %26 : vector<1x256xf32> to vector<16x256xf32>
    %28 = arith.addf %25, %27 : vector<16x256xf32>
    %cst_19 = arith.constant 0.000000e+00 : f32
    %29 = vector.broadcast %cst_19 : f32 to vector<16x256xf32>
    %30 = arith.cmpf ogt, %28, %29 : vector<16x256xf32>
    %cst_20 = arith.constant 2.000000e-01 : f32
    %31 = vector.broadcast %cst_20 : f32 to vector<16x256xf32>
    %32 = arith.mulf %31, %28 : vector<16x256xf32>
    %33 = arith.select %30, %28, %32 : vector<16x256xi1>, vector<16x256xf32>
    %c0_21 = arith.constant 0 : index
    %c0_22 = arith.constant 0 : index
    %34 = vector.load %arg8[%c0_21, %c0_22] : memref<1x256xf32, #tpu.memory_space<vmem>>, vector<1x256xf32>
    %35 = vector.broadcast %34 : vector<1x256xf32> to vector<16x256xf32>
    %36 = arith.mulf %33, %35 : vector<16x256xf32>
    %cst_23 = arith.constant dense<0.000000e+00> : vector<16xf32>
    %37 = vector.multi_reduction <add>, %36, %cst_23 [1] : vector<16x256xf32> to vector<16xf32>
    %38 = vector.shape_cast %37 : vector<16xf32> to vector<16x1xf32>
    %c0_24 = arith.constant 0 : index
    %c0_25 = arith.constant 0 : index
    %39 = vector.load %arg9[%c0_24, %c0_25] : memref<1x1xf32, #tpu.memory_space<vmem>>, vector<1x1xf32>
    %40 = vector.broadcast %39 : vector<1x1xf32> to vector<16x1xf32>
    %41 = arith.addf %38, %40 : vector<16x1xf32>
    %42 = arith.negf %41 : vector<16x1xf32>
    %43 = math.exp %42 : vector<16x1xf32>
    %cst_26 = arith.constant 1.000000e+00 : f32
    %44 = vector.broadcast %cst_26 : f32 to vector<16x1xf32>
    %45 = arith.addf %44, %43 : vector<16x1xf32>
    %46 = arith.divf %44, %45 : vector<16x1xf32>
    %c0_27 = arith.constant 0 : index
    %c0_28 = arith.constant 0 : index
    %47 = vector.load %arg10[%c0_27, %c0_28] : memref<16x1xf32, #tpu.memory_space<vmem>>, vector<16x1xf32>
    tpu.vector_store %arg10[%c0_27, %c0_28], %46 {strides = array<i32>} : memref<16x1xf32, #tpu.memory_space<vmem>>, vector<16x1xf32>,
    return
  }
  func.func @transform_0(%arg0: i32) -> (i32, i32) {
    %c0_i32 = arith.constant 0 : i32
    %c0_i32_0 = arith.constant 0 : i32
    return %arg0, %c0_i32 : i32, i32
  }
  func.func @transform_1(%arg0: i32) -> (i32, i32) {
    %c0_i32 = arith.constant 0 : i32
    %c0_i32_0 = arith.constant 0 : i32
    %c0_i32_1 = arith.constant 0 : i32
    return %c0_i32, %c0_i32_0 : i32, i32
  }
  func.func @transform_2(%arg0: i32) -> (i32, i32) {
    %c0_i32 = arith.constant 0 : i32
    %c0_i32_0 = arith.constant 0 : i32
    %c0_i32_1 = arith.constant 0 : i32
    return %c0_i32, %c0_i32_0 : i32, i32
  }
  func.func @transform_3(%arg0: i32) -> (i32, i32) {
    %c0_i32 = arith.constant 0 : i32
    %c0_i32_0 = arith.constant 0 : i32
    %c0_i32_1 = arith.constant 0 : i32
    return %c0_i32, %c0_i32_0 : i32, i32
  }
  func.func @transform_4(%arg0: i32) -> (i32, i32) {
    %c0_i32 = arith.constant 0 : i32
    %c0_i32_0 = arith.constant 0 : i32
    %c0_i32_1 = arith.constant 0 : i32
    return %c0_i32, %c0_i32_0 : i32, i32
  }
  func.func @transform_5(%arg0: i32) -> (i32, i32) {
    %c0_i32 = arith.constant 0 : i32
    %c0_i32_0 = arith.constant 0 : i32
    %c0_i32_1 = arith.constant 0 : i32
    return %c0_i32, %c0_i32_0 : i32, i32
  }
  func.func @transform_6(%arg0: i32) -> (i32, i32) {
    %c0_i32 = arith.constant 0 : i32
    %c0_i32_0 = arith.constant 0 : i32
    %c0_i32_1 = arith.constant 0 : i32
    return %c0_i32, %c0_i32_0 : i32, i32
  }
  func.func @transform_7(%arg0: i32) -> (i32, i32) {
    %c0_i32 = arith.constant 0 : i32
    %c0_i32_0 = arith.constant 0 : i32
    %c0_i32_1 = arith.constant 0 : i32
    return %c0_i32, %c0_i32_0 : i32, i32
  }
  func.func @transform_8(%arg0: i32) -> (i32, i32) {
    %c0_i32 = arith.constant 0 : i32
    %c0_i32_0 = arith.constant 0 : i32
    %c0_i32_1 = arith.constant 0 : i32
    return %c0_i32, %c0_i32_0 : i32, i32
  }
  func.func @transform_9(%arg0: i32) -> (i32, i32) {
    %c0_i32 = arith.constant 0 : i32
    %c0_i32_0 = arith.constant 0 : i32
    return %arg0, %c0_i32 : i32, i32
  }
}

</mosaic_0001>

<llo_original>
// kernel: discriminator_forward.1
$region0: #{discriminator_forward.1}
  #allocation0 [shape = 'u32[]', space=smem, size = 0x4, offset = 0x4, fixed_abs, tag = 'smem constant byte address 0x4 - core index']
  #allocation1 [shape = 'u32[144,128]{1,0:T(1,128)}', space=vmem, size = 0x12000, scoped, tag = 'internal scratch']
  #allocation2 [shape = 'f32[1,1]{1,0:T(1,128)S(1)}', space=vmem, size = 0x200, scoped, tag = 'scoped memory for discriminator_forward.1']
  %s0 = inlined_call_operand.vmem [shape: f32[32,784], index: 0, kind: input, shape index: {}]
  %s1 = inlined_call_operand.hbm [shape: bf16[784,1024], index: 1, kind: input, shape index: {}]
  %s2 = inlined_call_operand.hbm [shape: f32[1,1024], index: 2, kind: input, shape index: {}]
  %s3 = inlined_call_operand.hbm [shape: bf16[1024,512], index: 3, kind: input, shape index: {}]
  %s4 = inlined_call_operand.hbm [shape: f32[1,512], index: 4, kind: input, shape index: {}]
  %s5 = inlined_call_operand.hbm [shape: bf16[512,256], index: 5, kind: input, shape index: {}]
  %s6 = inlined_call_operand.hbm [shape: f32[1,256], index: 6, kind: input, shape index: {}]
  %s7 = inlined_call_operand.hbm [shape: f32[1,256], index: 7, kind: input, shape index: {}]
  %s8 = inlined_call_operand.<no memory space> [shape: f32[1,1], index: 8, kind: input, shape index: {}]
  %s9 = inlined_call_operand.vmem [shape: f32[32,1], index: 9, kind: output, shape index: {}]
  %s10 = sld [smem:[#allocation0]]
  $region97: #{discriminator_forward.1} parent=0
    _
  %s12 = ssub.s32 1, %s10
  %s13 = scalar_select 0, %s12, %s10
  %v14 = vstv %s8
  %15 = vst [vmem:[#allocation2] sm:$0x1] %v14
  $region1: #{discriminator_forward.1} parent=0
    #allocation3 [shape = 'u8[1605632]{0}', space=vmem, size = 0x188000, scoped, tag = 'input window, operand 1, single buffered']
    #allocation4 [shape = 's32[2]{0}', space=sflag, size = 0x8, scoped, tag = 'scoped memory for discriminator_forward.1']
    #allocation5 [shape = 'u8[4096]{0}', space=vmem, size = 0x1000, scoped, tag = 'input window, operand 2, single buffered']
    #allocation6 [shape = 's32[1]{0}', space=sflag, size = 0x4, scoped, tag = 'scoped memory for discriminator_forward.1']
    #allocation7 [shape = 'u8[1048576]{0}', space=vmem, size = 0x100000, scoped, tag = 'input window, operand 3, single buffered']
    #allocation8 [shape = 'u8[2048]{0}', space=vmem, size = 0x800, scoped, tag = 'input window, operand 4, single buffered']
    #allocation9 [shape = 's32[1]{0}', space=sflag, size = 0x4, scoped, tag = 'scoped memory for discriminator_forward.1']
    #allocation10 [shape = 'u8[262144]{0}', space=vmem, size = 0x40000, scoped, tag = 'input window, operand 5, single buffered']
    #allocation11 [shape = 'u8[1024]{0}', space=vmem, size = 0x400, scoped, tag = 'input window, operand 6, single buffered']
    #allocation12 [shape = 's32[1]{0}', space=sflag, size = 0x4, scoped, tag = 'scoped memory for discriminator_forward.1']
    #allocation13 [shape = 'u8[1024]{0}', space=vmem, size = 0x400, scoped, tag = 'input window, operand 7, single buffered']
    %16 = vsyncpa [#allocation4], 0
    %17 = vsyncpa [#allocation6], 0
    %18 = vsyncpa [#allocation9], 0
    %19 = vsyncpa [#allocation12], 0
    loop: start=0, step=1, limit=4
    $region2: #{discriminator_forward.1} parent=1 // loop_pre_header
      _
    $region3: #{discriminator_forward.1} parent=1 // loop_header
      %s21 = sphi 0, %s25
      %p22 = scmp.ge.s32.totalorder %s21, 4
      %s31 = sphi 0, %s33
      %s34 = sphi 0, %s31
      %s35 = sphi 0, %s34
      %s51 = sphi 0, %s35
      %s55 = sphi 0, %s55
      %s57 = sphi 0, %s55
      %s58 = sphi 0, %s57
      %s72 = sphi 0, %s58
      %s76 = sphi 0, %s76
      %s78 = sphi 0, %s76
      %s79 = sphi 0, %s78
      %s93 = sphi 0, %s79
      %s97 = sphi 0, %s97
      %s99 = sphi 0, %s97
      %s100 = sphi 0, %s99
      %s114 = sphi 0, %s100
      %s118 = sphi 0, %s118
      %s120 = sphi 0, %s118
      %s121 = sphi 0, %s120
      %s135 = sphi 0, %s121
      %s139 = sphi 0, %s139
      %s141 = sphi 0, %s139
      %s142 = sphi 0, %s141
      %s156 = sphi 0, %s142
      %s160 = sphi 0, %s160
      %s162 = sphi 0, %s160
      %s163 = sphi 0, %s162
      %s177 = sphi 0, %s163
      %s181 = sphi 0, %s181
      %s183 = sphi 0, %s181
      %s184 = sphi 0, %s183
      %s198 = sphi 0, %s184
      %s202 = sphi 0, %s202
      %s204 = sphi 0, %s202
      %s205 = sphi 0, %s204
      %s219 = sphi 0, %s205
      %s225 = sphi 0, %s227
      %s228 = sphi 0, %s225
      %s229 = sphi 0, %s228
      %s245 = sphi 0, %s229
    $region4: #{discriminator_forward.1} parent=1 // loop_header_branch
      %24 = sbr.rel (%p22) target = $region8
    $region5: #{discriminator_forward.1} parent=1 // loop_body
      %s26 = ssub.s32 %s21, 1
      %s27 = ssub.s32 %s21, 2
      %s28 = sadd.s32 %s21, 1
      %s29 = ssub.s32 %s21, %s28
      %p30 = scmp.eq.s32.totalorder %s29, 0
      %s32 = sadd.s32 %s31, 1
      %s33 = scalar_select %p30, %s31, %s32
      %p36 = pneg %p30
      %p37 = scmp.eq.s32.totalorder %s21, 1
      %p38 = por %p36, %p37
      %p39 = scmp.ne.s32.totalorder %s31, %s34
      %p40 = scmp.eq.s32.totalorder %s21, 0
      %p41 = por %p39, %p40
      %p42 = scmp.ne.s32.totalorder %s31, %s34
      %p43 = scmp.eq.s32.totalorder %s26, 1
      %p44 = por %p42, %p43
      %p45 = scmp.ne.s32.totalorder %s34, %s35
      %p46 = scmp.eq.s32.totalorder %s26, 0
      %p47 = por %p45, %p46
      %p48 = scmp.ne.s32.totalorder %s34, %s35
      %p49 = scmp.eq.s32.totalorder %s27, 1
      %p50 = por %p48, %p49
      %p52 = scmp.ne.s32.totalorder %s35, %s51
      %p53 = scmp.eq.s32.totalorder %s27, 0
      %p54 = por %p52, %p53
      %s56 = sadd.s32 %s55, 1
      %p59 = scmp.eq.s32.totalorder %s21, 1
      %p60 = scmp.ne.s32.totalorder %s55, %s57
      %p61 = scmp.eq.s32.totalorder %s21, 0
      %p62 = por %p60, %p61
      %p63 = scmp.ne.s32.totalorder %s55, %s57
      %p64 = scmp.eq.s32.totalorder %s26, 1
      %p65 = por %p63, %p64
      %p66 = scmp.ne.s32.totalorder %s57, %s58
      %p67 = scmp.eq.s32.totalorder %s26, 0
      %p68 = por %p66, %p67
      %p69 = scmp.ne.s32.totalorder %s57, %s58
      %p70 = scmp.eq.s32.totalorder %s27, 1
      %p71 = por %p69, %p70
      %p73 = scmp.ne.s32.totalorder %s58, %s72
      %p74 = scmp.eq.s32.totalorder %s27, 0
      %p75 = por %p73, %p74
      %s77 = sadd.s32 %s76, 1
      %p80 = scmp.eq.s32.totalorder %s21, 1
      %p81 = scmp.ne.s32.totalorder %s76, %s78
      %p82 = scmp.eq.s32.totalorder %s21, 0
      %p83 = por %p81, %p82
      %p84 = scmp.ne.s32.totalorder %s76, %s78
      %p85 = scmp.eq.s32.totalorder %s26, 1
      %p86 = por %p84, %p85
      %p87 = scmp.ne.s32.totalorder %s78, %s79
      %p88 = scmp.eq.s32.totalorder %s26, 0
      %p89 = por %p87, %p88
      %p90 = scmp.ne.s32.totalorder %s78, %s79
      %p91 = scmp.eq.s32.totalorder %s27, 1
      %p92 = por %p90, %p91
      %p94 = scmp.ne.s32.totalorder %s79, %s93
      %p95 = scmp.eq.s32.totalorder %s27, 0
      %p96 = por %p94, %p95
      %s98 = sadd.s32 %s97, 1
      %p101 = scmp.eq.s32.totalorder %s21, 1
      %p102 = scmp.ne.s32.totalorder %s97, %s99
      %p103 = scmp.eq.s32.totalorder %s21, 0
      %p104 = por %p102, %p103
      %p105 = scmp.ne.s32.totalorder %s97, %s99
      %p106 = scmp.eq.s32.totalorder %s26, 1
      %p107 = por %p105, %p106
      %p108 = scmp.ne.s32.totalorder %s99, %s100
      %p109 = scmp.eq.s32.totalorder %s26, 0
      %p110 = por %p108, %p109
      %p111 = scmp.ne.s32.totalorder %s99, %s100
      %p112 = scmp.eq.s32.totalorder %s27, 1
      %p113 = por %p111, %p112
      %p115 = scmp.ne.s32.totalorder %s100, %s114
      %p116 = scmp.eq.s32.totalorder %s27, 0
      %p117 = por %p115, %p116
      %s119 = sadd.s32 %s118, 1
      %p122 = scmp.eq.s32.totalorder %s21, 1
      %p123 = scmp.ne.s32.totalorder %s118, %s120
      %p124 = scmp.eq.s32.totalorder %s21, 0
      %p125 = por %p123, %p124
      %p126 = scmp.ne.s32.totalorder %s118, %s120
      %p127 = scmp.eq.s32.totalorder %s26, 1
      %p128 = por %p126, %p127
      %p129 = scmp.ne.s32.totalorder %s120, %s121
      %p130 = scmp.eq.s32.totalorder %s26, 0
      %p131 = por %p129, %p130
      %p132 = scmp.ne.s32.totalorder %s120, %s121
      %p133 = scmp.eq.s32.totalorder %s27, 1
      %p134 = por %p132, %p133
      %p136 = scmp.ne.s32.totalorder %s121, %s135
      %p137 = scmp.eq.s32.totalorder %s27, 0
      %p138 = por %p136, %p137
      %s140 = sadd.s32 %s139, 1
      %p143 = scmp.eq.s32.totalorder %s21, 1
      %p144 = scmp.ne.s32.totalorder %s139, %s141
      %p145 = scmp.eq.s32.totalorder %s21, 0
      %p146 = por %p144, %p145
      %p147 = scmp.ne.s32.totalorder %s139, %s141
      %p148 = scmp.eq.s32.totalorder %s26, 1
      %p149 = por %p147, %p148
      %p150 = scmp.ne.s32.totalorder %s141, %s142
      %p151 = scmp.eq.s32.totalorder %s26, 0
      %p152 = por %p150, %p151
      %p153 = scmp.ne.s32.totalorder %s141, %s142
      %p154 = scmp.eq.s32.totalorder %s27, 1
      %p155 = por %p153, %p154
      %p157 = scmp.ne.s32.totalorder %s142, %s156
      %p158 = scmp.eq.s32.totalorder %s27, 0
      %p159 = por %p157, %p158
      %s161 = sadd.s32 %s160, 1
      %p164 = scmp.eq.s32.totalorder %s21, 1
      %p165 = scmp.ne.s32.totalorder %s160, %s162
      %p166 = scmp.eq.s32.totalorder %s21, 0
      %p167 = por %p165, %p166
      %p168 = scmp.ne.s32.totalorder %s160, %s162
      %p169 = scmp.eq.s32.totalorder %s26, 1
      %p170 = por %p168, %p169
      %p171 = scmp.ne.s32.totalorder %s162, %s163
      %p172 = scmp.eq.s32.totalorder %s26, 0
      %p173 = por %p171, %p172
      %p174 = scmp.ne.s32.totalorder %s162, %s163
      %p175 = scmp.eq.s32.totalorder %s27, 1
      %p176 = por %p174, %p175
      %p178 = scmp.ne.s32.totalorder %s163, %s177
      %p179 = scmp.eq.s32.totalorder %s27, 0
      %p180 = por %p178, %p179
      %s182 = sadd.s32 %s181, 1
      %p185 = scmp.eq.s32.totalorder %s21, 1
      %p186 = scmp.ne.s32.totalorder %s181, %s183
      %p187 = scmp.eq.s32.totalorder %s21, 0
      %p188 = por %p186, %p187
      %p189 = scmp.ne.s32.totalorder %s181, %s183
      %p190 = scmp.eq.s32.totalorder %s26, 1
      %p191 = por %p189, %p190
      %p192 = scmp.ne.s32.totalorder %s183, %s184
      %p193 = scmp.eq.s32.totalorder %s26, 0
      %p194 = por %p192, %p193
      %p195 = scmp.ne.s32.totalorder %s183, %s184
      %p196 = scmp.eq.s32.totalorder %s27, 1
      %p197 = por %p195, %p196
      %p199 = scmp.ne.s32.totalorder %s184, %s198
      %p200 = scmp.eq.s32.totalorder %s27, 0
      %p201 = por %p199, %p200
      %s203 = sadd.s32 %s202, 1
      %p206 = scmp.eq.s32.totalorder %s21, 1
      %p207 = scmp.ne.s32.totalorder %s202, %s204
      %p208 = scmp.eq.s32.totalorder %s21, 0
      %p209 = por %p207, %p208
      %p210 = scmp.ne.s32.totalorder %s202, %s204
      %p211 = scmp.eq.s32.totalorder %s26, 1
      %p212 = por %p210, %p211
      %p213 = scmp.ne.s32.totalorder %s204, %s205
      %p214 = scmp.eq.s32.totalorder %s26, 0
      %p215 = por %p213, %p214
      %p216 = scmp.ne.s32.totalorder %s204, %s205
      %p217 = scmp.eq.s32.totalorder %s27, 1
      %p218 = por %p216, %p217
      %p220 = scmp.ne.s32.totalorder %s205, %s219
      %p221 = scmp.eq.s32.totalorder %s27, 0
      %p222 = por %p220, %p221
      %s223 = ssub.s32 %s21, %s28
      %p224 = scmp.eq.s32.totalorder %s223, 0
      %s226 = sadd.s32 %s225, 1
      %s227 = scalar_select %p224, %s225, %s226
      %p230 = pneg %p224
      %p231 = scmp.eq.s32.totalorder %s21, 1
      %p232 = por %p230, %p231
      %p233 = scmp.ne.s32.totalorder %s225, %s228
      %p234 = scmp.eq.s32.totalorder %s21, 0
      %p235 = por %p233, %p234
      %p236 = scmp.ne.s32.totalorder %s225, %s228
      %p237 = scmp.eq.s32.totalorder %s26, 1
      %p238 = por %p236, %p237
      %p239 = scmp.ne.s32.totalorder %s228, %s229
      %p240 = scmp.eq.s32.totalorder %s26, 0
      %p241 = por %p239, %p240
      %p242 = scmp.ne.s32.totalorder %s228, %s229
      %p243 = scmp.eq.s32.totalorder %s27, 1
      %p244 = por %p242, %p243
      %p246 = scmp.ne.s32.totalorder %s229, %s245
      %p247 = scmp.eq.s32.totalorder %s27, 0
      %p248 = por %p246, %p247
      %p249 = scmp.le.s32.totalorder 1, %s21
      %p250 = scmp.lt.s32.totalorder %s21, 3
      %p251 = pnand %p249, %p250
      %p252 = pneg %p251
      // Predicated region
      $region9: #{discriminator_forward.1} parent=5 // pred_check
        _
      $region10: #{discriminator_forward.1} parent=5 // pred_check_branch
        %254 = sbr.rel (%p251) target = $region12
      $region11: #{discriminator_forward.1} parent=5 // pred_region
        %s255 = ssub.s32 %s21, 1
        // Predicated region
        $region13: #{discriminator_forward.1} parent=11 // pred_check
          %p256 = pneg %p68
        $region14: #{discriminator_forward.1} parent=11 // pred_check_branch
          %258 = sbr.rel (%p256) target = $region16
        $region15: #{discriminator_forward.1} parent=11 // pred_region
          %s260 = ssub.s32 50176, 50176
          %261 = vsyncadd [#allocation4], %s260
          %s262 = sshll.u32 [#allocation3], 4
          %s263 = int_to_ptr.vmem [resolvable:$true] %s262
          %268 = dma.hbm_to_vmem [thread:$0]  %s1, 50176, %s263, [#allocation4], 512, 512, 32
        $region16: #{discriminator_forward.1} parent=11 // pred_fallthru
          _
        // Predicated region
        $region17: #{discriminator_forward.1} parent=11 // pred_check
          %p269 = pneg %p89
        $region18: #{discriminator_forward.1} parent=11 // pred_check_branch
          %271 = sbr.rel (%p269) target = $region20
        $region19: #{discriminator_forward.1} parent=11 // pred_region
          %s273 = ssub.s32 128, 128
          %274 = vsyncadd [#allocation6], %s273
          %s276 = sshll.u32 [#allocation5], 4
          %s277 = int_to_ptr.vmem [resolvable:$true] %s276
          %279 = dma.hbm_to_vmem [thread:$0]  %s2, 128, %s277, [#allocation6]
        $region20: #{discriminator_forward.1} parent=11 // pred_fallthru
          _
        // Predicated region
        $region21: #{discriminator_forward.1} parent=11 // pred_check
          %p280 = pneg %p110
        $region22: #{discriminator_forward.1} parent=11 // pred_check_branch
          %282 = sbr.rel (%p280) target = $region24
        $region23: #{discriminator_forward.1} parent=11 // pred_region
          %s284 = ssub.s32 32768, 32768
          %285 = vsyncadd [#allocation6], %s284
          %s286 = sshll.u32 [#allocation7], 4
          %s287 = int_to_ptr.vmem [resolvable:$true] %s286
          %292 = dma.hbm_to_vmem [thread:$0]  %s3, 32768, %s287, [#allocation6], 256, 256, 16
        $region24: #{discriminator_forward.1} parent=11 // pred_fallthru
          _
        // Predicated region
        $region25: #{discriminator_forward.1} parent=11 // pred_check
          %p293 = pneg %p131
        $region26: #{discriminator_forward.1} parent=11 // pred_check_branch
          %295 = sbr.rel (%p293) target = $region28
        $region27: #{discriminator_forward.1} parent=11 // pred_region
          %s297 = ssub.s32 64, 64
          %298 = vsyncadd [#allocation9], %s297
          %s300 = sshll.u32 [#allocation8], 4
          %s301 = int_to_ptr.vmem [resolvable:$true] %s300
          %303 = dma.hbm_to_vmem [thread:$0]  %s4, 64, %s301, [#allocation9]
        $region28: #{discriminator_forward.1} parent=11 // pred_fallthru
          _
        // Predicated region
        $region29: #{discriminator_forward.1} parent=11 // pred_check
          %p304 = pneg %p152
        $region30: #{discriminator_forward.1} parent=11 // pred_check_branch
          %306 = sbr.rel (%p304) target = $region32
        $region31: #{discriminator_forward.1} parent=11 // pred_region
          %s308 = ssub.s32 8192, 8192
          %309 = vsyncadd [#allocation9], %s308
          %s310 = sshll.u32 [#allocation10], 4
          %s311 = int_to_ptr.vmem [resolvable:$true] %s310
          %316 = dma.hbm_to_vmem [thread:$0]  %s5, 8192, %s311, [#allocation9], 128, 128, 8
        $region32: #{discriminator_forward.1} parent=11 // pred_fallthru
          _
        // Predicated region
        $region33: #{discriminator_forward.1} parent=11 // pred_check
          %p317 = pneg %p173
        $region34: #{discriminator_forward.1} parent=11 // pred_check_branch
          %319 = sbr.rel (%p317) target = $region36
        $region35: #{discriminator_forward.1} parent=11 // pred_region
          %s321 = ssub.s32 32, 32
          %322 = vsyncadd [#allocation12], %s321
          %s324 = sshll.u32 [#allocation11], 4
          %s325 = int_to_ptr.vmem [resolvable:$true] %s324
          %327 = dma.hbm_to_vmem [thread:$0]  %s6, 32, %s325, [#allocation12]
        $region36: #{discriminator_forward.1} parent=11 // pred_fallthru
          _
        // Predicated region
        $region37: #{discriminator_forward.1} parent=11 // pred_check
          %p328 = pneg %p194
        $region38: #{discriminator_forward.1} parent=11 // pred_check_branch
          %330 = sbr.rel (%p328) target = $region40
        $region39: #{discriminator_forward.1} parent=11 // pred_region
          %s332 = ssub.s32 32, 32
          %333 = vsyncadd [#allocation12], %s332
          %s335 = sshll.u32 [#allocation13], 4
          %s336 = int_to_ptr.vmem [resolvable:$true] %s335
          %338 = dma.hbm_to_vmem [thread:$0]  %s7, 32, %s336, [#allocation12]
        $region40: #{discriminator_forward.1} parent=11 // pred_fallthru
          _
        // Predicated region
        $region41: #{discriminator_forward.1} parent=11 // pred_check
          %p339 = pneg %p215
        $region42: #{discriminator_forward.1} parent=11 // pred_check_branch
          %341 = sbr.rel (%p339) target = $region44
        $region43: #{discriminator_forward.1} parent=11 // pred_region
          _
        $region44: #{discriminator_forward.1} parent=11 // pred_fallthru
          _
      $region12: #{discriminator_forward.1} parent=5 // pred_fallthru
        _
      %p342 = scmp.lt.s32.totalorder %s21, 2
      // Predicated region
      $region45: #{discriminator_forward.1} parent=5 // pred_check
        %p343 = pneg %p342
      $region46: #{discriminator_forward.1} parent=5 // pred_check_branch
        %345 = sbr.rel (%p343) target = $region48
      $region47: #{discriminator_forward.1} parent=5 // pred_region
        // Predicated region
        $region49: #{discriminator_forward.1} parent=47 // pred_check
          %p346 = pneg %p41
        $region50: #{discriminator_forward.1} parent=47 // pred_check_branch
          %348 = sbr.rel (%p346) target = $region52
        $region51: #{discriminator_forward.1} parent=47 // pred_region
          %s349 = smul.u32 2, %s21
          %p350 = scmp.lt.s32.totalorder %s349, 3
          %s351 = scalar_select %p350, %s349, 3
          %s352 = smul.addr %s351, 7
          %s353 = smul.addr %s352, 8
          %s354 = scalar_lea.vmem %s0, %s353
          %s355 = smul.u32 2, %s21
        $region52: #{discriminator_forward.1} parent=47 // pred_fallthru
          _
      $region48: #{discriminator_forward.1} parent=5 // pred_fallthru
        _
      %p356 = scmp.le.s32.totalorder 1, %s21
      %p357 = scmp.lt.s32.totalorder %s21, 3
      %p358 = pnand %p356, %p357
      %p359 = pneg %p358
      // Predicated region
      $region53: #{discriminator_forward.1} parent=5 // pred_check
        _
      $region54: #{discriminator_forward.1} parent=5 // pred_check_branch
        %361 = sbr.rel (%p358) target = $region56
      $region55: #{discriminator_forward.1} parent=5 // pred_region
        %s362 = ssub.s32 %s21, 1
        // Predicated region
        $region57: #{discriminator_forward.1} parent=55 // pred_check
          %p363 = pneg %p68
        $region58: #{discriminator_forward.1} parent=55 // pred_check_branch
          %365 = sbr.rel (%p363) target = $region60
        $region59: #{discriminator_forward.1} parent=55 // pred_region
          %366 = dma.done [#allocation4], 50176
        $region60: #{discriminator_forward.1} parent=55 // pred_fallthru
          _
        // Predicated region
        $region61: #{discriminator_forward.1} parent=55 // pred_check
          %p367 = pneg %p89
        $region62: #{discriminator_forward.1} parent=55 // pred_check_branch
          %369 = sbr.rel (%p367) target = $region64
        $region63: #{discriminator_forward.1} parent=55 // pred_region
          %370 = dma.done [#allocation6], 128
        $region64: #{discriminator_forward.1} parent=55 // pred_fallthru
          _
        // Predicated region
        $region65: #{discriminator_forward.1} parent=55 // pred_check
          %p371 = pneg %p110
        $region66: #{discriminator_forward.1} parent=55 // pred_check_branch
          %373 = sbr.rel (%p371) target = $region68
        $region67: #{discriminator_forward.1} parent=55 // pred_region
          %374 = dma.done [#allocation6], 32768
        $region68: #{discriminator_forward.1} parent=55 // pred_fallthru
          _
        // Predicated region
        $region69: #{discriminator_forward.1} parent=55 // pred_check
          %p375 = pneg %p131
        $region70: #{discriminator_forward.1} parent=55 // pred_check_branch
          %377 = sbr.rel (%p375) target = $region72
        $region71: #{discriminator_forward.1} parent=55 // pred_region
          %378 = dma.done [#allocation9], 64
        $region72: #{discriminator_forward.1} parent=55 // pred_fallthru
          _
        // Predicated region
        $region73: #{discriminator_forward.1} parent=55 // pred_check
          %p379 = pneg %p152
        $region74: #{discriminator_forward.1} parent=55 // pred_check_branch
          %381 = sbr.rel (%p379) target = $region76
        $region75: #{discriminator_forward.1} parent=55 // pred_region
          %382 = dma.done [#allocation9], 8192
        $region76: #{discriminator_forward.1} parent=55 // pred_fallthru
          _
        // Predicated region
        $region77: #{discriminator_forward.1} parent=55 // pred_check
          %p383 = pneg %p173
        $region78: #{discriminator_forward.1} parent=55 // pred_check_branch
          %385 = sbr.rel (%p383) target = $region80
        $region79: #{discriminator_forward.1} parent=55 // pred_region
          %386 = dma.done [#allocation12], 32
        $region80: #{discriminator_forward.1} parent=55 // pred_fallthru
          _
        // Predicated region
        $region81: #{discriminator_forward.1} parent=55 // pred_check
          %p387 = pneg %p194
        $region82: #{discriminator_forward.1} parent=55 // pred_check_branch
          %389 = sbr.rel (%p387) target = $region84
        $region83: #{discriminator_forward.1} parent=55 // pred_region
          %390 = dma.done [#allocation12], 32
        $region84: #{discriminator_forward.1} parent=55 // pred_fallthru
          _
        %s391 = smul.u32 2, %s26
        %p392 = scmp.lt.s32.totalorder %s391, 3
        %s393 = scalar_select %p392, %s391, 3
        %s394 = smul.addr %s393, 7
        %s395 = smul.addr %s394, 8
        %s396 = scalar_lea.vmem %s0, %s395
        %p397 = pneg %p47
        %p398 = pneg %p44
        %p399 = pneg %p68
        %p400 = pneg %p65
        %p401 = pneg %p89
        %p402 = pneg %p86
        %p403 = pneg %p110
        %p404 = pneg %p107
        %p405 = pneg %p131
        %p406 = pneg %p128
        %p407 = pneg %p152
        %p408 = pneg %p149
        %p409 = pneg %p173
        %p410 = pneg %p170
        %p411 = pneg %p194
        %p412 = pneg %p191
        %p413 = pneg %p215
        %p414 = pneg %p212
        %p415 = pneg %p241
        %p416 = pneg %p238
        %s417 = smul.u32 2, %s26
        %p418 = scmp.lt.s32.totalorder %s417, 3
        %s419 = scalar_select %p418, %s417, 3
        %s420 = smul.addr %s419, 8
        %s421 = scalar_lea.vmem %s9, %s420
        %s422 = smul.u32 2, %s26
        %p423 = scmp.lt.s32.totalorder %s422, 3
        %s424 = scalar_select %p423, %s422, 3
        %s425 = smul.addr %s424, 7
        %s426 = smul.addr %s425, 8
        %s427 = scalar_lea.vmem %s0, %s426
        %s428 = smul.u32 2, %s26
        %s429 = smul.u32 2, %s26
        %p430 = scmp.lt.s32.totalorder %s429, 3
        %s431 = scalar_select %p430, %s429, 3
        %s432 = smul.addr %s431, 8
        %s433 = scalar_lea.vmem %s9, %s432
        %s434 = smul.u32 2, %s26
        %v436 = vld [vmem:[%s427] sm:$0xff]
        %v437 = vld [vmem:[%s427 + $0x8] sm:$0xff]
        %v438 = vld [vmem:[%s427 + $0x10] sm:$0xff]
        %v439 = vld [vmem:[%s427 + $0x18] sm:$0xff]
        %v440 = vld [vmem:[%s427 + $0x20] sm:$0xff]
        %v441 = vld [vmem:[%s427 + $0x28] sm:$0xff]
        %v442 = vld [vmem:[%s427 + $0x30] sm:$0xff]
        %v443 = vld [vmem:[%s427 + $0x38] sm:$0xff]
        %v444 = vld [vmem:[%s427 + $0x40] sm:$0xff]
        %v445 = vld [vmem:[%s427 + $0x48] sm:$0xff]
        %v446 = vld [vmem:[%s427 + $0x50] sm:$0xff]
        %v447 = vld [vmem:[%s427 + $0x58] sm:$0xff]
        %v448 = vld [vmem:[%s427 + $0x60] sm:$0xff]
        %v449 = vld [vmem:[%s427 + $0x68] sm:$0xff]
        %v450 = vpack.c.bf16 %v443, %v436
        %v451 = vpack.c.bf16 %v444, %v437
        %v452 = vpack.c.bf16 %v445, %v438
        %v453 = vpack.c.bf16 %v446, %v439
        %v454 = vpack.c.bf16 %v447, %v440
        %v455 = vpack.c.bf16 %v448, %v441
        %v456 = vpack.c.bf16 %v449, %v442
        %v457 = vld [vmem:[#allocation3] sm:$0xff]
        %v458 = vld [vmem:[#allocation3 + $0x8] sm:$0xff]
        %v459 = vld [vmem:[#allocation3 + $0x10] sm:$0xff]
        %v460 = vld [vmem:[#allocation3 + $0x18] sm:$0xff]
        %v461 = vld [vmem:[#allocation3 + $0x20] sm:$0xff]
        %v462 = vld [vmem:[#allocation3 + $0x28] sm:$0xff]
        %v463 = vld [vmem:[#allocation3 + $0x30] sm:$0xff]
        %v464 = vld [vmem:[#allocation3 + $0x38] sm:$0xff]
        %v465 = vld [vmem:[#allocation3 + $0x40] sm:$0xff]
        %v466 = vld [vmem:[#allocation3 + $0x48] sm:$0xff]
        %v467 = vld [vmem:[#allocation3 + $0x50] sm:$0xff]
        %v468 = vld [vmem:[#allocation3 + $0x58] sm:$0xff]
        %v469 = vld [vmem:[#allocation3 + $0x60] sm:$0xff]
        %v470 = vld [vmem:[#allocation3 + $0x68] sm:$0xff]
        %v471 = vld [vmem:[#allocation3 + $0x70] sm:$0xff]
        %v472 = vld [vmem:[#allocation3 + $0x78] sm:$0xff]
        %v473 = vld [vmem:[#allocation3 + $0x80] sm:$0xff]
        %v474 = vld [vmem:[#allocation3 + $0x88] sm:$0xff]
        %v475 = vld [vmem:[#allocation3 + $0x90] sm:$0xff]
        %v476 = vld [vmem:[#allocation3 + $0x98] sm:$0xff]
        %v477 = vld [vmem:[#allocation3 + $0xa0] sm:$0xff]
        %v478 = vld [vmem:[#allocation3 + $0xa8] sm:$0xff]
        %v479 = vld [vmem:[#allocation3 + $0xb0] sm:$0xff]
        %v480 = vld [vmem:[#allocation3 + $0xb8] sm:$0xff]
        %v481 = vld [vmem:[#allocation3 + $0xc0] sm:$0xff]
        %v482 = vld [vmem:[#allocation3 + $0xc8] sm:$0xff]
        %v483 = vld [vmem:[#allocation3 + $0xd0] sm:$0xff]
        %v484 = vld [vmem:[#allocation3 + $0xd8] sm:$0xff]
        %v485 = vld [vmem:[#allocation3 + $0xe0] sm:$0xff]
        %v486 = vld [vmem:[#allocation3 + $0xe8] sm:$0xff]
        %v487 = vld [vmem:[#allocation3 + $0xf0] sm:$0xff]
        %v488 = vld [vmem:[#allocation3 + $0xf8] sm:$0xff]
        %v489 = vld [vmem:[#allocation3 + $0x100] sm:$0xff]
        %v490 = vld [vmem:[#allocation3 + $0x108] sm:$0xff]
        %v491 = vld [vmem:[#allocation3 + $0x110] sm:$0xff]
        %v492 = vld [vmem:[#allocation3 + $0x118] sm:$0xff]
        %v493 = vld [vmem:[#allocation3 + $0x120] sm:$0xff]
        %v494 = vld [vmem:[#allocation3 + $0x128] sm:$0xff]
        %v495 = vld [vmem:[#allocation3 + $0x130] sm:$0xff]
        %v496 = vld [vmem:[#allocation3 + $0x138] sm:$0xff]
        %v497 = vld [vmem:[#allocation3 + $0x140] sm:$0xff]
        %v498 = vld [vmem:[#allocation3 + $0x148] sm:$0xff]
        %v499 = vld [vmem:[#allocation3 + $0x150] sm:$0xff]
        %v500 = vld [vmem:[#allocation3 + $0x158] sm:$0xff]
        %v501 = vld [vmem:[#allocation3 + $0x160] sm:$0xff]
        %v502 = vld [vmem:[#allocation3 + $0x168] sm:$0xff]
        %v503 = vld [vmem:[#allocation3 + $0x170] sm:$0xff]
        %v504 = vld [vmem:[#allocation3 + $0x178] sm:$0xff]
        %v505 = vld [vmem:[#allocation3 + $0x180] sm:$0xff]
        %v506 = vld [vmem:[#allocation3 + $0x188] sm:$0xff]
        %v507 = vld [vmem:[#allocation3 + $0x190] sm:$0xff]
        %v508 = vld [vmem:[#allocation3 + $0x198] sm:$0xff]
        %v509 = vld [vmem:[#allocation3 + $0x1a0] sm:$0xff]
        %v510 = vld [vmem:[#allocation3 + $0x1a8] sm:$0xff]
        %v511 = vld [vmem:[#allocation3 + $0x1b0] sm:$0xff]
        %v512 = vld [vmem:[#allocation3 + $0x1b8] sm:$0xff]
        %v513 = vld [vmem:[#allocation3 + $0x1c0] sm:$0xff]
        %v514 = vld [vmem:[#allocation3 + $0x1c8] sm:$0xff]
        %v515 = vld [vmem:[#allocation3 + $0x1d0] sm:$0xff]
        %v516 = vld [vmem:[#allocation3 + $0x1d8] sm:$0xff]
        %v517 = vld [vmem:[#allocation3 + $0x1e0] sm:$0xff]
        %v518 = vld [vmem:[#allocation3 + $0x1e8] sm:$0xff]
        %v519 = vld [vmem:[#allocation3 + $0x1f0] sm:$0xff]
        %v520 = vld [vmem:[#allocation3 + $0x1f8] sm:$0xff]
        %v521 = vld [vmem:[#allocation3 + $0x200] sm:$0xff]
        %v522 = vld [vmem:[#allocation3 + $0x208] sm:$0xff]
        %v523 = vld [vmem:[#allocation3 + $0x210] sm:$0xff]
        %v524 = vld [vmem:[#allocation3 + $0x218] sm:$0xff]
        %v525 = vld [vmem:[#allocation3 + $0x220] sm:$0xff]
        %v526 = vld [vmem:[#allocation3 + $0x228] sm:$0xff]
        %v527 = vld [vmem:[#allocation3 + $0x230] sm:$0xff]
        %v528 = vld [vmem:[#allocation3 + $0x238] sm:$0xff]
        %v529 = vld [vmem:[#allocation3 + $0x240] sm:$0xff]
        %v530 = vld [vmem:[#allocation3 + $0x248] sm:$0xff]
        %v531 = vld [vmem:[#allocation3 + $0x250] sm:$0xff]
        %v532 = vld [vmem:[#allocation3 + $0x258] sm:$0xff]
        %v533 = vld [vmem:[#allocation3 + $0x260] sm:$0xff]
        %v534 = vld [vmem:[#allocation3 + $0x268] sm:$0xff]
        %v535 = vld [vmem:[#allocation3 + $0x270] sm:$0xff]
        %v536 = vld [vmem:[#allocation3 + $0x278] sm:$0xff]
        %v537 = vld [vmem:[#allocation3 + $0x280] sm:$0xff]
        %v538 = vld [vmem:[#allocation3 + $0x288] sm:$0xff]
        %v539 = vld [vmem:[#allocation3 + $0x290] sm:$0xff]
        %v540 = vld [vmem:[#allocation3 + $0x298] sm:$0xff]
        %v541 = vld [vmem:[#allocation3 + $0x2a0] sm:$0xff]
        %v542 = vld [vmem:[#allocation3 + $0x2a8] sm:$0xff]
        %v543 = vld [vmem:[#allocation3 + $0x2b0] sm:$0xff]
        %v544 = vld [vmem:[#allocation3 + $0x2b8] sm:$0xff]
        %v545 = vld [vmem:[#allocation3 + $0x2c0] sm:$0xff]
        %v546 = vld [vmem:[#allocation3 + $0x2c8] sm:$0xff]
        %v547 = vld [vmem:[#allocation3 + $0x2d0] sm:$0xff]
        %v548 = vld [vmem:[#allocation3 + $0x2d8] sm:$0xff]
        %v549 = vld [vmem:[#allocation3 + $0x2e0] sm:$0xff]
        %v550 = vld [vmem:[#allocation3 + $0x2e8] sm:$0xff]
        %v551 = vld [vmem:[#allocation3 + $0x2f0] sm:$0xff]
        %v552 = vld [vmem:[#allocation3 + $0x2f8] sm:$0xff]
        %v553 = vld [vmem:[#allocation3 + $0x300] sm:$0xff]
        %v554 = vld [vmem:[#allocation3 + $0x308] sm:$0xff]
        %v555 = vld [vmem:[#allocation3 + $0x310] sm:$0xff]
        %v556 = vld [vmem:[#allocation3 + $0x318] sm:$0xff]
        %v557 = vld [vmem:[#allocation3 + $0x320] sm:$0xff]
        %v558 = vld [vmem:[#allocation3 + $0x328] sm:$0xff]
        %v559 = vld [vmem:[#allocation3 + $0x330] sm:$0xff]
        %v560 = vld [vmem:[#allocation3 + $0x338] sm:$0xff]
        %v561 = vld [vmem:[#allocation3 + $0x340] sm:$0xff]
        %v562 = vld [vmem:[#allocation3 + $0x348] sm:$0xff]
        %v563 = vld [vmem:[#allocation3 + $0x350] sm:$0xff]
        %v564 = vld [vmem:[#allocation3 + $0x358] sm:$0xff]
        %v565 = vld [vmem:[#allocation3 + $0x360] sm:$0xff]
        %v566 = vld [vmem:[#allocation3 + $0x368] sm:$0xff]
        %v567 = vld [vmem:[#allocation3 + $0x370] sm:$0xff]
        %v568 = vld [vmem:[#allocation3 + $0x378] sm:$0xff]
        %v569 = vld [vmem:[#allocation3 + $0x380] sm:$0xff]
        %v570 = vld [vmem:[#allocation3 + $0x388] sm:$0xff]
        %v571 = vld [vmem:[#allocation3 + $0x390] sm:$0xff]
        %v572 = vld [vmem:[#allocation3 + $0x398] sm:$0xff]
        %v573 = vld [vmem:[#allocation3 + $0x3a0] sm:$0xff]
        %v574 = vld [vmem:[#allocation3 + $0x3a8] sm:$0xff]
        %v575 = vld [vmem:[#allocation3 + $0x3b0] sm:$0xff]
        %v576 = vld [vmem:[#allocation3 + $0x3b8] sm:$0xff]
        %v577 = vld [vmem:[#allocation3 + $0x3c0] sm:$0xff]
        %v578 = vld [vmem:[#allocation3 + $0x3c8] sm:$0xff]
        %v579 = vld [vmem:[#allocation3 + $0x3d0] sm:$0xff]
        %v580 = vld [vmem:[#allocation3 + $0x3d8] sm:$0xff]
        %v581 = vld [vmem:[#allocation3 + $0x3e0] sm:$0xff]
        %v582 = vld [vmem:[#allocation3 + $0x3e8] sm:$0xff]
        %v583 = vld [vmem:[#allocation3 + $0x3f0] sm:$0xff]
        %v584 = vld [vmem:[#allocation3 + $0x3f8] sm:$0xff]
        %v585 = vld [vmem:[#allocation3 + $0x400] sm:$0xff]
        %v586 = vld [vmem:[#allocation3 + $0x408] sm:$0xff]
        %v587 = vld [vmem:[#allocation3 + $0x410] sm:$0xff]
        %v588 = vld [vmem:[#allocation3 + $0x418] sm:$0xff]
        %v589 = vld [vmem:[#allocation3 + $0x420] sm:$0xff]
        %v590 = vld [vmem:[#allocation3 + $0x428] sm:$0xff]
        %v591 = vld [vmem:[#allocation3 + $0x430] sm:$0xff]
        %v592 = vld [vmem:[#allocation3 + $0x438] sm:$0xff]
        %v593 = vld [vmem:[#allocation3 + $0x440] sm:$0xff]
        %v594 = vld [vmem:[#allocation3 + $0x448] sm:$0xff]
        %v595 = vld [vmem:[#allocation3 + $0x450] sm:$0xff]
        %v596 = vld [vmem:[#allocation3 + $0x458] sm:$0xff]
        %v597 = vld [vmem:[#allocation3 + $0x460] sm:$0xff]
        %v598 = vld [vmem:[#allocation3 + $0x468] sm:$0xff]
        %v599 = vld [vmem:[#allocation3 + $0x470] sm:$0xff]
        %v600 = vld [vmem:[#allocation3 + $0x478] sm:$0xff]
        %v601 = vld [vmem:[#allocation3 + $0x480] sm:$0xff]
        %v602 = vld [vmem:[#allocation3 + $0x488] sm:$0xff]
        %v603 = vld [vmem:[#allocation3 + $0x490] sm:$0xff]
        %v604 = vld [vmem:[#allocation3 + $0x498] sm:$0xff]
        %v605 = vld [vmem:[#allocation3 + $0x4a0] sm:$0xff]
        %v606 = vld [vmem:[#allocation3 + $0x4a8] sm:$0xff]
        %v607 = vld [vmem:[#allocation3 + $0x4b0] sm:$0xff]
        %v608 = vld [vmem:[#allocation3 + $0x4b8] sm:$0xff]
        %v609 = vld [vmem:[#allocation3 + $0x4c0] sm:$0xff]
        %v610 = vld [vmem:[#allocation3 + $0x4c8] sm:$0xff]
        %v611 = vld [vmem:[#allocation3 + $0x4d0] sm:$0xff]
        %v612 = vld [vmem:[#allocation3 + $0x4d8] sm:$0xff]
        %v613 = vld [vmem:[#allocation3 + $0x4e0] sm:$0xff]
        %v614 = vld [vmem:[#allocation3 + $0x4e8] sm:$0xff]
        %v615 = vld [vmem:[#allocation3 + $0x4f0] sm:$0xff]
        %v616 = vld [vmem:[#allocation3 + $0x4f8] sm:$0xff]
        %v617 = vld [vmem:[#allocation3 + $0x500] sm:$0xff]
        %v618 = vld [vmem:[#allocation3 + $0x508] sm:$0xff]
        %v619 = vld [vmem:[#allocation3 + $0x510] sm:$0xff]
        %v620 = vld [vmem:[#allocation3 + $0x518] sm:$0xff]
        %v621 = vld [vmem:[#allocation3 + $0x520] sm:$0xff]
        %v622 = vld [vmem:[#allocation3 + $0x528] sm:$0xff]
        %v623 = vld [vmem:[#allocation3 + $0x530] sm:$0xff]
        %v624 = vld [vmem:[#allocation3 + $0x538] sm:$0xff]
        %v625 = vld [vmem:[#allocation3 + $0x540] sm:$0xff]
        %v626 = vld [vmem:[#allocation3 + $0x548] sm:$0xff]
        %v627 = vld [vmem:[#allocation3 + $0x550] sm:$0xff]
        %v628 = vld [vmem:[#allocation3 + $0x558] sm:$0xff]
        %v629 = vld [vmem:[#allocation3 + $0x560] sm:$0xff]
        %v630 = vld [vmem:[#allocation3 + $0x568] sm:$0xff]
        %v631 = vld [vmem:[#allocation3 + $0x570] sm:$0xff]
        %v632 = vld [vmem:[#allocation3 + $0x578] sm:$0xff]
        %v633 = vld [vmem:[#allocation3 + $0x580] sm:$0xff]
        %v634 = vld [vmem:[#allocation3 + $0x588] sm:$0xff]
        %v635 = vld [vmem:[#allocation3 + $0x590] sm:$0xff]
        %v636 = vld [vmem:[#allocation3 + $0x598] sm:$0xff]
        %v637 = vld [vmem:[#allocation3 + $0x5a0] sm:$0xff]
        %v638 = vld [vmem:[#allocation3 + $0x5a8] sm:$0xff]
        %v639 = vld [vmem:[#allocation3 + $0x5b0] sm:$0xff]
        %v640 = vld [vmem:[#allocation3 + $0x5b8] sm:$0xff]
        %v641 = vld [vmem:[#allocation3 + $0x5c0] sm:$0xff]
        %v642 = vld [vmem:[#allocation3 + $0x5c8] sm:$0xff]
        %v643 = vld [vmem:[#allocation3 + $0x5d0] sm:$0xff]
        %v644 = vld [vmem:[#allocation3 + $0x5d8] sm:$0xff]
        %v645 = vld [vmem:[#allocation3 + $0x5e0] sm:$0xff]
        %v646 = vld [vmem:[#allocation3 + $0x5e8] sm:$0xff]
        %v647 = vld [vmem:[#allocation3 + $0x5f0] sm:$0xff]
        %v648 = vld [vmem:[#allocation3 + $0x5f8] sm:$0xff]
        %v649 = vld [vmem:[#allocation3 + $0x600] sm:$0xff]
        %v650 = vld [vmem:[#allocation3 + $0x608] sm:$0xff]
        %v651 = vld [vmem:[#allocation3 + $0x610] sm:$0xff]
        %v652 = vld [vmem:[#allocation3 + $0x618] sm:$0xff]
        %v653 = vld [vmem:[#allocation3 + $0x620] sm:$0xff]
        %v654 = vld [vmem:[#allocation3 + $0x628] sm:$0xff]
        %v655 = vld [vmem:[#allocation3 + $0x630] sm:$0xff]
        %v656 = vld [vmem:[#allocation3 + $0x638] sm:$0xff]
        %v657 = vld [vmem:[#allocation3 + $0x640] sm:$0xff]
        %v658 = vld [vmem:[#allocation3 + $0x648] sm:$0xff]
        %v659 = vld [vmem:[#allocation3 + $0x650] sm:$0xff]
        %v660 = vld [vmem:[#allocation3 + $0x658] sm:$0xff]
        %v661 = vld [vmem:[#allocation3 + $0x660] sm:$0xff]
        %v662 = vld [vmem:[#allocation3 + $0x668] sm:$0xff]
        %v663 = vld [vmem:[#allocation3 + $0x670] sm:$0xff]
        %v664 = vld [vmem:[#allocation3 + $0x678] sm:$0xff]
        %v665 = vld [vmem:[#allocation3 + $0x680] sm:$0xff]
        %v666 = vld [vmem:[#allocation3 + $0x688] sm:$0xff]
        %v667 = vld [vmem:[#allocation3 + $0x690] sm:$0xff]
        %v668 = vld [vmem:[#allocation3 + $0x698] sm:$0xff]
        %v669 = vld [vmem:[#allocation3 + $0x6a0] sm:$0xff]
        %v670 = vld [vmem:[#allocation3 + $0x6a8] sm:$0xff]
        %v671 = vld [vmem:[#allocation3 + $0x6b0] sm:$0xff]
        %v672 = vld [vmem:[#allocation3 + $0x6b8] sm:$0xff]
        %v673 = vld [vmem:[#allocation3 + $0x6c0] sm:$0xff]
        %v674 = vld [vmem:[#allocation3 + $0x6c8] sm:$0xff]
        %v675 = vld [vmem:[#allocation3 + $0x6d0] sm:$0xff]
        %v676 = vld [vmem:[#allocation3 + $0x6d8] sm:$0xff]
        %v677 = vld [vmem:[#allocation3 + $0x6e0] sm:$0xff]
        %v678 = vld [vmem:[#allocation3 + $0x6e8] sm:$0xff]
        %v679 = vld [vmem:[#allocation3 + $0x6f0] sm:$0xff]
        %v680 = vld [vmem:[#allocation3 + $0x6f8] sm:$0xff]
        %v681 = vld [vmem:[#allocation3 + $0x700] sm:$0xff]
        %v682 = vld [vmem:[#allocation3 + $0x708] sm:$0xff]
        %v683 = vld [vmem:[#allocation3 + $0x710] sm:$0xff]
        %v684 = vld [vmem:[#allocation3 + $0x718] sm:$0xff]
        %v685 = vld [vmem:[#allocation3 + $0x720] sm:$0xff]
        %v686 = vld [vmem:[#allocation3 + $0x728] sm:$0xff]
        %v687 = vld [vmem:[#allocation3 + $0x730] sm:$0xff]
        %v688 = vld [vmem:[#allocation3 + $0x738] sm:$0xff]
        %v689 = vld [vmem:[#allocation3 + $0x740] sm:$0xff]
        %v690 = vld [vmem:[#allocation3 + $0x748] sm:$0xff]
        %v691 = vld [vmem:[#allocation3 + $0x750] sm:$0xff]
        %v692 = vld [vmem:[#allocation3 + $0x758] sm:$0xff]
        %v693 = vld [vmem:[#allocation3 + $0x760] sm:$0xff]
        %v694 = vld [vmem:[#allocation3 + $0x768] sm:$0xff]
        %v695 = vld [vmem:[#allocation3 + $0x770] sm:$0xff]
        %v696 = vld [vmem:[#allocation3 + $0x778] sm:$0xff]
        %v697 = vld [vmem:[#allocation3 + $0x780] sm:$0xff]
        %v698 = vld [vmem:[#allocation3 + $0x788] sm:$0xff]
        %v699 = vld [vmem:[#allocation3 + $0x790] sm:$0xff]
        %v700 = vld [vmem:[#allocation3 + $0x798] sm:$0xff]
        %v701 = vld [vmem:[#allocation3 + $0x7a0] sm:$0xff]
        %v702 = vld [vmem:[#allocation3 + $0x7a8] sm:$0xff]
        %v703 = vld [vmem:[#allocation3 + $0x7b0] sm:$0xff]
        %v704 = vld [vmem:[#allocation3 + $0x7b8] sm:$0xff]
        %v705 = vld [vmem:[#allocation3 + $0x7c0] sm:$0xff]
        %v706 = vld [vmem:[#allocation3 + $0x7c8] sm:$0xff]
        %v707 = vld [vmem:[#allocation3 + $0x7d0] sm:$0xff]
        %v708 = vld [vmem:[#allocation3 + $0x7d8] sm:$0xff]
        %v709 = vld [vmem:[#allocation3 + $0x7e0] sm:$0xff]
        %v710 = vld [vmem:[#allocation3 + $0x7e8] sm:$0xff]
        %v711 = vld [vmem:[#allocation3 + $0x7f0] sm:$0xff]
        %v712 = vld [vmem:[#allocation3 + $0x7f8] sm:$0xff]
        %v713 = vld [vmem:[#allocation3 + $0x800] sm:$0xff]
        %v714 = vld [vmem:[#allocation3 + $0x808] sm:$0xff]
        %v715 = vld [vmem:[#allocation3 + $0x810] sm:$0xff]
        %v716 = vld [vmem:[#allocation3 + $0x818] sm:$0xff]
        %v717 = vld [vmem:[#allocation3 + $0x820] sm:$0xff]
        %v718 = vld [vmem:[#allocation3 + $0x828] sm:$0xff]
        %v719 = vld [vmem:[#allocation3 + $0x830] sm:$0xff]
        %v720 = vld [vmem:[#allocation3 + $0x838] sm:$0xff]
        %v721 = vld [vmem:[#allocation3 + $0x840] sm:$0xff]
        %v722 = vld [vmem:[#allocation3 + $0x848] sm:$0xff]
        %v723 = vld [vmem:[#allocation3 + $0x850] sm:$0xff]
        %v724 = vld [vmem:[#allocation3 + $0x858] sm:$0xff]
        %v725 = vld [vmem:[#allocation3 + $0x860] sm:$0xff]
        %v726 = vld [vmem:[#allocation3 + $0x868] sm:$0xff]
        %v727 = vld [vmem:[#allocation3 + $0x870] sm:$0xff]
        %v728 = vld [vmem:[#allocation3 + $0x878] sm:$0xff]
        %v729 = vld [vmem:[#allocation3 + $0x880] sm:$0xff]
        %v730 = vld [vmem:[#allocation3 + $0x888] sm:$0xff]
        %v731 = vld [vmem:[#allocation3 + $0x890] sm:$0xff]
        %v732 = vld [vmem:[#allocation3 + $0x898] sm:$0xff]
        %v733 = vld [vmem:[#allocation3 + $0x8a0] sm:$0xff]
        %v734 = vld [vmem:[#allocation3 + $0x8a8] sm:$0xff]
        %v735 = vld [vmem:[#allocation3 + $0x8b0] sm:$0xff]
        %v736 = vld [vmem:[#allocation3 + $0x8b8] sm:$0xff]
        %v737 = vld [vmem:[#allocation3 + $0x8c0] sm:$0xff]
        %v738 = vld [vmem:[#allocation3 + $0x8c8] sm:$0xff]
        %v739 = vld [vmem:[#allocation3 + $0x8d0] sm:$0xff]
        %v740 = vld [vmem:[#allocation3 + $0x8d8] sm:$0xff]
        %v741 = vld [vmem:[#allocation3 + $0x8e0] sm:$0xff]
        %v742 = vld [vmem:[#allocation3 + $0x8e8] sm:$0xff]
        %v743 = vld [vmem:[#allocation3 + $0x8f0] sm:$0xff]
        %v744 = vld [vmem:[#allocation3 + $0x8f8] sm:$0xff]
        %v745 = vld [vmem:[#allocation3 + $0x900] sm:$0xff]
        %v746 = vld [vmem:[#allocation3 + $0x908] sm:$0xff]
        %v747 = vld [vmem:[#allocation3 + $0x910] sm:$0xff]
        %v748 = vld [vmem:[#allocation3 + $0x918] sm:$0xff]
        %v749 = vld [vmem:[#allocation3 + $0x920] sm:$0xff]
        %v750 = vld [vmem:[#allocation3 + $0x928] sm:$0xff]
        %v751 = vld [vmem:[#allocation3 + $0x930] sm:$0xff]
        %v752 = vld [vmem:[#allocation3 + $0x938] sm:$0xff]
        %v753 = vld [vmem:[#allocation3 + $0x940] sm:$0xff]
        %v754 = vld [vmem:[#allocation3 + $0x948] sm:$0xff]
        %v755 = vld [vmem:[#allocation3 + $0x950] sm:$0xff]
        %v756 = vld [vmem:[#allocation3 + $0x958] sm:$0xff]
        %v757 = vld [vmem:[#allocation3 + $0x960] sm:$0xff]
        %v758 = vld [vmem:[#allocation3 + $0x968] sm:$0xff]
        %v759 = vld [vmem:[#allocation3 + $0x970] sm:$0xff]
        %v760 = vld [vmem:[#allocation3 + $0x978] sm:$0xff]
        %v761 = vld [vmem:[#allocation3 + $0x980] sm:$0xff]
        %v762 = vld [vmem:[#allocation3 + $0x988] sm:$0xff]
        %v763 = vld [vmem:[#allocation3 + $0x990] sm:$0xff]
        %v764 = vld [vmem:[#allocation3 + $0x998] sm:$0xff]
        %v765 = vld [vmem:[#allocation3 + $0x9a0] sm:$0xff]
        %v766 = vld [vmem:[#allocation3 + $0x9a8] sm:$0xff]
        %v767 = vld [vmem:[#allocation3 + $0x9b0] sm:$0xff]
        %v768 = vld [vmem:[#allocation3 + $0x9b8] sm:$0xff]
        %v769 = vld [vmem:[#allocation3 + $0x9c0] sm:$0xff]
        %v770 = vld [vmem:[#allocation3 + $0x9c8] sm:$0xff]
        %v771 = vld [vmem:[#allocation3 + $0x9d0] sm:$0xff]
        %v772 = vld [vmem:[#allocation3 + $0x9d8] sm:$0xff]
        %v773 = vld [vmem:[#allocation3 + $0x9e0] sm:$0xff]
        %v774 = vld [vmem:[#allocation3 + $0x9e8] sm:$0xff]
        %v775 = vld [vmem:[#allocation3 + $0x9f0] sm:$0xff]
        %v776 = vld [vmem:[#allocation3 + $0x9f8] sm:$0xff]
        %v777 = vld [vmem:[#allocation3 + $0xa00] sm:$0xff]
        %v778 = vld [vmem:[#allocation3 + $0xa08] sm:$0xff]
        %v779 = vld [vmem:[#allocation3 + $0xa10] sm:$0xff]
        %v780 = vld [vmem:[#allocation3 + $0xa18] sm:$0xff]
        %v781 = vld [vmem:[#allocation3 + $0xa20] sm:$0xff]
        %v782 = vld [vmem:[#allocation3 + $0xa28] sm:$0xff]
        %v783 = vld [vmem:[#allocation3 + $0xa30] sm:$0xff]
        %v784 = vld [vmem:[#allocation3 + $0xa38] sm:$0xff]
        %v785 = vld [vmem:[#allocation3 + $0xa40] sm:$0xff]
        %v786 = vld [vmem:[#allocation3 + $0xa48] sm:$0xff]
        %v787 = vld [vmem:[#allocation3 + $0xa50] sm:$0xff]
        %v788 = vld [vmem:[#allocation3 + $0xa58] sm:$0xff]
        %v789 = vld [vmem:[#allocation3 + $0xa60] sm:$0xff]
        %v790 = vld [vmem:[#allocation3 + $0xa68] sm:$0xff]
        %v791 = vld [vmem:[#allocation3 + $0xa70] sm:$0xff]
        %v792 = vld [vmem:[#allocation3 + $0xa78] sm:$0xff]
        %v793 = vld [vmem:[#allocation3 + $0xa80] sm:$0xff]
        %v794 = vld [vmem:[#allocation3 + $0xa88] sm:$0xff]
        %v795 = vld [vmem:[#allocation3 + $0xa90] sm:$0xff]
        %v796 = vld [vmem:[#allocation3 + $0xa98] sm:$0xff]
        %v797 = vld [vmem:[#allocation3 + $0xaa0] sm:$0xff]
        %v798 = vld [vmem:[#allocation3 + $0xaa8] sm:$0xff]
        %v799 = vld [vmem:[#allocation3 + $0xab0] sm:$0xff]
        %v800 = vld [vmem:[#allocation3 + $0xab8] sm:$0xff]
        %v801 = vld [vmem:[#allocation3 + $0xac0] sm:$0xff]
        %v802 = vld [vmem:[#allocation3 + $0xac8] sm:$0xff]
        %v803 = vld [vmem:[#allocation3 + $0xad0] sm:$0xff]
        %v804 = vld [vmem:[#allocation3 + $0xad8] sm:$0xff]
        %v805 = vld [vmem:[#allocation3 + $0xae0] sm:$0xff]
        %v806 = vld [vmem:[#allocation3 + $0xae8] sm:$0xff]
        %v807 = vld [vmem:[#allocation3 + $0xaf0] sm:$0xff]
        %v808 = vld [vmem:[#allocation3 + $0xaf8] sm:$0xff]
        %v809 = vld [vmem:[#allocation3 + $0xb00] sm:$0xff]
        %v810 = vld [vmem:[#allocation3 + $0xb08] sm:$0xff]
        %v811 = vld [vmem:[#allocation3 + $0xb10] sm:$0xff]
        %v812 = vld [vmem:[#allocation3 + $0xb18] sm:$0xff]
        %v813 = vld [vmem:[#allocation3 + $0xb20] sm:$0xff]
        %v814 = vld [vmem:[#allocation3 + $0xb28] sm:$0xff]
        %v815 = vld [vmem:[#allocation3 + $0xb30] sm:$0xff]
        %v816 = vld [vmem:[#allocation3 + $0xb38] sm:$0xff]
        %v817 = vld [vmem:[#allocation3 + $0xb40] sm:$0xff]
        %v818 = vld [vmem:[#allocation3 + $0xb48] sm:$0xff]
        %v819 = vld [vmem:[#allocation3 + $0xb50] sm:$0xff]
        %v820 = vld [vmem:[#allocation3 + $0xb58] sm:$0xff]
        %v821 = vld [vmem:[#allocation3 + $0xb60] sm:$0xff]
        %v822 = vld [vmem:[#allocation3 + $0xb68] sm:$0xff]
        %v823 = vld [vmem:[#allocation3 + $0xb70] sm:$0xff]
        %v824 = vld [vmem:[#allocation3 + $0xb78] sm:$0xff]
        %v825 = vld [vmem:[#allocation3 + $0xb80] sm:$0xff]
        %v826 = vld [vmem:[#allocation3 + $0xb88] sm:$0xff]
        %v827 = vld [vmem:[#allocation3 + $0xb90] sm:$0xff]
        %v828 = vld [vmem:[#allocation3 + $0xb98] sm:$0xff]
        %v829 = vld [vmem:[#allocation3 + $0xba0] sm:$0xff]
        %v830 = vld [vmem:[#allocation3 + $0xba8] sm:$0xff]
        %v831 = vld [vmem:[#allocation3 + $0xbb0] sm:$0xff]
        %v832 = vld [vmem:[#allocation3 + $0xbb8] sm:$0xff]
        %v833 = vld [vmem:[#allocation3 + $0xbc0] sm:$0xff]
        %v834 = vld [vmem:[#allocation3 + $0xbc8] sm:$0xff]
        %v835 = vld [vmem:[#allocation3 + $0xbd0] sm:$0xff]
        %v836 = vld [vmem:[#allocation3 + $0xbd8] sm:$0xff]
        %v837 = vld [vmem:[#allocation3 + $0xbe0] sm:$0xff]
        %v838 = vld [vmem:[#allocation3 + $0xbe8] sm:$0xff]
        %v839 = vld [vmem:[#allocation3 + $0xbf0] sm:$0xff]
        %v840 = vld [vmem:[#allocation3 + $0xbf8] sm:$0xff]
        %v841 = vld [vmem:[#allocation3 + $0xc00] sm:$0xff]
        %v842 = vld [vmem:[#allocation3 + $0xc08] sm:$0xff]
        %v843 = vld [vmem:[#allocation3 + $0xc10] sm:$0xff]
        %v844 = vld [vmem:[#allocation3 + $0xc18] sm:$0xff]
        %v845 = vld [vmem:[#allocation3 + $0xc20] sm:$0xff]
        %v846 = vld [vmem:[#allocation3 + $0xc28] sm:$0xff]
        %v847 = vld [vmem:[#allocation3 + $0xc30] sm:$0xff]
        %v848 = vld [vmem:[#allocation3 + $0xc38] sm:$0xff]
        %v849 = vld [vmem:[#allocation5] sm:$0xff]
        %v851 = vlaneseq
        %v852 = vshrl.u32 %v851, 7
        %v853 = vsub.s32 0, %v852
        %v854 = vrot.slane %v849, %v853
        %v855 = vlaneseq
        %v856 = vshrl.u32 %v855, 7
        %v857 = vsub.s32 1, %v856
        %v858 = vrot.slane %v849, %v857
        %v859 = vlaneseq
        %v860 = vshrl.u32 %v859, 7
        %v861 = vsub.s32 2, %v860
        %v862 = vrot.slane %v849, %v861
        %v863 = vlaneseq
        %v864 = vshrl.u32 %v863, 7
        %v865 = vsub.s32 3, %v864
        %v866 = vrot.slane %v849, %v865
        %v867 = vlaneseq
        %v868 = vshrl.u32 %v867, 7
        %v869 = vsub.s32 4, %v868
        %v870 = vrot.slane %v849, %v869
        %v871 = vlaneseq
        %v872 = vshrl.u32 %v871, 7
        %v873 = vsub.s32 5, %v872
        %v874 = vrot.slane %v849, %v873
        %v875 = vlaneseq
        %v876 = vshrl.u32 %v875, 7
        %v877 = vsub.s32 6, %v876
        %v878 = vrot.slane %v849, %v877
        %v879 = vlaneseq
        %v880 = vshrl.u32 %v879, 7
        %v881 = vsub.s32 7, %v880
        %v882 = vrot.slane %v849, %v881
        %v1283 = vunpack.c.l.b16 %v457
        %v1284 = vunpack.c.h.b16 %v457
        %v1285 = vunpack.c.l.b16 %v458
        %v1286 = vunpack.c.h.b16 %v458
        %v1287 = vunpack.c.l.b16 %v459
        %v1288 = vunpack.c.h.b16 %v459
        %v1289 = vunpack.c.l.b16 %v460
        %v1290 = vunpack.c.h.b16 %v460
        %v1291 = vunpack.c.l.b16 %v461
        %v1292 = vunpack.c.h.b16 %v461
        %v1293 = vunpack.c.l.b16 %v462
        %v1294 = vunpack.c.h.b16 %v462
        %v1295 = vunpack.c.l.b16 %v463
        %v1296 = vunpack.c.h.b16 %v463
        %v1297 = vunpack.c.l.b16 %v464
        %v1298 = vunpack.c.h.b16 %v464
        %v1299 = vunpack.c.l.b16 %v465
        %v1300 = vunpack.c.h.b16 %v465
        %v1301 = vunpack.c.l.b16 %v466
        %v1302 = vunpack.c.h.b16 %v466
        %v1303 = vunpack.c.l.b16 %v467
        %v1304 = vunpack.c.h.b16 %v467
        %v1305 = vunpack.c.l.b16 %v468
        %v1306 = vunpack.c.h.b16 %v468
        %v1307 = vunpack.c.l.b16 %v469
        %v1308 = vunpack.c.h.b16 %v469
        %v1309 = vunpack.c.l.b16 %v470
        %v1310 = vunpack.c.h.b16 %v470
        %v1311 = vunpack.c.l.b16 %v471
        %v1312 = vunpack.c.h.b16 %v471
        %v1313 = vunpack.c.l.b16 %v472
        %v1314 = vunpack.c.h.b16 %v472
        %v1315 = vunpack.c.l.b16 %v473
        %v1316 = vunpack.c.h.b16 %v473
        %v1317 = vunpack.c.l.b16 %v474
        %v1318 = vunpack.c.h.b16 %v474
        %v1319 = vunpack.c.l.b16 %v475
        %v1320 = vunpack.c.h.b16 %v475
        %v1321 = vunpack.c.l.b16 %v476
        %v1322 = vunpack.c.h.b16 %v476
        %v1323 = vunpack.c.l.b16 %v477
        %v1324 = vunpack.c.h.b16 %v477
        %v1325 = vunpack.c.l.b16 %v478
        %v1326 = vunpack.c.h.b16 %v478
        %v1327 = vunpack.c.l.b16 %v479
        %v1328 = vunpack.c.h.b16 %v479
        %v1329 = vunpack.c.l.b16 %v480
        %v1330 = vunpack.c.h.b16 %v480
        %v1331 = vunpack.c.l.b16 %v481
        %v1332 = vunpack.c.h.b16 %v481
        %v1333 = vunpack.c.l.b16 %v482
        %v1334 = vunpack.c.h.b16 %v482
        %v1335 = vunpack.c.l.b16 %v483
        %v1336 = vunpack.c.h.b16 %v483
        %v1337 = vunpack.c.l.b16 %v484
        %v1338 = vunpack.c.h.b16 %v484
        %v1339 = vunpack.c.l.b16 %v485
        %v1340 = vunpack.c.h.b16 %v485
        %v1341 = vunpack.c.l.b16 %v486
        %v1342 = vunpack.c.h.b16 %v486
        %v1343 = vunpack.c.l.b16 %v487
        %v1344 = vunpack.c.h.b16 %v487
        %v1345 = vunpack.c.l.b16 %v488
        %v1346 = vunpack.c.h.b16 %v488
        %v1347 = vunpack.c.l.b16 %v489
        %v1348 = vunpack.c.h.b16 %v489
        %v1349 = vunpack.c.l.b16 %v490
        %v1350 = vunpack.c.h.b16 %v490
        %v1351 = vunpack.c.l.b16 %v491
        %v1352 = vunpack.c.h.b16 %v491
        %v1353 = vunpack.c.l.b16 %v492
        %v1354 = vunpack.c.h.b16 %v492
        %v1355 = vunpack.c.l.b16 %v493
        %v1356 = vunpack.c.h.b16 %v493
        %v1357 = vunpack.c.l.b16 %v494
        %v1358 = vunpack.c.h.b16 %v494
        %v1359 = vunpack.c.l.b16 %v495
        %v1360 = vunpack.c.h.b16 %v495
        %v1361 = vunpack.c.l.b16 %v496
        %v1362 = vunpack.c.h.b16 %v496
        %v1363 = vunpack.c.l.b16 %v497
        %v1364 = vunpack.c.h.b16 %v497
        %v1365 = vunpack.c.l.b16 %v498
        %v1366 = vunpack.c.h.b16 %v498
        %v1367 = vunpack.c.l.b16 %v499
        %v1368 = vunpack.c.h.b16 %v499
        %v1369 = vunpack.c.l.b16 %v500
        %v1370 = vunpack.c.h.b16 %v500
        %v1371 = vunpack.c.l.b16 %v501
        %v1372 = vunpack.c.h.b16 %v501
        %v1373 = vunpack.c.l.b16 %v502
        %v1374 = vunpack.c.h.b16 %v502
        %v1375 = vunpack.c.l.b16 %v503
        %v1376 = vunpack.c.h.b16 %v503
        %v1377 = vunpack.c.l.b16 %v504
        %v1378 = vunpack.c.h.b16 %v504
        %v1379 = vunpack.c.l.b16 %v505
        %v1380 = vunpack.c.h.b16 %v505
        %v1381 = vunpack.c.l.b16 %v506
        %v1382 = vunpack.c.h.b16 %v506
        %v1383 = vunpack.c.l.b16 %v507
        %v1384 = vunpack.c.h.b16 %v507
        %v1385 = vunpack.c.l.b16 %v508
        %v1386 = vunpack.c.h.b16 %v508
        %v1387 = vunpack.c.l.b16 %v509
        %v1388 = vunpack.c.h.b16 %v509
        %v1389 = vunpack.c.l.b16 %v510
        %v1390 = vunpack.c.h.b16 %v510
        %v1391 = vunpack.c.l.b16 %v511
        %v1392 = vunpack.c.h.b16 %v511
        %v1393 = vunpack.c.l.b16 %v512
        %v1394 = vunpack.c.h.b16 %v512
        %v1395 = vunpack.c.l.b16 %v513
        %v1396 = vunpack.c.h.b16 %v513
        %v1397 = vunpack.c.l.b16 %v514
        %v1398 = vunpack.c.h.b16 %v514
        %v1399 = vunpack.c.l.b16 %v515
        %v1400 = vunpack.c.h.b16 %v515
        %v1401 = vunpack.c.l.b16 %v516
        %v1402 = vunpack.c.h.b16 %v516
        %v1403 = vunpack.c.l.b16 %v517
        %v1404 = vunpack.c.h.b16 %v517
        %v1405 = vunpack.c.l.b16 %v518
        %v1406 = vunpack.c.h.b16 %v518
        %v1407 = vunpack.c.l.b16 %v519
        %v1408 = vunpack.c.h.b16 %v519
        %v1409 = vunpack.c.l.b16 %v520
        %v1410 = vunpack.c.h.b16 %v520
        %v1411 = vunpack.c.l.b16 %v521
        %v1412 = vunpack.c.h.b16 %v521
        %v1413 = vunpack.c.l.b16 %v522
        %v1414 = vunpack.c.h.b16 %v522
        %v1415 = vunpack.c.l.b16 %v523
        %v1416 = vunpack.c.h.b16 %v523
        %v1417 = vunpack.c.l.b16 %v524
        %v1418 = vunpack.c.h.b16 %v524
        %v1419 = vunpack.c.l.b16 %v525
        %v1420 = vunpack.c.h.b16 %v525
        %v1421 = vunpack.c.l.b16 %v526
        %v1422 = vunpack.c.h.b16 %v526
        %v1423 = vunpack.c.l.b16 %v527
        %v1424 = vunpack.c.h.b16 %v527
        %v1425 = vunpack.c.l.b16 %v528
        %v1426 = vunpack.c.h.b16 %v528
        %v1427 = vunpack.c.l.b16 %v529
        %v1428 = vunpack.c.h.b16 %v529
        %v1429 = vunpack.c.l.b16 %v530
        %v1430 = vunpack.c.h.b16 %v530
        %v1431 = vunpack.c.l.b16 %v531
        %v1432 = vunpack.c.h.b16 %v531
        %v1433 = vunpack.c.l.b16 %v532
        %v1434 = vunpack.c.h.b16 %v532
        %v1435 = vunpack.c.l.b16 %v533
        %v1436 = vunpack.c.h.b16 %v533
        %v1437 = vunpack.c.l.b16 %v534
        %v1438 = vunpack.c.h.b16 %v534
        %v1439 = vunpack.c.l.b16 %v535
        %v1440 = vunpack.c.h.b16 %v535
        %v1441 = vunpack.c.l.b16 %v536
        %v1442 = vunpack.c.h.b16 %v536
        %v1443 = vunpack.c.l.b16 %v537
        %v1444 = vunpack.c.h.b16 %v537
        %v1445 = vunpack.c.l.b16 %v538
        %v1446 = vunpack.c.h.b16 %v538
        %v1447 = vunpack.c.l.b16 %v539
        %v1448 = vunpack.c.h.b16 %v539
        %v1449 = vunpack.c.l.b16 %v540
        %v1450 = vunpack.c.h.b16 %v540
        %v1451 = vunpack.c.l.b16 %v541
        %v1452 = vunpack.c.h.b16 %v541
        %v1453 = vunpack.c.l.b16 %v542
        %v1454 = vunpack.c.h.b16 %v542
        %v1455 = vunpack.c.l.b16 %v543
        %v1456 = vunpack.c.h.b16 %v543
        %v1457 = vunpack.c.l.b16 %v544
        %v1458 = vunpack.c.h.b16 %v544
        %v1459 = vunpack.c.l.b16 %v545
        %v1460 = vunpack.c.h.b16 %v545
        %v1461 = vunpack.c.l.b16 %v546
        %v1462 = vunpack.c.h.b16 %v546
        %v1463 = vunpack.c.l.b16 %v547
        %v1464 = vunpack.c.h.b16 %v547
        %v1465 = vunpack.c.l.b16 %v548
        %v1466 = vunpack.c.h.b16 %v548
        %v1467 = vunpack.c.l.b16 %v549
        %v1468 = vunpack.c.h.b16 %v549
        %v1469 = vunpack.c.l.b16 %v550
        %v1470 = vunpack.c.h.b16 %v550
        %v1471 = vunpack.c.l.b16 %v551
        %v1472 = vunpack.c.h.b16 %v551
        %v1473 = vunpack.c.l.b16 %v552
        %v1474 = vunpack.c.h.b16 %v552
        %v1475 = vunpack.c.l.b16 %v553
        %v1476 = vunpack.c.h.b16 %v553
        %v1477 = vunpack.c.l.b16 %v554
        %v1478 = vunpack.c.h.b16 %v554
        %v1479 = vunpack.c.l.b16 %v555
        %v1480 = vunpack.c.h.b16 %v555
        %v1481 = vunpack.c.l.b16 %v556
        %v1482 = vunpack.c.h.b16 %v556
        %v1483 = vunpack.c.l.b16 %v557
        %v1484 = vunpack.c.h.b16 %v557
        %v1485 = vunpack.c.l.b16 %v558
        %v1486 = vunpack.c.h.b16 %v558
        %v1487 = vunpack.c.l.b16 %v559
        %v1488 = vunpack.c.h.b16 %v559
        %v1489 = vunpack.c.l.b16 %v560
        %v1490 = vunpack.c.h.b16 %v560
        %v1491 = vunpack.c.l.b16 %v561
        %v1492 = vunpack.c.h.b16 %v561
        %v1493 = vunpack.c.l.b16 %v562
        %v1494 = vunpack.c.h.b16 %v562
        %v1495 = vunpack.c.l.b16 %v563
        %v1496 = vunpack.c.h.b16 %v563
        %v1497 = vunpack.c.l.b16 %v564
        %v1498 = vunpack.c.h.b16 %v564
        %v1499 = vunpack.c.l.b16 %v565
        %v1500 = vunpack.c.h.b16 %v565
        %v1501 = vunpack.c.l.b16 %v566
        %v1502 = vunpack.c.h.b16 %v566
        %v1503 = vunpack.c.l.b16 %v567
        %v1504 = vunpack.c.h.b16 %v567
        %v1505 = vunpack.c.l.b16 %v568
        %v1506 = vunpack.c.h.b16 %v568
        %v1507 = vunpack.c.l.b16 %v569
        %v1508 = vunpack.c.h.b16 %v569
        %v1509 = vunpack.c.l.b16 %v570
        %v1510 = vunpack.c.h.b16 %v570
        %v1511 = vunpack.c.l.b16 %v571
        %v1512 = vunpack.c.h.b16 %v571
        %v1513 = vunpack.c.l.b16 %v572
        %v1514 = vunpack.c.h.b16 %v572
        %v1515 = vunpack.c.l.b16 %v573
        %v1516 = vunpack.c.h.b16 %v573
        %v1517 = vunpack.c.l.b16 %v574
        %v1518 = vunpack.c.h.b16 %v574
        %v1519 = vunpack.c.l.b16 %v575
        %v1520 = vunpack.c.h.b16 %v575
        %v1521 = vunpack.c.l.b16 %v576
        %v1522 = vunpack.c.h.b16 %v576
        %v1523 = vunpack.c.l.b16 %v577
        %v1524 = vunpack.c.h.b16 %v577
        %v1525 = vunpack.c.l.b16 %v578
        %v1526 = vunpack.c.h.b16 %v578
        %v1527 = vunpack.c.l.b16 %v579
        %v1528 = vunpack.c.h.b16 %v579
        %v1529 = vunpack.c.l.b16 %v580
        %v1530 = vunpack.c.h.b16 %v580
        %v1531 = vunpack.c.l.b16 %v581
        %v1532 = vunpack.c.h.b16 %v581
        %v1533 = vunpack.c.l.b16 %v582
        %v1534 = vunpack.c.h.b16 %v582
        %v1535 = vunpack.c.l.b16 %v583
        %v1536 = vunpack.c.h.b16 %v583
        %v1537 = vunpack.c.l.b16 %v584
        %v1538 = vunpack.c.h.b16 %v584
        %v1539 = vunpack.c.l.b16 %v585
        %v1540 = vunpack.c.h.b16 %v585
        %v1541 = vunpack.c.l.b16 %v586
        %v1542 = vunpack.c.h.b16 %v586
        %v1543 = vunpack.c.l.b16 %v587
        %v1544 = vunpack.c.h.b16 %v587
        %v1545 = vunpack.c.l.b16 %v588
        %v1546 = vunpack.c.h.b16 %v588
        %v1547 = vunpack.c.l.b16 %v589
        %v1548 = vunpack.c.h.b16 %v589
        %v1549 = vunpack.c.l.b16 %v590
        %v1550 = vunpack.c.h.b16 %v590
        %v1551 = vunpack.c.l.b16 %v591
        %v1552 = vunpack.c.h.b16 %v591
        %v1553 = vunpack.c.l.b16 %v592
        %v1554 = vunpack.c.h.b16 %v592
        %v1555 = vunpack.c.l.b16 %v593
        %v1556 = vunpack.c.h.b16 %v593
        %v1557 = vunpack.c.l.b16 %v594
        %v1558 = vunpack.c.h.b16 %v594
        %v1559 = vunpack.c.l.b16 %v595
        %v1560 = vunpack.c.h.b16 %v595
        %v1561 = vunpack.c.l.b16 %v596
        %v1562 = vunpack.c.h.b16 %v596
        %v1563 = vunpack.c.l.b16 %v597
        %v1564 = vunpack.c.h.b16 %v597
        %v1565 = vunpack.c.l.b16 %v598
        %v1566 = vunpack.c.h.b16 %v598
        %v1567 = vunpack.c.l.b16 %v599
        %v1568 = vunpack.c.h.b16 %v599
        %v1569 = vunpack.c.l.b16 %v600
        %v1570 = vunpack.c.h.b16 %v600
        %v1571 = vunpack.c.l.b16 %v601
        %v1572 = vunpack.c.h.b16 %v601
        %v1573 = vunpack.c.l.b16 %v602
        %v1574 = vunpack.c.h.b16 %v602
        %v1575 = vunpack.c.l.b16 %v603
        %v1576 = vunpack.c.h.b16 %v603
        %v1577 = vunpack.c.l.b16 %v604
        %v1578 = vunpack.c.h.b16 %v604
        %v1579 = vunpack.c.l.b16 %v605
        %v1580 = vunpack.c.h.b16 %v605
        %v1581 = vunpack.c.l.b16 %v606
        %v1582 = vunpack.c.h.b16 %v606
        %v1583 = vunpack.c.l.b16 %v607
        %v1584 = vunpack.c.h.b16 %v607
        %v1585 = vunpack.c.l.b16 %v608
        %v1586 = vunpack.c.h.b16 %v608
        %v1587 = vunpack.c.l.b16 %v609
        %v1588 = vunpack.c.h.b16 %v609
        %v1589 = vunpack.c.l.b16 %v610
        %v1590 = vunpack.c.h.b16 %v610
        %v1591 = vunpack.c.l.b16 %v611
        %v1592 = vunpack.c.h.b16 %v611
        %v1593 = vunpack.c.l.b16 %v612
        %v1594 = vunpack.c.h.b16 %v612
        %v1595 = vunpack.c.l.b16 %v613
        %v1596 = vunpack.c.h.b16 %v613
        %v1597 = vunpack.c.l.b16 %v614
        %v1598 = vunpack.c.h.b16 %v614
        %v1599 = vunpack.c.l.b16 %v615
        %v1600 = vunpack.c.h.b16 %v615
        %v1601 = vunpack.c.l.b16 %v616
        %v1602 = vunpack.c.h.b16 %v616
        %v1603 = vunpack.c.l.b16 %v617
        %v1604 = vunpack.c.h.b16 %v617
        %v1605 = vunpack.c.l.b16 %v618
        %v1606 = vunpack.c.h.b16 %v618
        %v1607 = vunpack.c.l.b16 %v619
        %v1608 = vunpack.c.h.b16 %v619
        %v1609 = vunpack.c.l.b16 %v620
        %v1610 = vunpack.c.h.b16 %v620
        %v1611 = vunpack.c.l.b16 %v621
        %v1612 = vunpack.c.h.b16 %v621
        %v1613 = vunpack.c.l.b16 %v622
        %v1614 = vunpack.c.h.b16 %v622
        %v1615 = vunpack.c.l.b16 %v623
        %v1616 = vunpack.c.h.b16 %v623
        %v1617 = vunpack.c.l.b16 %v624
        %v1618 = vunpack.c.h.b16 %v624
        %v1619 = vunpack.c.l.b16 %v625
        %v1620 = vunpack.c.h.b16 %v625
        %v1621 = vunpack.c.l.b16 %v626
        %v1622 = vunpack.c.h.b16 %v626
        %v1623 = vunpack.c.l.b16 %v627
        %v1624 = vunpack.c.h.b16 %v627
        %v1625 = vunpack.c.l.b16 %v628
        %v1626 = vunpack.c.h.b16 %v628
        %v1627 = vunpack.c.l.b16 %v629
        %v1628 = vunpack.c.h.b16 %v629
        %v1629 = vunpack.c.l.b16 %v630
        %v1630 = vunpack.c.h.b16 %v630
        %v1631 = vunpack.c.l.b16 %v631
        %v1632 = vunpack.c.h.b16 %v631
        %v1633 = vunpack.c.l.b16 %v632
        %v1634 = vunpack.c.h.b16 %v632
        %v1635 = vunpack.c.l.b16 %v633
        %v1636 = vunpack.c.h.b16 %v633
        %v1637 = vunpack.c.l.b16 %v634
        %v1638 = vunpack.c.h.b16 %v634
        %v1639 = vunpack.c.l.b16 %v635
        %v1640 = vunpack.c.h.b16 %v635
        %v1641 = vunpack.c.l.b16 %v636
        %v1642 = vunpack.c.h.b16 %v636
        %v1643 = vunpack.c.l.b16 %v637
        %v1644 = vunpack.c.h.b16 %v637
        %v1645 = vunpack.c.l.b16 %v638
        %v1646 = vunpack.c.h.b16 %v638
        %v1647 = vunpack.c.l.b16 %v639
        %v1648 = vunpack.c.h.b16 %v639
        %v1649 = vunpack.c.l.b16 %v640
        %v1650 = vunpack.c.h.b16 %v640
        %v1651 = vunpack.c.l.b16 %v641
        %v1652 = vunpack.c.h.b16 %v641
        %v1653 = vunpack.c.l.b16 %v642
        %v1654 = vunpack.c.h.b16 %v642
        %v1655 = vunpack.c.l.b16 %v643
        %v1656 = vunpack.c.h.b16 %v643
        %v1657 = vunpack.c.l.b16 %v644
        %v1658 = vunpack.c.h.b16 %v644
        %v1659 = vunpack.c.l.b16 %v645
        %v1660 = vunpack.c.h.b16 %v645
        %v1661 = vunpack.c.l.b16 %v646
        %v1662 = vunpack.c.h.b16 %v646
        %v1663 = vunpack.c.l.b16 %v647
        %v1664 = vunpack.c.h.b16 %v647
        %v1665 = vunpack.c.l.b16 %v648
        %v1666 = vunpack.c.h.b16 %v648
        %v1667 = vunpack.c.l.b16 %v649
        %v1668 = vunpack.c.h.b16 %v649
        %v1669 = vunpack.c.l.b16 %v650
        %v1670 = vunpack.c.h.b16 %v650
        %v1671 = vunpack.c.l.b16 %v651
        %v1672 = vunpack.c.h.b16 %v651
        %v1673 = vunpack.c.l.b16 %v652
        %v1674 = vunpack.c.h.b16 %v652
        %v1675 = vunpack.c.l.b16 %v653
        %v1676 = vunpack.c.h.b16 %v653
        %v1677 = vunpack.c.l.b16 %v654
        %v1678 = vunpack.c.h.b16 %v654
        %v1679 = vunpack.c.l.b16 %v655
        %v1680 = vunpack.c.h.b16 %v655
        %v1681 = vunpack.c.l.b16 %v656
        %v1682 = vunpack.c.h.b16 %v656
        %v1683 = vunpack.c.l.b16 %v657
        %v1684 = vunpack.c.h.b16 %v657
        %v1685 = vunpack.c.l.b16 %v658
        %v1686 = vunpack.c.h.b16 %v658
        %v1687 = vunpack.c.l.b16 %v659
        %v1688 = vunpack.c.h.b16 %v659
        %v1689 = vunpack.c.l.b16 %v660
        %v1690 = vunpack.c.h.b16 %v660
        %v1691 = vunpack.c.l.b16 %v661
        %v1692 = vunpack.c.h.b16 %v661
        %v1693 = vunpack.c.l.b16 %v662
        %v1694 = vunpack.c.h.b16 %v662
        %v1695 = vunpack.c.l.b16 %v663
        %v1696 = vunpack.c.h.b16 %v663
        %v1697 = vunpack.c.l.b16 %v664
        %v1698 = vunpack.c.h.b16 %v664
        %v1699 = vunpack.c.l.b16 %v665
        %v1700 = vunpack.c.h.b16 %v665
        %v1701 = vunpack.c.l.b16 %v666
        %v1702 = vunpack.c.h.b16 %v666
        %v1703 = vunpack.c.l.b16 %v667
        %v1704 = vunpack.c.h.b16 %v667
        %v1705 = vunpack.c.l.b16 %v668
        %v1706 = vunpack.c.h.b16 %v668
        %v1707 = vunpack.c.l.b16 %v669
        %v1708 = vunpack.c.h.b16 %v669
        %v1709 = vunpack.c.l.b16 %v670
        %v1710 = vunpack.c.h.b16 %v670
        %v1711 = vunpack.c.l.b16 %v671
        %v1712 = vunpack.c.h.b16 %v671
        %v1713 = vunpack.c.l.b16 %v672
        %v1714 = vunpack.c.h.b16 %v672
        %v1715 = vunpack.c.l.b16 %v673
        %v1716 = vunpack.c.h.b16 %v673
        %v1717 = vunpack.c.l.b16 %v674
        %v1718 = vunpack.c.h.b16 %v674
        %v1719 = vunpack.c.l.b16 %v675
        %v1720 = vunpack.c.h.b16 %v675
        %v1721 = vunpack.c.l.b16 %v676
        %v1722 = vunpack.c.h.b16 %v676
        %v1723 = vunpack.c.l.b16 %v677
        %v1724 = vunpack.c.h.b16 %v677
        %v1725 = vunpack.c.l.b16 %v678
        %v1726 = vunpack.c.h.b16 %v678
        %v1727 = vunpack.c.l.b16 %v679
        %v1728 = vunpack.c.h.b16 %v679
        %v1729 = vunpack.c.l.b16 %v680
        %v1730 = vunpack.c.h.b16 %v680
        %v1731 = vunpack.c.l.b16 %v681
        %v1732 = vunpack.c.h.b16 %v681
        %v1733 = vunpack.c.l.b16 %v682
        %v1734 = vunpack.c.h.b16 %v682
        %v1735 = vunpack.c.l.b16 %v683
        %v1736 = vunpack.c.h.b16 %v683
        %v1737 = vunpack.c.l.b16 %v684
        %v1738 = vunpack.c.h.b16 %v684
        %v1739 = vunpack.c.l.b16 %v685
        %v1740 = vunpack.c.h.b16 %v685
        %v1741 = vunpack.c.l.b16 %v686
        %v1742 = vunpack.c.h.b16 %v686
        %v1743 = vunpack.c.l.b16 %v687
        %v1744 = vunpack.c.h.b16 %v687
        %v1745 = vunpack.c.l.b16 %v688
        %v1746 = vunpack.c.h.b16 %v688
        %v1747 = vunpack.c.l.b16 %v689
        %v1748 = vunpack.c.h.b16 %v689
        %v1749 = vunpack.c.l.b16 %v690
        %v1750 = vunpack.c.h.b16 %v690
        %v1751 = vunpack.c.l.b16 %v691
        %v1752 = vunpack.c.h.b16 %v691
        %v1753 = vunpack.c.l.b16 %v692
        %v1754 = vunpack.c.h.b16 %v692
        %v1755 = vunpack.c.l.b16 %v693
        %v1756 = vunpack.c.h.b16 %v693
        %v1757 = vunpack.c.l.b16 %v694
        %v1758 = vunpack.c.h.b16 %v694
        %v1759 = vunpack.c.l.b16 %v695
        %v1760 = vunpack.c.h.b16 %v695
        %v1761 = vunpack.c.l.b16 %v696
        %v1762 = vunpack.c.h.b16 %v696
        %v1763 = vunpack.c.l.b16 %v697
        %v1764 = vunpack.c.h.b16 %v697
        %v1765 = vunpack.c.l.b16 %v698
        %v1766 = vunpack.c.h.b16 %v698
        %v1767 = vunpack.c.l.b16 %v699
        %v1768 = vunpack.c.h.b16 %v699
        %v1769 = vunpack.c.l.b16 %v700
        %v1770 = vunpack.c.h.b16 %v700
        %v1771 = vunpack.c.l.b16 %v701
        %v1772 = vunpack.c.h.b16 %v701
        %v1773 = vunpack.c.l.b16 %v702
        %v1774 = vunpack.c.h.b16 %v702
        %v1775 = vunpack.c.l.b16 %v703
        %v1776 = vunpack.c.h.b16 %v703
        %v1777 = vunpack.c.l.b16 %v704
        %v1778 = vunpack.c.h.b16 %v704
        %v1779 = vunpack.c.l.b16 %v705
        %v1780 = vunpack.c.h.b16 %v705
        %v1781 = vunpack.c.l.b16 %v706
        %v1782 = vunpack.c.h.b16 %v706
        %v1783 = vunpack.c.l.b16 %v707
        %v1784 = vunpack.c.h.b16 %v707
        %v1785 = vunpack.c.l.b16 %v708
        %v1786 = vunpack.c.h.b16 %v708
        %v1787 = vunpack.c.l.b16 %v709
        %v1788 = vunpack.c.h.b16 %v709
        %v1789 = vunpack.c.l.b16 %v710
        %v1790 = vunpack.c.h.b16 %v710
        %v1791 = vunpack.c.l.b16 %v711
        %v1792 = vunpack.c.h.b16 %v711
        %v1793 = vunpack.c.l.b16 %v712
        %v1794 = vunpack.c.h.b16 %v712
        %v1795 = vunpack.c.l.b16 %v713
        %v1796 = vunpack.c.h.b16 %v713
        %v1797 = vunpack.c.l.b16 %v714
        %v1798 = vunpack.c.h.b16 %v714
        %v1799 = vunpack.c.l.b16 %v715
        %v1800 = vunpack.c.h.b16 %v715
        %v1801 = vunpack.c.l.b16 %v716
        %v1802 = vunpack.c.h.b16 %v716
        %v1803 = vunpack.c.l.b16 %v717
        %v1804 = vunpack.c.h.b16 %v717
        %v1805 = vunpack.c.l.b16 %v718
        %v1806 = vunpack.c.h.b16 %v718
        %v1807 = vunpack.c.l.b16 %v719
        %v1808 = vunpack.c.h.b16 %v719
        %v1809 = vunpack.c.l.b16 %v720
        %v1810 = vunpack.c.h.b16 %v720
        %v1811 = vunpack.c.l.b16 %v721
        %v1812 = vunpack.c.h.b16 %v721
        %v1813 = vunpack.c.l.b16 %v722
        %v1814 = vunpack.c.h.b16 %v722
        %v1815 = vunpack.c.l.b16 %v723
        %v1816 = vunpack.c.h.b16 %v723
        %v1817 = vunpack.c.l.b16 %v724
        %v1818 = vunpack.c.h.b16 %v724
        %v1819 = vunpack.c.l.b16 %v725
        %v1820 = vunpack.c.h.b16 %v725
        %v1821 = vunpack.c.l.b16 %v726
        %v1822 = vunpack.c.h.b16 %v726
        %v1823 = vunpack.c.l.b16 %v727
        %v1824 = vunpack.c.h.b16 %v727
        %v1825 = vunpack.c.l.b16 %v728
        %v1826 = vunpack.c.h.b16 %v728
        %v1827 = vunpack.c.l.b16 %v729
        %v1828 = vunpack.c.h.b16 %v729
        %v1829 = vunpack.c.l.b16 %v730
        %v1830 = vunpack.c.h.b16 %v730
        %v1831 = vunpack.c.l.b16 %v731
        %v1832 = vunpack.c.h.b16 %v731
        %v1833 = vunpack.c.l.b16 %v732
        %v1834 = vunpack.c.h.b16 %v732
        %v1835 = vunpack.c.l.b16 %v733
        %v1836 = vunpack.c.h.b16 %v733
        %v1837 = vunpack.c.l.b16 %v734
        %v1838 = vunpack.c.h.b16 %v734
        %v1839 = vunpack.c.l.b16 %v735
        %v1840 = vunpack.c.h.b16 %v735
        %v1841 = vunpack.c.l.b16 %v736
        %v1842 = vunpack.c.h.b16 %v736
        %v1843 = vunpack.c.l.b16 %v737
        %v1844 = vunpack.c.h.b16 %v737
        %v1845 = vunpack.c.l.b16 %v738
        %v1846 = vunpack.c.h.b16 %v738
        %v1847 = vunpack.c.l.b16 %v739
        %v1848 = vunpack.c.h.b16 %v739
        %v1849 = vunpack.c.l.b16 %v740
        %v1850 = vunpack.c.h.b16 %v740
        %v1851 = vunpack.c.l.b16 %v741
        %v1852 = vunpack.c.h.b16 %v741
        %v1853 = vunpack.c.l.b16 %v742
        %v1854 = vunpack.c.h.b16 %v742
        %v1855 = vunpack.c.l.b16 %v743
        %v1856 = vunpack.c.h.b16 %v743
        %v1857 = vunpack.c.l.b16 %v744
        %v1858 = vunpack.c.h.b16 %v744
        %v1859 = vunpack.c.l.b16 %v745
        %v1860 = vunpack.c.h.b16 %v745
        %v1861 = vunpack.c.l.b16 %v746
        %v1862 = vunpack.c.h.b16 %v746
        %v1863 = vunpack.c.l.b16 %v747
        %v1864 = vunpack.c.h.b16 %v747
        %v1865 = vunpack.c.l.b16 %v748
        %v1866 = vunpack.c.h.b16 %v748
        %v1867 = vunpack.c.l.b16 %v749
        %v1868 = vunpack.c.h.b16 %v749
        %v1869 = vunpack.c.l.b16 %v750
        %v1870 = vunpack.c.h.b16 %v750
        %v1871 = vunpack.c.l.b16 %v751
        %v1872 = vunpack.c.h.b16 %v751
        %v1873 = vunpack.c.l.b16 %v752
        %v1874 = vunpack.c.h.b16 %v752
        %v1875 = vunpack.c.l.b16 %v753
        %v1876 = vunpack.c.h.b16 %v753
        %v1877 = vunpack.c.l.b16 %v754
        %v1878 = vunpack.c.h.b16 %v754
        %v1879 = vunpack.c.l.b16 %v755
        %v1880 = vunpack.c.h.b16 %v755
        %v1881 = vunpack.c.l.b16 %v756
        %v1882 = vunpack.c.h.b16 %v756
        %v1883 = vunpack.c.l.b16 %v757
        %v1884 = vunpack.c.h.b16 %v757
        %v1885 = vunpack.c.l.b16 %v758
        %v1886 = vunpack.c.h.b16 %v758
        %v1887 = vunpack.c.l.b16 %v759
        %v1888 = vunpack.c.h.b16 %v759
        %v1889 = vunpack.c.l.b16 %v760
        %v1890 = vunpack.c.h.b16 %v760
        %v1891 = vunpack.c.l.b16 %v761
        %v1892 = vunpack.c.h.b16 %v761
        %v1893 = vunpack.c.l.b16 %v762
        %v1894 = vunpack.c.h.b16 %v762
        %v1895 = vunpack.c.l.b16 %v763
        %v1896 = vunpack.c.h.b16 %v763
        %v1897 = vunpack.c.l.b16 %v764
        %v1898 = vunpack.c.h.b16 %v764
        %v1899 = vunpack.c.l.b16 %v765
        %v1900 = vunpack.c.h.b16 %v765
        %v1901 = vunpack.c.l.b16 %v766
        %v1902 = vunpack.c.h.b16 %v766
        %v1903 = vunpack.c.l.b16 %v767
        %v1904 = vunpack.c.h.b16 %v767
        %v1905 = vunpack.c.l.b16 %v768
        %v1906 = vunpack.c.h.b16 %v768
        %v1907 = vunpack.c.l.b16 %v769
        %v1908 = vunpack.c.h.b16 %v769
        %v1909 = vunpack.c.l.b16 %v770
        %v1910 = vunpack.c.h.b16 %v770
        %v1911 = vunpack.c.l.b16 %v771
        %v1912 = vunpack.c.h.b16 %v771
        %v1913 = vunpack.c.l.b16 %v772
        %v1914 = vunpack.c.h.b16 %v772
        %v1915 = vunpack.c.l.b16 %v773
        %v1916 = vunpack.c.h.b16 %v773
        %v1917 = vunpack.c.l.b16 %v774
        %v1918 = vunpack.c.h.b16 %v774
        %v1919 = vunpack.c.l.b16 %v775
        %v1920 = vunpack.c.h.b16 %v775
        %v1921 = vunpack.c.l.b16 %v776
        %v1922 = vunpack.c.h.b16 %v776
        %v1923 = vunpack.c.l.b16 %v777
        %v1924 = vunpack.c.h.b16 %v777
        %v1925 = vunpack.c.l.b16 %v778
        %v1926 = vunpack.c.h.b16 %v778
        %v1927 = vunpack.c.l.b16 %v779
        %v1928 = vunpack.c.h.b16 %v779
        %v1929 = vunpack.c.l.b16 %v780
        %v1930 = vunpack.c.h.b16 %v780
        %v1931 = vunpack.c.l.b16 %v781
        %v1932 = vunpack.c.h.b16 %v781
        %v1933 = vunpack.c.l.b16 %v782
        %v1934 = vunpack.c.h.b16 %v782
        %v1935 = vunpack.c.l.b16 %v783
        %v1936 = vunpack.c.h.b16 %v783
        %v1937 = vunpack.c.l.b16 %v784
        %v1938 = vunpack.c.h.b16 %v784
        %v1939 = vunpack.c.l.b16 %v785
        %v1940 = vunpack.c.h.b16 %v785
        %v1941 = vunpack.c.l.b16 %v786
        %v1942 = vunpack.c.h.b16 %v786
        %v1943 = vunpack.c.l.b16 %v787
        %v1944 = vunpack.c.h.b16 %v787
        %v1945 = vunpack.c.l.b16 %v788
        %v1946 = vunpack.c.h.b16 %v788
        %v1947 = vunpack.c.l.b16 %v789
        %v1948 = vunpack.c.h.b16 %v789
        %v1949 = vunpack.c.l.b16 %v790
        %v1950 = vunpack.c.h.b16 %v790
        %v1951 = vunpack.c.l.b16 %v791
        %v1952 = vunpack.c.h.b16 %v791
        %v1953 = vunpack.c.l.b16 %v792
        %v1954 = vunpack.c.h.b16 %v792
        %v1955 = vunpack.c.l.b16 %v793
        %v1956 = vunpack.c.h.b16 %v793
        %v1957 = vunpack.c.l.b16 %v794
        %v1958 = vunpack.c.h.b16 %v794
        %v1959 = vunpack.c.l.b16 %v795
        %v1960 = vunpack.c.h.b16 %v795
        %v1961 = vunpack.c.l.b16 %v796
        %v1962 = vunpack.c.h.b16 %v796
        %v1963 = vunpack.c.l.b16 %v797
        %v1964 = vunpack.c.h.b16 %v797
        %v1965 = vunpack.c.l.b16 %v798
        %v1966 = vunpack.c.h.b16 %v798
        %v1967 = vunpack.c.l.b16 %v799
        %v1968 = vunpack.c.h.b16 %v799
        %v1969 = vunpack.c.l.b16 %v800
        %v1970 = vunpack.c.h.b16 %v800
        %v1971 = vunpack.c.l.b16 %v801
        %v1972 = vunpack.c.h.b16 %v801
        %v1973 = vunpack.c.l.b16 %v802
        %v1974 = vunpack.c.h.b16 %v802
        %v1975 = vunpack.c.l.b16 %v803
        %v1976 = vunpack.c.h.b16 %v803
        %v1977 = vunpack.c.l.b16 %v804
        %v1978 = vunpack.c.h.b16 %v804
        %v1979 = vunpack.c.l.b16 %v805
        %v1980 = vunpack.c.h.b16 %v805
        %v1981 = vunpack.c.l.b16 %v806
        %v1982 = vunpack.c.h.b16 %v806
        %v1983 = vunpack.c.l.b16 %v807
        %v1984 = vunpack.c.h.b16 %v807
        %v1985 = vunpack.c.l.b16 %v808
        %v1986 = vunpack.c.h.b16 %v808
        %v1987 = vunpack.c.l.b16 %v809
        %v1988 = vunpack.c.h.b16 %v809
        %v1989 = vunpack.c.l.b16 %v810
        %v1990 = vunpack.c.h.b16 %v810
        %v1991 = vunpack.c.l.b16 %v811
        %v1992 = vunpack.c.h.b16 %v811
        %v1993 = vunpack.c.l.b16 %v812
        %v1994 = vunpack.c.h.b16 %v812
        %v1995 = vunpack.c.l.b16 %v813
        %v1996 = vunpack.c.h.b16 %v813
        %v1997 = vunpack.c.l.b16 %v814
        %v1998 = vunpack.c.h.b16 %v814
        %v1999 = vunpack.c.l.b16 %v815
        %v2000 = vunpack.c.h.b16 %v815
        %v2001 = vunpack.c.l.b16 %v816
        %v2002 = vunpack.c.h.b16 %v816
        %v2003 = vunpack.c.l.b16 %v817
        %v2004 = vunpack.c.h.b16 %v817
        %v2005 = vunpack.c.l.b16 %v818
        %v2006 = vunpack.c.h.b16 %v818
        %v2007 = vunpack.c.l.b16 %v819
        %v2008 = vunpack.c.h.b16 %v819
        %v2009 = vunpack.c.l.b16 %v820
        %v2010 = vunpack.c.h.b16 %v820
        %v2011 = vunpack.c.l.b16 %v821
        %v2012 = vunpack.c.h.b16 %v821
        %v2013 = vunpack.c.l.b16 %v822
        %v2014 = vunpack.c.h.b16 %v822
        %v2015 = vunpack.c.l.b16 %v823
        %v2016 = vunpack.c.h.b16 %v823
        %v2017 = vunpack.c.l.b16 %v824
        %v2018 = vunpack.c.h.b16 %v824
        %v2019 = vunpack.c.l.b16 %v825
        %v2020 = vunpack.c.h.b16 %v825
        %v2021 = vunpack.c.l.b16 %v826
        %v2022 = vunpack.c.h.b16 %v826
        %v2023 = vunpack.c.l.b16 %v827
        %v2024 = vunpack.c.h.b16 %v827
        %v2025 = vunpack.c.l.b16 %v828
        %v2026 = vunpack.c.h.b16 %v828
        %v2027 = vunpack.c.l.b16 %v829
        %v2028 = vunpack.c.h.b16 %v829
        %v2029 = vunpack.c.l.b16 %v830
        %v2030 = vunpack.c.h.b16 %v830
        %v2031 = vunpack.c.l.b16 %v831
        %v2032 = vunpack.c.h.b16 %v831
        %v2033 = vunpack.c.l.b16 %v832
        %v2034 = vunpack.c.h.b16 %v832
        %v2035 = vunpack.c.l.b16 %v833
        %v2036 = vunpack.c.h.b16 %v833
        %v2037 = vunpack.c.l.b16 %v834
        %v2038 = vunpack.c.h.b16 %v834
        %v2039 = vunpack.c.l.b16 %v835
        %v2040 = vunpack.c.h.b16 %v835
        %v2041 = vunpack.c.l.b16 %v836
        %v2042 = vunpack.c.h.b16 %v836
        %v2043 = vunpack.c.l.b16 %v837
        %v2044 = vunpack.c.h.b16 %v837
        %v2045 = vunpack.c.l.b16 %v838
        %v2046 = vunpack.c.h.b16 %v838
        %v2047 = vunpack.c.l.b16 %v839
        %v2048 = vunpack.c.h.b16 %v839
        %v2049 = vunpack.c.l.b16 %v840
        %v2050 = vunpack.c.h.b16 %v840
        %v2051 = vunpack.c.l.b16 %v841
        %v2052 = vunpack.c.h.b16 %v841
        %v2053 = vunpack.c.l.b16 %v842
        %v2054 = vunpack.c.h.b16 %v842
        %v2055 = vunpack.c.l.b16 %v843
        %v2056 = vunpack.c.h.b16 %v843
        %v2057 = vunpack.c.l.b16 %v844
        %v2058 = vunpack.c.h.b16 %v844
        %v2059 = vunpack.c.l.b16 %v845
        %v2060 = vunpack.c.h.b16 %v845
        %v2061 = vunpack.c.l.b16 %v846
        %v2062 = vunpack.c.h.b16 %v846
        %v2063 = vunpack.c.l.b16 %v847
        %v2064 = vunpack.c.h.b16 %v847
        %v2065 = vunpack.c.l.b16 %v848
        %v2066 = vunpack.c.h.b16 %v848
        %v2067 = vpack.c.b16 %v1291, %v1283
        %v2068 = vpack.c.b16 %v1292, %v1284
        %v2069 = vpack.c.b16 %v1293, %v1285
        %v2070 = vpack.c.b16 %v1294, %v1286
        %v2071 = vpack.c.b16 %v1295, %v1287
        %v2072 = vpack.c.b16 %v1296, %v1288
        %v2073 = vpack.c.b16 %v1297, %v1289
        %v2074 = vpack.c.b16 %v1298, %v1290
        %v2075 = vpack.c.b16 %v1307, %v1299
        %v2076 = vpack.c.b16 %v1308, %v1300
        %v2077 = vpack.c.b16 %v1309, %v1301
        %v2078 = vpack.c.b16 %v1310, %v1302
        %v2079 = vpack.c.b16 %v1311, %v1303
        %v2080 = vpack.c.b16 %v1312, %v1304
        %v2081 = vpack.c.b16 %v1313, %v1305
        %v2082 = vpack.c.b16 %v1314, %v1306
        %v2083 = vpack.c.b16 %v1323, %v1315
        %v2084 = vpack.c.b16 %v1324, %v1316
        %v2085 = vpack.c.b16 %v1325, %v1317
        %v2086 = vpack.c.b16 %v1326, %v1318
        %v2087 = vpack.c.b16 %v1327, %v1319
        %v2088 = vpack.c.b16 %v1328, %v1320
        %v2089 = vpack.c.b16 %v1329, %v1321
        %v2090 = vpack.c.b16 %v1330, %v1322
        %v2091 = vpack.c.b16 %v1339, %v1331
        %v2092 = vpack.c.b16 %v1340, %v1332
        %v2093 = vpack.c.b16 %v1341, %v1333
        %v2094 = vpack.c.b16 %v1342, %v1334
        %v2095 = vpack.c.b16 %v1343, %v1335
        %v2096 = vpack.c.b16 %v1344, %v1336
        %v2097 = vpack.c.b16 %v1345, %v1337
        %v2098 = vpack.c.b16 %v1346, %v1338
        %v2099 = vpack.c.b16 %v1355, %v1347
        %v2100 = vpack.c.b16 %v1356, %v1348
        %v2101 = vpack.c.b16 %v1357, %v1349
        %v2102 = vpack.c.b16 %v1358, %v1350
        %v2103 = vpack.c.b16 %v1359, %v1351
        %v2104 = vpack.c.b16 %v1360, %v1352
        %v2105 = vpack.c.b16 %v1361, %v1353
        %v2106 = vpack.c.b16 %v1362, %v1354
        %v2107 = vpack.c.b16 %v1371, %v1363
        %v2108 = vpack.c.b16 %v1372, %v1364
        %v2109 = vpack.c.b16 %v1373, %v1365
        %v2110 = vpack.c.b16 %v1374, %v1366
        %v2111 = vpack.c.b16 %v1375, %v1367
        %v2112 = vpack.c.b16 %v1376, %v1368
        %v2113 = vpack.c.b16 %v1377, %v1369
        %v2114 = vpack.c.b16 %v1378, %v1370
        %v2115 = vpack.c.b16 %v1387, %v1379
        %v2116 = vpack.c.b16 %v1388, %v1380
        %v2117 = vpack.c.b16 %v1389, %v1381
        %v2118 = vpack.c.b16 %v1390, %v1382
        %v2119 = vpack.c.b16 %v1391, %v1383
        %v2120 = vpack.c.b16 %v1392, %v1384
        %v2121 = vpack.c.b16 %v1393, %v1385
        %v2122 = vpack.c.b16 %v1394, %v1386
        %v2123 = vpack.c.b16 %v1403, %v1395
        %v2124 = vpack.c.b16 %v1404, %v1396
        %v2125 = vpack.c.b16 %v1405, %v1397
        %v2126 = vpack.c.b16 %v1406, %v1398
        %v2127 = vpack.c.b16 %v1407, %v1399
        %v2128 = vpack.c.b16 %v1408, %v1400
        %v2129 = vpack.c.b16 %v1409, %v1401
        %v2130 = vpack.c.b16 %v1410, %v1402
        %v2131 = vpack.c.b16 %v1419, %v1411
        %v2132 = vpack.c.b16 %v1420, %v1412
        %v2133 = vpack.c.b16 %v1421, %v1413
        %v2134 = vpack.c.b16 %v1422, %v1414
        %v2135 = vpack.c.b16 %v1423, %v1415
        %v2136 = vpack.c.b16 %v1424, %v1416
        %v2137 = vpack.c.b16 %v1425, %v1417
        %v2138 = vpack.c.b16 %v1426, %v1418
        %v2139 = vpack.c.b16 %v1435, %v1427
        %v2140 = vpack.c.b16 %v1436, %v1428
        %v2141 = vpack.c.b16 %v1437, %v1429
        %v2142 = vpack.c.b16 %v1438, %v1430
        %v2143 = vpack.c.b16 %v1439, %v1431
        %v2144 = vpack.c.b16 %v1440, %v1432
        %v2145 = vpack.c.b16 %v1441, %v1433
        %v2146 = vpack.c.b16 %v1442, %v1434
        %v2147 = vpack.c.b16 %v1451, %v1443
        %v2148 = vpack.c.b16 %v1452, %v1444
        %v2149 = vpack.c.b16 %v1453, %v1445
        %v2150 = vpack.c.b16 %v1454, %v1446
        %v2151 = vpack.c.b16 %v1455, %v1447
        %v2152 = vpack.c.b16 %v1456, %v1448
        %v2153 = vpack.c.b16 %v1457, %v1449
        %v2154 = vpack.c.b16 %v1458, %v1450
        %v2155 = vpack.c.b16 %v1467, %v1459
        %v2156 = vpack.c.b16 %v1468, %v1460
        %v2157 = vpack.c.b16 %v1469, %v1461
        %v2158 = vpack.c.b16 %v1470, %v1462
        %v2159 = vpack.c.b16 %v1471, %v1463
        %v2160 = vpack.c.b16 %v1472, %v1464
        %v2161 = vpack.c.b16 %v1473, %v1465
        %v2162 = vpack.c.b16 %v1474, %v1466
        %v2163 = vpack.c.b16 %v1483, %v1475
        %v2164 = vpack.c.b16 %v1484, %v1476
        %v2165 = vpack.c.b16 %v1485, %v1477
        %v2166 = vpack.c.b16 %v1486, %v1478
        %v2167 = vpack.c.b16 %v1487, %v1479
        %v2168 = vpack.c.b16 %v1488, %v1480
        %v2169 = vpack.c.b16 %v1489, %v1481
        %v2170 = vpack.c.b16 %v1490, %v1482
        %v2171 = vpack.c.b16 %v1499, %v1491
        %v2172 = vpack.c.b16 %v1500, %v1492
        %v2173 = vpack.c.b16 %v1501, %v1493
        %v2174 = vpack.c.b16 %v1502, %v1494
        %v2175 = vpack.c.b16 %v1503, %v1495
        %v2176 = vpack.c.b16 %v1504, %v1496
        %v2177 = vpack.c.b16 %v1505, %v1497
        %v2178 = vpack.c.b16 %v1506, %v1498
        %v2179 = vpack.c.b16 %v1515, %v1507
        %v2180 = vpack.c.b16 %v1516, %v1508
        %v2181 = vpack.c.b16 %v1517, %v1509
        %v2182 = vpack.c.b16 %v1518, %v1510
        %v2183 = vpack.c.b16 %v1519, %v1511
        %v2184 = vpack.c.b16 %v1520, %v1512
        %v2185 = vpack.c.b16 %v1521, %v1513
        %v2186 = vpack.c.b16 %v1522, %v1514
        %v2187 = vpack.c.b16 %v1531, %v1523
        %v2188 = vpack.c.b16 %v1532, %v1524
        %v2189 = vpack.c.b16 %v1533, %v1525
        %v2190 = vpack.c.b16 %v1534, %v1526
        %v2191 = vpack.c.b16 %v1535, %v1527
        %v2192 = vpack.c.b16 %v1536, %v1528
        %v2193 = vpack.c.b16 %v1537, %v1529
        %v2194 = vpack.c.b16 %v1538, %v1530
        %v2195 = vpack.c.b16 %v1547, %v1539
        %v2196 = vpack.c.b16 %v1548, %v1540
        %v2197 = vpack.c.b16 %v1549, %v1541
        %v2198 = vpack.c.b16 %v1550, %v1542
        %v2199 = vpack.c.b16 %v1551, %v1543
        %v2200 = vpack.c.b16 %v1552, %v1544
        %v2201 = vpack.c.b16 %v1553, %v1545
        %v2202 = vpack.c.b16 %v1554, %v1546
        %v2203 = vpack.c.b16 %v1563, %v1555
        %v2204 = vpack.c.b16 %v1564, %v1556
        %v2205 = vpack.c.b16 %v1565, %v1557
        %v2206 = vpack.c.b16 %v1566, %v1558
        %v2207 = vpack.c.b16 %v1567, %v1559
        %v2208 = vpack.c.b16 %v1568, %v1560
        %v2209 = vpack.c.b16 %v1569, %v1561
        %v2210 = vpack.c.b16 %v1570, %v1562
        %v2211 = vpack.c.b16 %v1579, %v1571
        %v2212 = vpack.c.b16 %v1580, %v1572
        %v2213 = vpack.c.b16 %v1581, %v1573
        %v2214 = vpack.c.b16 %v1582, %v1574
        %v2215 = vpack.c.b16 %v1583, %v1575
        %v2216 = vpack.c.b16 %v1584, %v1576
        %v2217 = vpack.c.b16 %v1585, %v1577
        %v2218 = vpack.c.b16 %v1586, %v1578
        %v2219 = vpack.c.b16 %v1595, %v1587
        %v2220 = vpack.c.b16 %v1596, %v1588
        %v2221 = vpack.c.b16 %v1597, %v1589
        %v2222 = vpack.c.b16 %v1598, %v1590
        %v2223 = vpack.c.b16 %v1599, %v1591
        %v2224 = vpack.c.b16 %v1600, %v1592
        %v2225 = vpack.c.b16 %v1601, %v1593
        %v2226 = vpack.c.b16 %v1602, %v1594
        %v2227 = vpack.c.b16 %v1611, %v1603
        %v2228 = vpack.c.b16 %v1612, %v1604
        %v2229 = vpack.c.b16 %v1613, %v1605
        %v2230 = vpack.c.b16 %v1614, %v1606
        %v2231 = vpack.c.b16 %v1615, %v1607
        %v2232 = vpack.c.b16 %v1616, %v1608
        %v2233 = vpack.c.b16 %v1617, %v1609
        %v2234 = vpack.c.b16 %v1618, %v1610
        %v2235 = vpack.c.b16 %v1627, %v1619
        %v2236 = vpack.c.b16 %v1628, %v1620
        %v2237 = vpack.c.b16 %v1629, %v1621
        %v2238 = vpack.c.b16 %v1630, %v1622
        %v2239 = vpack.c.b16 %v1631, %v1623
        %v2240 = vpack.c.b16 %v1632, %v1624
        %v2241 = vpack.c.b16 %v1633, %v1625
        %v2242 = vpack.c.b16 %v1634, %v1626
        %v2243 = vpack.c.b16 %v1643, %v1635
        %v2244 = vpack.c.b16 %v1644, %v1636
        %v2245 = vpack.c.b16 %v1645, %v1637
        %v2246 = vpack.c.b16 %v1646, %v1638
        %v2247 = vpack.c.b16 %v1647, %v1639
        %v2248 = vpack.c.b16 %v1648, %v1640
        %v2249 = vpack.c.b16 %v1649, %v1641
        %v2250 = vpack.c.b16 %v1650, %v1642
        %v2251 = vpack.c.b16 %v1659, %v1651
        %v2252 = vpack.c.b16 %v1660, %v1652
        %v2253 = vpack.c.b16 %v1661, %v1653
        %v2254 = vpack.c.b16 %v1662, %v1654
        %v2255 = vpack.c.b16 %v1663, %v1655
        %v2256 = vpack.c.b16 %v1664, %v1656
        %v2257 = vpack.c.b16 %v1665, %v1657
        %v2258 = vpack.c.b16 %v1666, %v1658
        %v2259 = vpack.c.b16 %v1675, %v1667
        %v2260 = vpack.c.b16 %v1676, %v1668
        %v2261 = vpack.c.b16 %v1677, %v1669
        %v2262 = vpack.c.b16 %v1678, %v1670
        %v2263 = vpack.c.b16 %v1679, %v1671
        %v2264 = vpack.c.b16 %v1680, %v1672
        %v2265 = vpack.c.b16 %v1681, %v1673
        %v2266 = vpack.c.b16 %v1682, %v1674
        %v2267 = vpack.c.b16 %v1691, %v1683
        %v2268 = vpack.c.b16 %v1692, %v1684
        %v2269 = vpack.c.b16 %v1693, %v1685
        %v2270 = vpack.c.b16 %v1694, %v1686
        %v2271 = vpack.c.b16 %v1695, %v1687
        %v2272 = vpack.c.b16 %v1696, %v1688
        %v2273 = vpack.c.b16 %v1697, %v1689
        %v2274 = vpack.c.b16 %v1698, %v1690
        %v2275 = vpack.c.b16 %v1707, %v1699
        %v2276 = vpack.c.b16 %v1708, %v1700
        %v2277 = vpack.c.b16 %v1709, %v1701
        %v2278 = vpack.c.b16 %v1710, %v1702
        %v2279 = vpack.c.b16 %v1711, %v1703
        %v2280 = vpack.c.b16 %v1712, %v1704
        %v2281 = vpack.c.b16 %v1713, %v1705
        %v2282 = vpack.c.b16 %v1714, %v1706
        %v2283 = vpack.c.b16 %v1723, %v1715
        %v2284 = vpack.c.b16 %v1724, %v1716
        %v2285 = vpack.c.b16 %v1725, %v1717
        %v2286 = vpack.c.b16 %v1726, %v1718
        %v2287 = vpack.c.b16 %v1727, %v1719
        %v2288 = vpack.c.b16 %v1728, %v1720
        %v2289 = vpack.c.b16 %v1729, %v1721
        %v2290 = vpack.c.b16 %v1730, %v1722
        %v2291 = vpack.c.b16 %v1739, %v1731
        %v2292 = vpack.c.b16 %v1740, %v1732
        %v2293 = vpack.c.b16 %v1741, %v1733
        %v2294 = vpack.c.b16 %v1742, %v1734
        %v2295 = vpack.c.b16 %v1743, %v1735
        %v2296 = vpack.c.b16 %v1744, %v1736
        %v2297 = vpack.c.b16 %v1745, %v1737
        %v2298 = vpack.c.b16 %v1746, %v1738
        %v2299 = vpack.c.b16 %v1755, %v1747
        %v2300 = vpack.c.b16 %v1756, %v1748
        %v2301 = vpack.c.b16 %v1757, %v1749
        %v2302 = vpack.c.b16 %v1758, %v1750
        %v2303 = vpack.c.b16 %v1759, %v1751
        %v2304 = vpack.c.b16 %v1760, %v1752
        %v2305 = vpack.c.b16 %v1761, %v1753
        %v2306 = vpack.c.b16 %v1762, %v1754
        %v2307 = vpack.c.b16 %v1771, %v1763
        %v2308 = vpack.c.b16 %v1772, %v1764
        %v2309 = vpack.c.b16 %v1773, %v1765
        %v2310 = vpack.c.b16 %v1774, %v1766
        %v2311 = vpack.c.b16 %v1775, %v1767
        %v2312 = vpack.c.b16 %v1776, %v1768
        %v2313 = vpack.c.b16 %v1777, %v1769
        %v2314 = vpack.c.b16 %v1778, %v1770
        %v2315 = vpack.c.b16 %v1787, %v1779
        %v2316 = vpack.c.b16 %v1788, %v1780
        %v2317 = vpack.c.b16 %v1789, %v1781
        %v2318 = vpack.c.b16 %v1790, %v1782
        %v2319 = vpack.c.b16 %v1791, %v1783
        %v2320 = vpack.c.b16 %v1792, %v1784
        %v2321 = vpack.c.b16 %v1793, %v1785
        %v2322 = vpack.c.b16 %v1794, %v1786
        %v2323 = vpack.c.b16 %v1803, %v1795
        %v2324 = vpack.c.b16 %v1804, %v1796
        %v2325 = vpack.c.b16 %v1805, %v1797
        %v2326 = vpack.c.b16 %v1806, %v1798
        %v2327 = vpack.c.b16 %v1807, %v1799
        %v2328 = vpack.c.b16 %v1808, %v1800
        %v2329 = vpack.c.b16 %v1809, %v1801
        %v2330 = vpack.c.b16 %v1810, %v1802
        %v2331 = vpack.c.b16 %v1819, %v1811
        %v2332 = vpack.c.b16 %v1820, %v1812
        %v2333 = vpack.c.b16 %v1821, %v1813
        %v2334 = vpack.c.b16 %v1822, %v1814
        %v2335 = vpack.c.b16 %v1823, %v1815
        %v2336 = vpack.c.b16 %v1824, %v1816
        %v2337 = vpack.c.b16 %v1825, %v1817
        %v2338 = vpack.c.b16 %v1826, %v1818
        %v2339 = vpack.c.b16 %v1835, %v1827
        %v2340 = vpack.c.b16 %v1836, %v1828
        %v2341 = vpack.c.b16 %v1837, %v1829
        %v2342 = vpack.c.b16 %v1838, %v1830
        %v2343 = vpack.c.b16 %v1839, %v1831
        %v2344 = vpack.c.b16 %v1840, %v1832
        %v2345 = vpack.c.b16 %v1841, %v1833
        %v2346 = vpack.c.b16 %v1842, %v1834
        %v2347 = vpack.c.b16 %v1851, %v1843
        %v2348 = vpack.c.b16 %v1852, %v1844
        %v2349 = vpack.c.b16 %v1853, %v1845
        %v2350 = vpack.c.b16 %v1854, %v1846
        %v2351 = vpack.c.b16 %v1855, %v1847
        %v2352 = vpack.c.b16 %v1856, %v1848
        %v2353 = vpack.c.b16 %v1857, %v1849
        %v2354 = vpack.c.b16 %v1858, %v1850
        %v2355 = vpack.c.b16 %v1867, %v1859
        %v2356 = vpack.c.b16 %v1868, %v1860
        %v2357 = vpack.c.b16 %v1869, %v1861
        %v2358 = vpack.c.b16 %v1870, %v1862
        %v2359 = vpack.c.b16 %v1871, %v1863
        %v2360 = vpack.c.b16 %v1872, %v1864
        %v2361 = vpack.c.b16 %v1873, %v1865
        %v2362 = vpack.c.b16 %v1874, %v1866
        %v2363 = vpack.c.b16 %v1883, %v1875
        %v2364 = vpack.c.b16 %v1884, %v1876
        %v2365 = vpack.c.b16 %v1885, %v1877
        %v2366 = vpack.c.b16 %v1886, %v1878
        %v2367 = vpack.c.b16 %v1887, %v1879
        %v2368 = vpack.c.b16 %v1888, %v1880
        %v2369 = vpack.c.b16 %v1889, %v1881
        %v2370 = vpack.c.b16 %v1890, %v1882
        %v2371 = vpack.c.b16 %v1899, %v1891
        %v2372 = vpack.c.b16 %v1900, %v1892
        %v2373 = vpack.c.b16 %v1901, %v1893
        %v2374 = vpack.c.b16 %v1902, %v1894
        %v2375 = vpack.c.b16 %v1903, %v1895
        %v2376 = vpack.c.b16 %v1904, %v1896
        %v2377 = vpack.c.b16 %v1905, %v1897
        %v2378 = vpack.c.b16 %v1906, %v1898
        %v2379 = vpack.c.b16 %v1915, %v1907
        %v2380 = vpack.c.b16 %v1916, %v1908
        %v2381 = vpack.c.b16 %v1917, %v1909
        %v2382 = vpack.c.b16 %v1918, %v1910
        %v2383 = vpack.c.b16 %v1919, %v1911
        %v2384 = vpack.c.b16 %v1920, %v1912
        %v2385 = vpack.c.b16 %v1921, %v1913
        %v2386 = vpack.c.b16 %v1922, %v1914
        %v2387 = vpack.c.b16 %v1931, %v1923
        %v2388 = vpack.c.b16 %v1932, %v1924
        %v2389 = vpack.c.b16 %v1933, %v1925
        %v2390 = vpack.c.b16 %v1934, %v1926
        %v2391 = vpack.c.b16 %v1935, %v1927
        %v2392 = vpack.c.b16 %v1936, %v1928
        %v2393 = vpack.c.b16 %v1937, %v1929
        %v2394 = vpack.c.b16 %v1938, %v1930
        %v2395 = vpack.c.b16 %v1947, %v1939
        %v2396 = vpack.c.b16 %v1948, %v1940
        %v2397 = vpack.c.b16 %v1949, %v1941
        %v2398 = vpack.c.b16 %v1950, %v1942
        %v2399 = vpack.c.b16 %v1951, %v1943
        %v2400 = vpack.c.b16 %v1952, %v1944
        %v2401 = vpack.c.b16 %v1953, %v1945
        %v2402 = vpack.c.b16 %v1954, %v1946
        %v2403 = vpack.c.b16 %v1963, %v1955
        %v2404 = vpack.c.b16 %v1964, %v1956
        %v2405 = vpack.c.b16 %v1965, %v1957
        %v2406 = vpack.c.b16 %v1966, %v1958
        %v2407 = vpack.c.b16 %v1967, %v1959
        %v2408 = vpack.c.b16 %v1968, %v1960
        %v2409 = vpack.c.b16 %v1969, %v1961
        %v2410 = vpack.c.b16 %v1970, %v1962
        %v2411 = vpack.c.b16 %v1979, %v1971
        %v2412 = vpack.c.b16 %v1980, %v1972
        %v2413 = vpack.c.b16 %v1981, %v1973
        %v2414 = vpack.c.b16 %v1982, %v1974
        %v2415 = vpack.c.b16 %v1983, %v1975
        %v2416 = vpack.c.b16 %v1984, %v1976
        %v2417 = vpack.c.b16 %v1985, %v1977
        %v2418 = vpack.c.b16 %v1986, %v1978
        %v2419 = vpack.c.b16 %v1995, %v1987
        %v2420 = vpack.c.b16 %v1996, %v1988
        %v2421 = vpack.c.b16 %v1997, %v1989
        %v2422 = vpack.c.b16 %v1998, %v1990
        %v2423 = vpack.c.b16 %v1999, %v1991
        %v2424 = vpack.c.b16 %v2000, %v1992
        %v2425 = vpack.c.b16 %v2001, %v1993
        %v2426 = vpack.c.b16 %v2002, %v1994
        %v2427 = vpack.c.b16 %v2011, %v2003
        %v2428 = vpack.c.b16 %v2012, %v2004
        %v2429 = vpack.c.b16 %v2013, %v2005
        %v2430 = vpack.c.b16 %v2014, %v2006
        %v2431 = vpack.c.b16 %v2015, %v2007
        %v2432 = vpack.c.b16 %v2016, %v2008
        %v2433 = vpack.c.b16 %v2017, %v2009
        %v2434 = vpack.c.b16 %v2018, %v2010
        %v2435 = vpack.c.b16 %v2027, %v2019
        %v2436 = vpack.c.b16 %v2028, %v2020
        %v2437 = vpack.c.b16 %v2029, %v2021
        %v2438 = vpack.c.b16 %v2030, %v2022
        %v2439 = vpack.c.b16 %v2031, %v2023
        %v2440 = vpack.c.b16 %v2032, %v2024
        %v2441 = vpack.c.b16 %v2033, %v2025
        %v2442 = vpack.c.b16 %v2034, %v2026
        %v2443 = vpack.c.b16 %v2043, %v2035
        %v2444 = vpack.c.b16 %v2044, %v2036
        %v2445 = vpack.c.b16 %v2045, %v2037
        %v2446 = vpack.c.b16 %v2046, %v2038
        %v2447 = vpack.c.b16 %v2047, %v2039
        %v2448 = vpack.c.b16 %v2048, %v2040
        %v2449 = vpack.c.b16 %v2049, %v2041
        %v2450 = vpack.c.b16 %v2050, %v2042
        %v2451 = vpack.c.b16 %v2059, %v2051
        %v2452 = vpack.c.b16 %v2060, %v2052
        %v2453 = vpack.c.b16 %v2061, %v2053
        %v2454 = vpack.c.b16 %v2062, %v2054
        %v2455 = vpack.c.b16 %v2063, %v2055
        %v2456 = vpack.c.b16 %v2064, %v2056
        %v2457 = vpack.c.b16 %v2065, %v2057
        %v2458 = vpack.c.b16 %v2066, %v2058
        %vm2851 = vcmask 130048
        %v2853 = vsel %vm2851, %v456, 0
        %2855 = vmatprep.subr.bf16.mxu0 %v2068
        %2856 = vmatpush1.bf16.msra.mxu0 %v2067
        %2857 = vmatprep.subr.bf16.mxu0 %v2076
        %2858 = vmatpush1.bf16.msra.mxu0 %v2075
        %2859 = vmatprep.subr.bf16.mxu0 %v2084
        %2860 = vmatpush1.bf16.msra.mxu0 %v2083
        %2861 = vmatprep.subr.bf16.mxu0 %v2092
        %2862 = vmatpush1.bf16.msra.mxu0 %v2091
        %2863 = vmatprep.subr.bf16.mxu0 %v2100
        %2864 = vmatpush1.bf16.msra.mxu0 %v2099
        %2865 = vmatprep.subr.bf16.mxu0 %v2108
        %2866 = vmatpush1.bf16.msra.mxu0 %v2107
        %2867 = vmatprep.subr.bf16.mxu0 %v2116
        %2868 = vmatpush1.bf16.msra.mxu0 %v2115
        %2869 = vmatprep.subr.bf16.mxu0 %v2124
        %2870 = vmatpush1.bf16.msra.mxu0 %v2123
        %2871 = vmatprep.subr.bf16.mxu0 %v2132
        %2872 = vmatpush1.bf16.msra.mxu0 %v2131
        %2873 = vmatprep.subr.bf16.mxu0 %v2140
        %2874 = vmatpush1.bf16.msra.mxu0 %v2139
        %2875 = vmatprep.subr.bf16.mxu0 %v2148
        %2876 = vmatpush1.bf16.msra.mxu0 %v2147
        %2877 = vmatprep.subr.bf16.mxu0 %v2156
        %2878 = vmatpush1.bf16.msra.mxu0 %v2155
        %2879 = vmatprep.subr.bf16.mxu0 %v2164
        %2880 = vmatpush1.bf16.msra.mxu0 %v2163
        %2881 = vmatprep.subr.bf16.mxu0 %v2172
        %2882 = vmatpush1.bf16.msra.mxu0 %v2171
        %2883 = vmatprep.subr.bf16.mxu0 %v2180
        %2884 = vmatpush1.bf16.msra.mxu0 %v2179
        %2885 = vmatprep.subr.bf16.mxu0 %v2188
        %2886 = vmatpush1.bf16.msra.mxu0 %v2187
        %2887 = vmatprep.mubr.bf16.mxu0 %v451
        %2888 = vmatmul.mubr.bf16.gmra.mrb[0].mxu0 %v450
        %v2889 = vpop.f32.mrb[0].mxu0
        %v2890 = vadd.f32 %v854, %v2889
        %v2891 = vpop.f32.mrb[0].mxu0
        %v2892 = vadd.f32 %v858, %v2891
        %v2893 = vpop.f32.mrb[0].mxu0
        %v2894 = vadd.f32 %v854, %v2893
        %v2895 = vpop.f32.mrb[0].mxu0
        %v2896 = vadd.f32 %v858, %v2895
        %2897 = vdwg.mxu0
        %2898 = vmatprep.subr.bf16.mxu0 %v2196
        %2899 = vmatpush1.bf16.msra.mxu0 %v2195
        %2900 = vmatprep.subr.bf16.mxu0 %v2204
        %2901 = vmatpush1.bf16.msra.mxu0 %v2203
        %2902 = vmatprep.subr.bf16.mxu0 %v2212
        %2903 = vmatpush1.bf16.msra.mxu0 %v2211
        %2904 = vmatprep.subr.bf16.mxu0 %v2220
        %2905 = vmatpush1.bf16.msra.mxu0 %v2219
        %2906 = vmatprep.subr.bf16.mxu0 %v2228
        %2907 = vmatpush1.bf16.msra.mxu0 %v2227
        %2908 = vmatprep.subr.bf16.mxu0 %v2236
        %2909 = vmatpush1.bf16.msra.mxu0 %v2235
        %2910 = vmatprep.subr.bf16.mxu0 %v2244
        %2911 = vmatpush1.bf16.msra.mxu0 %v2243
        %2912 = vmatprep.subr.bf16.mxu0 %v2252
        %2913 = vmatpush1.bf16.msra.mxu0 %v2251
        %2914 = vmatprep.subr.bf16.mxu0 %v2260
        %2915 = vmatpush1.bf16.msra.mxu0 %v2259
        %2916 = vmatprep.subr.bf16.mxu0 %v2268
        %2917 = vmatpush1.bf16.msra.mxu0 %v2267
        %2918 = vmatprep.subr.bf16.mxu0 %v2276
        %2919 = vmatpush1.bf16.msra.mxu0 %v2275
        %2920 = vmatprep.subr.bf16.mxu0 %v2284
        %2921 = vmatpush1.bf16.msra.mxu0 %v2283
        %2922 = vmatprep.subr.bf16.mxu0 %v2292
        %2923 = vmatpush1.bf16.msra.mxu0 %v2291
        %2924 = vmatprep.subr.bf16.mxu0 %v2300
        %2925 = vmatpush1.bf16.msra.mxu0 %v2299
        %2926 = vmatprep.subr.bf16.mxu0 %v2308
        %2927 = vmatpush1.bf16.msra.mxu0 %v2307
        %2928 = vmatprep.subr.bf16.mxu0 %v2316
        %2929 = vmatpush1.bf16.msra.mxu0 %v2315
        %2930 = vmatprep.mubr.bf16.mxu0 %v453
        %2931 = vmatmul.mubr.bf16.gmra.mrb[0].mxu0 %v452
        %v2932 = vpop.f32.mrb[0].mxu0
        %v2933 = vadd.f32 %v2890, %v2932
        %v2934 = vpop.f32.mrb[0].mxu0
        %v2935 = vadd.f32 %v2892, %v2934
        %v2936 = vpop.f32.mrb[0].mxu0
        %v2937 = vadd.f32 %v2894, %v2936
        %v2938 = vpop.f32.mrb[0].mxu0
        %v2939 = vadd.f32 %v2896, %v2938
        %2940 = vdwg.mxu0
        %2941 = vmatprep.subr.bf16.mxu0 %v2324
        %2942 = vmatpush1.bf16.msra.mxu0 %v2323
        %2943 = vmatprep.subr.bf16.mxu0 %v2332
        %2944 = vmatpush1.bf16.msra.mxu0 %v2331
        %2945 = vmatprep.subr.bf16.mxu0 %v2340
        %2946 = vmatpush1.bf16.msra.mxu0 %v2339
        %2947 = vmatprep.subr.bf16.mxu0 %v2348
        %2948 = vmatpush1.bf16.msra.mxu0 %v2347
        %2949 = vmatprep.subr.bf16.mxu0 %v2356
        %2950 = vmatpush1.bf16.msra.mxu0 %v2355
        %2951 = vmatprep.subr.bf16.mxu0 %v2364
        %2952 = vmatpush1.bf16.msra.mxu0 %v2363
        %2953 = vmatprep.subr.bf16.mxu0 %v2372
        %2954 = vmatpush1.bf16.msra.mxu0 %v2371
        %2955 = vmatprep.subr.bf16.mxu0 %v2380
        %2956 = vmatpush1.bf16.msra.mxu0 %v2379
        %2957 = vmatprep.subr.bf16.mxu0 %v2388
        %2958 = vmatpush1.bf16.msra.mxu0 %v2387
        %2959 = vmatprep.subr.bf16.mxu0 %v2396
        %2960 = vmatpush1.bf16.msra.mxu0 %v2395
        %2961 = vmatprep.subr.bf16.mxu0 %v2404
        %2962 = vmatpush1.bf16.msra.mxu0 %v2403
        %2963 = vmatprep.subr.bf16.mxu0 %v2412
        %2964 = vmatpush1.bf16.msra.mxu0 %v2411
        %2965 = vmatprep.subr.bf16.mxu0 %v2420
        %2966 = vmatpush1.bf16.msra.mxu0 %v2419
        %2967 = vmatprep.subr.bf16.mxu0 %v2428
        %2968 = vmatpush1.bf16.msra.mxu0 %v2427
        %2969 = vmatprep.subr.bf16.mxu0 %v2436
        %2970 = vmatpush1.bf16.msra.mxu0 %v2435
        %2971 = vmatprep.subr.bf16.mxu0 %v2444
        %2972 = vmatpush1.bf16.msra.mxu0 %v2443
        %2973 = vmatprep.mubr.bf16.mxu0 %v455
        %2974 = vmatmul.mubr.bf16.gmra.mrb[0].mxu0 %v454
        %v2975 = vpop.f32.mrb[0].mxu0
        %v2976 = vadd.f32 %v2933, %v2975
        %v2977 = vpop.f32.mrb[0].mxu0
        %v2978 = vadd.f32 %v2935, %v2977
        %v2979 = vpop.f32.mrb[0].mxu0
        %v2980 = vadd.f32 %v2937, %v2979
        %v2981 = vpop.f32.mrb[0].mxu0
        %v2982 = vadd.f32 %v2939, %v2981
        %2983 = vdwg.mxu0
        %2984 = vmatprep.subr.bf16.mxu0 %v2452
        %2985 = vmatpush1.bf16.msra.mxu0 %v2451
        %2986 = vmatprep.subr.bf16.mxu0 0
        %2987 = vmatpush1.bf16.msra.mxu0 0
        %2988 = vmatprep.subr.bf16.mxu0 0
        %2989 = vmatpush1.bf16.msra.mxu0 0
        %2990 = vmatprep.subr.bf16.mxu0 0
        %2991 = vmatpush1.bf16.msra.mxu0 0
        %2992 = vmatprep.subr.bf16.mxu0 0
        %2993 = vmatpush1.bf16.msra.mxu0 0
        %2994 = vmatprep.subr.bf16.mxu0 0
        %2995 = vmatpush1.bf16.msra.mxu0 0
        %2996 = vmatprep.subr.bf16.mxu0 0
        %2997 = vmatpush1.bf16.msra.mxu0 0
        %2998 = vmatprep.subr.bf16.mxu0 0
        %2999 = vmatpush1.bf16.msra.mxu0 0
        %3000 = vmatprep.subr.bf16.mxu0 0
        %3001 = vmatpush1.bf16.msra.mxu0 0
        %3002 = vmatprep.subr.bf16.mxu0 0
        %3003 = vmatpush1.bf16.msra.mxu0 0
        %3004 = vmatprep.subr.bf16.mxu0 0
        %3005 = vmatpush1.bf16.msra.mxu0 0
        %3006 = vmatprep.subr.bf16.mxu0 0
        %3007 = vmatpush1.bf16.msra.mxu0 0
        %3008 = vmatprep.subr.bf16.mxu0 0
        %3009 = vmatpush1.bf16.msra.mxu0 0
        %3010 = vmatprep.subr.bf16.mxu0 0
        %3011 = vmatpush1.bf16.msra.mxu0 0
        %3012 = vmatprep.subr.bf16.mxu0 0
        %3013 = vmatpush1.bf16.msra.mxu0 0
        %3014 = vmatprep.subr.bf16.mxu0 0
        %3015 = vmatpush1.bf16.msra.mxu0 0
        %3016 = vmatprep.mubr.bf16.mxu0 0
        %3017 = vmatmul.mubr.bf16.gmra.mrb[0].mxu0 %v2853
        %v3018 = vpop.f32.mrb[0].mxu0
        %v3019 = vadd.f32 %v2976, %v3018
        %v3020 = vpop.f32.mrb[0].mxu0
        %v3021 = vadd.f32 %v2978, %v3020
        %v3022 = vpop.f32.mrb[0].mxu0
        %v3023 = vadd.f32 %v2980, %v3022
        %v3024 = vpop.f32.mrb[0].mxu0
        %v3025 = vadd.f32 %v2982, %v3024
        %3026 = vdwg.mxu0
        %3027 = vmatprep.subr.bf16.mxu0 %v2070
        %3028 = vmatpush1.bf16.msra.mxu0 %v2069
        %3029 = vmatprep.subr.bf16.mxu0 %v2078
        %3030 = vmatpush1.bf16.msra.mxu0 %v2077
        %3031 = vmatprep.subr.bf16.mxu0 %v2086
        %3032 = vmatpush1.bf16.msra.mxu0 %v2085
        %3033 = vmatprep.subr.bf16.mxu0 %v2094
        %3034 = vmatpush1.bf16.msra.mxu0 %v2093
        %3035 = vmatprep.subr.bf16.mxu0 %v2102
        %3036 = vmatpush1.bf16.msra.mxu0 %v2101
        %3037 = vmatprep.subr.bf16.mxu0 %v2110
        %3038 = vmatpush1.bf16.msra.mxu0 %v2109
        %3039 = vmatprep.subr.bf16.mxu0 %v2118
        %3040 = vmatpush1.bf16.msra.mxu0 %v2117
        %3041 = vmatprep.subr.bf16.mxu0 %v2126
        %3042 = vmatpush1.bf16.msra.mxu0 %v2125
        %3043 = vmatprep.subr.bf16.mxu0 %v2134
        %3044 = vmatpush1.bf16.msra.mxu0 %v2133
        %3045 = vmatprep.subr.bf16.mxu0 %v2142
        %3046 = vmatpush1.bf16.msra.mxu0 %v2141
        %3047 = vmatprep.subr.bf16.mxu0 %v2150
        %3048 = vmatpush1.bf16.msra.mxu0 %v2149
        %3049 = vmatprep.subr.bf16.mxu0 %v2158
        %3050 = vmatpush1.bf16.msra.mxu0 %v2157
        %3051 = vmatprep.subr.bf16.mxu0 %v2166
        %3052 = vmatpush1.bf16.msra.mxu0 %v2165
        %3053 = vmatprep.subr.bf16.mxu0 %v2174
        %3054 = vmatpush1.bf16.msra.mxu0 %v2173
        %3055 = vmatprep.subr.bf16.mxu0 %v2182
        %3056 = vmatpush1.bf16.msra.mxu0 %v2181
        %3057 = vmatprep.subr.bf16.mxu0 %v2190
        %3058 = vmatpush1.bf16.msra.mxu0 %v2189
        %3059 = vmatprep.mubr.bf16.mxu0 %v451
        %3060 = vmatmul.mubr.bf16.gmra.mrb[0].mxu0 %v450
        %v3061 = vpop.f32.mrb[0].mxu0
        %v3062 = vadd.f32 %v862, %v3061
        %v3063 = vpop.f32.mrb[0].mxu0
        %v3064 = vadd.f32 %v866, %v3063
        %v3065 = vpop.f32.mrb[0].mxu0
        %v3066 = vadd.f32 %v862, %v3065
        %v3067 = vpop.f32.mrb[0].mxu0
        %v3068 = vadd.f32 %v866, %v3067
        %3069 = vdwg.mxu0
        %3070 = vmatprep.subr.bf16.mxu0 %v2198
        %3071 = vmatpush1.bf16.msra.mxu0 %v2197
        %3072 = vmatprep.subr.bf16.mxu0 %v2206
        %3073 = vmatpush1.bf16.msra.mxu0 %v2205
        %3074 = vmatprep.subr.bf16.mxu0 %v2214
        %3075 = vmatpush1.bf16.msra.mxu0 %v2213
        %3076 = vmatprep.subr.bf16.mxu0 %v2222
        %3077 = vmatpush1.bf16.msra.mxu0 %v2221
        %3078 = vmatprep.subr.bf16.mxu0 %v2230
        %3079 = vmatpush1.bf16.msra.mxu0 %v2229
        %3080 = vmatprep.subr.bf16.mxu0 %v2238
        %3081 = vmatpush1.bf16.msra.mxu0 %v2237
        %3082 = vmatprep.subr.bf16.mxu0 %v2246
        %3083 = vmatpush1.bf16.msra.mxu0 %v2245
        %3084 = vmatprep.subr.bf16.mxu0 %v2254
        %3085 = vmatpush1.bf16.msra.mxu0 %v2253
        %3086 = vmatprep.subr.bf16.mxu0 %v2262
        %3087 = vmatpush1.bf16.msra.mxu0 %v2261
        %3088 = vmatprep.subr.bf16.mxu0 %v2270
        %3089 = vmatpush1.bf16.msra.mxu0 %v2269
        %3090 = vmatprep.subr.bf16.mxu0 %v2278
        %3091 = vmatpush1.bf16.msra.mxu0 %v2277
        %3092 = vmatprep.subr.bf16.mxu0 %v2286
        %3093 = vmatpush1.bf16.msra.mxu0 %v2285
        %3094 = vmatprep.subr.bf16.mxu0 %v2294
        %3095 = vmatpush1.bf16.msra.mxu0 %v2293
        %3096 = vmatprep.subr.bf16.mxu0 %v2302
        %3097 = vmatpush1.bf16.msra.mxu0 %v2301
        %3098 = vmatprep.subr.bf16.mxu0 %v2310
        %3099 = vmatpush1.bf16.msra.mxu0 %v2309
        %3100 = vmatprep.subr.bf16.mxu0 %v2318
        %3101 = vmatpush1.bf16.msra.mxu0 %v2317
        %3102 = vmatprep.mubr.bf16.mxu0 %v453
        %3103 = vmatmul.mubr.bf16.gmra.mrb[0].mxu0 %v452
        %v3104 = vpop.f32.mrb[0].mxu0
        %v3105 = vadd.f32 %v3062, %v3104
        %v3106 = vpop.f32.mrb[0].mxu0
        %v3107 = vadd.f32 %v3064, %v3106
        %v3108 = vpop.f32.mrb[0].mxu0
        %v3109 = vadd.f32 %v3066, %v3108
        %v3110 = vpop.f32.mrb[0].mxu0
        %v3111 = vadd.f32 %v3068, %v3110
        %3112 = vdwg.mxu0
        %3113 = vmatprep.subr.bf16.mxu0 %v2326
        %3114 = vmatpush1.bf16.msra.mxu0 %v2325
        %3115 = vmatprep.subr.bf16.mxu0 %v2334
        %3116 = vmatpush1.bf16.msra.mxu0 %v2333
        %3117 = vmatprep.subr.bf16.mxu0 %v2342
        %3118 = vmatpush1.bf16.msra.mxu0 %v2341
        %3119 = vmatprep.subr.bf16.mxu0 %v2350
        %3120 = vmatpush1.bf16.msra.mxu0 %v2349
        %3121 = vmatprep.subr.bf16.mxu0 %v2358
        %3122 = vmatpush1.bf16.msra.mxu0 %v2357
        %3123 = vmatprep.subr.bf16.mxu0 %v2366
        %3124 = vmatpush1.bf16.msra.mxu0 %v2365
        %3125 = vmatprep.subr.bf16.mxu0 %v2374
        %3126 = vmatpush1.bf16.msra.mxu0 %v2373
        %3127 = vmatprep.subr.bf16.mxu0 %v2382
        %3128 = vmatpush1.bf16.msra.mxu0 %v2381
        %3129 = vmatprep.subr.bf16.mxu0 %v2390
        %3130 = vmatpush1.bf16.msra.mxu0 %v2389
        %3131 = vmatprep.subr.bf16.mxu0 %v2398
        %3132 = vmatpush1.bf16.msra.mxu0 %v2397
        %3133 = vmatprep.subr.bf16.mxu0 %v2406
        %3134 = vmatpush1.bf16.msra.mxu0 %v2405
        %3135 = vmatprep.subr.bf16.mxu0 %v2414
        %3136 = vmatpush1.bf16.msra.mxu0 %v2413
        %3137 = vmatprep.subr.bf16.mxu0 %v2422
        %3138 = vmatpush1.bf16.msra.mxu0 %v2421
        %3139 = vmatprep.subr.bf16.mxu0 %v2430
        %3140 = vmatpush1.bf16.msra.mxu0 %v2429
        %3141 = vmatprep.subr.bf16.mxu0 %v2438
        %3142 = vmatpush1.bf16.msra.mxu0 %v2437
        %3143 = vmatprep.subr.bf16.mxu0 %v2446
        %3144 = vmatpush1.bf16.msra.mxu0 %v2445
        %3145 = vmatprep.mubr.bf16.mxu0 %v455
        %3146 = vmatmul.mubr.bf16.gmra.mrb[0].mxu0 %v454
        %v3147 = vpop.f32.mrb[0].mxu0
        %v3148 = vadd.f32 %v3105, %v3147
        %v3149 = vpop.f32.mrb[0].mxu0
        %v3150 = vadd.f32 %v3107, %v3149
        %v3151 = vpop.f32.mrb[0].mxu0
        %v3152 = vadd.f32 %v3109, %v3151
        %v3153 = vpop.f32.mrb[0].mxu0
        %v3154 = vadd.f32 %v3111, %v3153
        %3155 = vdwg.mxu0
        %3156 = vmatprep.subr.bf16.mxu0 %v2454
        %3157 = vmatpush1.bf16.msra.mxu0 %v2453
        %3158 = vmatprep.subr.bf16.mxu0 0
        %3159 = vmatpush1.bf16.msra.mxu0 0
        %3160 = vmatprep.subr.bf16.mxu0 0
        %3161 = vmatpush1.bf16.msra.mxu0 0
        %3162 = vmatprep.subr.bf16.mxu0 0
        %3163 = vmatpush1.bf16.msra.mxu0 0
        %3164 = vmatprep.subr.bf16.mxu0 0
        %3165 = vmatpush1.bf16.msra.mxu0 0
        %3166 = vmatprep.subr.bf16.mxu0 0
        %3167 = vmatpush1.bf16.msra.mxu0 0
        %3168 = vmatprep.subr.bf16.mxu0 0
        %3169 = vmatpush1.bf16.msra.mxu0 0
        %3170 = vmatprep.subr.bf16.mxu0 0
        %3171 = vmatpush1.bf16.msra.mxu0 0
        %3172 = vmatprep.subr.bf16.mxu0 0
        %3173 = vmatpush1.bf16.msra.mxu0 0
        %3174 = vmatprep.subr.bf16.mxu0 0
        %3175 = vmatpush1.bf16.msra.mxu0 0
        %3176 = vmatprep.subr.bf16.mxu0 0
        %3177 = vmatpush1.bf16.msra.mxu0 0
        %3178 = vmatprep.subr.bf16.mxu0 0
        %3179 = vmatpush1.bf16.msra.mxu0 0
        %3180 = vmatprep.subr.bf16.mxu0 0
        %3181 = vmatpush1.bf16.msra.mxu0 0
        %3182 = vmatprep.subr.bf16.mxu0 0
        %3183 = vmatpush1.bf16.msra.mxu0 0
        %3184 = vmatprep.subr.bf16.mxu0 0
        %3185 = vmatpush1.bf16.msra.mxu0 0
        %3186 = vmatprep.subr.bf16.mxu0 0
        %3187 = vmatpush1.bf16.msra.mxu0 0
        %3188 = vmatprep.mubr.bf16.mxu0 0
        %3189 = vmatmul.mubr.bf16.gmra.mrb[0].mxu0 %v2853
        %v3190 = vpop.f32.mrb[0].mxu0
        %v3191 = vadd.f32 %v3148, %v3190
        %v3192 = vpop.f32.mrb[0].mxu0
        %v3193 = vadd.f32 %v3150, %v3192
        %v3194 = vpop.f32.mrb[0].mxu0
        %v3195 = vadd.f32 %v3152, %v3194
        %v3196 = vpop.f32.mrb[0].mxu0
        %v3197 = vadd.f32 %v3154, %v3196
        %3198 = vdwg.mxu0
        %3199 = vmatprep.subr.bf16.mxu0 %v2072
        %3200 = vmatpush1.bf16.msra.mxu0 %v2071
        %3201 = vmatprep.subr.bf16.mxu0 %v2080
        %3202 = vmatpush1.bf16.msra.mxu0 %v2079
        %3203 = vmatprep.subr.bf16.mxu0 %v2088
        %3204 = vmatpush1.bf16.msra.mxu0 %v2087
        %3205 = vmatprep.subr.bf16.mxu0 %v2096
        %3206 = vmatpush1.bf16.msra.mxu0 %v2095
        %3207 = vmatprep.subr.bf16.mxu0 %v2104
        %3208 = vmatpush1.bf16.msra.mxu0 %v2103
        %3209 = vmatprep.subr.bf16.mxu0 %v2112
        %3210 = vmatpush1.bf16.msra.mxu0 %v2111
        %3211 = vmatprep.subr.bf16.mxu0 %v2120
        %3212 = vmatpush1.bf16.msra.mxu0 %v2119
        %3213 = vmatprep.subr.bf16.mxu0 %v2128
        %3214 = vmatpush1.bf16.msra.mxu0 %v2127
        %3215 = vmatprep.subr.bf16.mxu0 %v2136
        %3216 = vmatpush1.bf16.msra.mxu0 %v2135
        %3217 = vmatprep.subr.bf16.mxu0 %v2144
        %3218 = vmatpush1.bf16.msra.mxu0 %v2143
        %3219 = vmatprep.subr.bf16.mxu0 %v2152
        %3220 = vmatpush1.bf16.msra.mxu0 %v2151
        %3221 = vmatprep.subr.bf16.mxu0 %v2160
        %3222 = vmatpush1.bf16.msra.mxu0 %v2159
        %3223 = vmatprep.subr.bf16.mxu0 %v2168
        %3224 = vmatpush1.bf16.msra.mxu0 %v2167
        %3225 = vmatprep.subr.bf16.mxu0 %v2176
        %3226 = vmatpush1.bf16.msra.mxu0 %v2175
        %3227 = vmatprep.subr.bf16.mxu0 %v2184
        %3228 = vmatpush1.bf16.msra.mxu0 %v2183
        %3229 = vmatprep.subr.bf16.mxu0 %v2192
        %3230 = vmatpush1.bf16.msra.mxu0 %v2191
        %3231 = vmatprep.mubr.bf16.mxu0 %v451
        %3232 = vmatmul.mubr.bf16.gmra.mrb[0].mxu0 %v450
        %v3233 = vpop.f32.mrb[0].mxu0
        %v3234 = vadd.f32 %v870, %v3233
        %v3235 = vpop.f32.mrb[0].mxu0
        %v3236 = vadd.f32 %v874, %v3235
        %v3237 = vpop.f32.mrb[0].mxu0
        %v3238 = vadd.f32 %v870, %v3237
        %v3239 = vpop.f32.mrb[0].mxu0
        %v3240 = vadd.f32 %v874, %v3239
        %3241 = vdwg.mxu0
        %3242 = vmatprep.subr.bf16.mxu0 %v2200
        %3243 = vmatpush1.bf16.msra.mxu0 %v2199
        %3244 = vmatprep.subr.bf16.mxu0 %v2208
        %3245 = vmatpush1.bf16.msra.mxu0 %v2207
        %3246 = vmatprep.subr.bf16.mxu0 %v2216
        %3247 = vmatpush1.bf16.msra.mxu0 %v2215
        %3248 = vmatprep.subr.bf16.mxu0 %v2224
        %3249 = vmatpush1.bf16.msra.mxu0 %v2223
        %3250 = vmatprep.subr.bf16.mxu0 %v2232
        %3251 = vmatpush1.bf16.msra.mxu0 %v2231
        %3252 = vmatprep.subr.bf16.mxu0 %v2240
        %3253 = vmatpush1.bf16.msra.mxu0 %v2239
        %3254 = vmatprep.subr.bf16.mxu0 %v2248
        %3255 = vmatpush1.bf16.msra.mxu0 %v2247
        %3256 = vmatprep.subr.bf16.mxu0 %v2256
        %3257 = vmatpush1.bf16.msra.mxu0 %v2255
        %3258 = vmatprep.subr.bf16.mxu0 %v2264
        %3259 = vmatpush1.bf16.msra.mxu0 %v2263
        %3260 = vmatprep.subr.bf16.mxu0 %v2272
        %3261 = vmatpush1.bf16.msra.mxu0 %v2271
        %3262 = vmatprep.subr.bf16.mxu0 %v2280
        %3263 = vmatpush1.bf16.msra.mxu0 %v2279
        %3264 = vmatprep.subr.bf16.mxu0 %v2288
        %3265 = vmatpush1.bf16.msra.mxu0 %v2287
        %3266 = vmatprep.subr.bf16.mxu0 %v2296
        %3267 = vmatpush1.bf16.msra.mxu0 %v2295
        %3268 = vmatprep.subr.bf16.mxu0 %v2304
        %3269 = vmatpush1.bf16.msra.mxu0 %v2303
        %3270 = vmatprep.subr.bf16.mxu0 %v2312
        %3271 = vmatpush1.bf16.msra.mxu0 %v2311
        %3272 = vmatprep.subr.bf16.mxu0 %v2320
        %3273 = vmatpush1.bf16.msra.mxu0 %v2319
        %3274 = vmatprep.mubr.bf16.mxu0 %v453
        %3275 = vmatmul.mubr.bf16.gmra.mrb[0].mxu0 %v452
        %v3276 = vpop.f32.mrb[0].mxu0
        %v3277 = vadd.f32 %v3234, %v3276
        %v3278 = vpop.f32.mrb[0].mxu0
        %v3279 = vadd.f32 %v3236, %v3278
        %v3280 = vpop.f32.mrb[0].mxu0
        %v3281 = vadd.f32 %v3238, %v3280
        %v3282 = vpop.f32.mrb[0].mxu0
        %v3283 = vadd.f32 %v3240, %v3282
        %3284 = vdwg.mxu0
        %3285 = vmatprep.subr.bf16.mxu0 %v2328
        %3286 = vmatpush1.bf16.msra.mxu0 %v2327
        %3287 = vmatprep.subr.bf16.mxu0 %v2336
        %3288 = vmatpush1.bf16.msra.mxu0 %v2335
        %3289 = vmatprep.subr.bf16.mxu0 %v2344
        %3290 = vmatpush1.bf16.msra.mxu0 %v2343
        %3291 = vmatprep.subr.bf16.mxu0 %v2352
        %3292 = vmatpush1.bf16.msra.mxu0 %v2351
        %3293 = vmatprep.subr.bf16.mxu0 %v2360
        %3294 = vmatpush1.bf16.msra.mxu0 %v2359
        %3295 = vmatprep.subr.bf16.mxu0 %v2368
        %3296 = vmatpush1.bf16.msra.mxu0 %v2367
        %3297 = vmatprep.subr.bf16.mxu0 %v2376
        %3298 = vmatpush1.bf16.msra.mxu0 %v2375
        %3299 = vmatprep.subr.bf16.mxu0 %v2384
        %3300 = vmatpush1.bf16.msra.mxu0 %v2383
        %3301 = vmatprep.subr.bf16.mxu0 %v2392
        %3302 = vmatpush1.bf16.msra.mxu0 %v2391
        %3303 = vmatprep.subr.bf16.mxu0 %v2400
        %3304 = vmatpush1.bf16.msra.mxu0 %v2399
        %3305 = vmatprep.subr.bf16.mxu0 %v2408
        %3306 = vmatpush1.bf16.msra.mxu0 %v2407
        %3307 = vmatprep.subr.bf16.mxu0 %v2416
        %3308 = vmatpush1.bf16.msra.mxu0 %v2415
        %3309 = vmatprep.subr.bf16.mxu0 %v2424
        %3310 = vmatpush1.bf16.msra.mxu0 %v2423
        %3311 = vmatprep.subr.bf16.mxu0 %v2432
        %3312 = vmatpush1.bf16.msra.mxu0 %v2431
        %3313 = vmatprep.subr.bf16.mxu0 %v2440
        %3314 = vmatpush1.bf16.msra.mxu0 %v2439
        %3315 = vmatprep.subr.bf16.mxu0 %v2448
        %3316 = vmatpush1.bf16.msra.mxu0 %v2447
        %3317 = vmatprep.mubr.bf16.mxu0 %v455
        %3318 = vmatmul.mubr.bf16.gmra.mrb[0].mxu0 %v454
        %v3319 = vpop.f32.mrb[0].mxu0
        %v3320 = vadd.f32 %v3277, %v3319
        %v3321 = vpop.f32.mrb[0].mxu0
        %v3322 = vadd.f32 %v3279, %v3321
        %v3323 = vpop.f32.mrb[0].mxu0
        %v3324 = vadd.f32 %v3281, %v3323
        %v3325 = vpop.f32.mrb[0].mxu0
        %v3326 = vadd.f32 %v3283, %v3325
        %3327 = vdwg.mxu0
        %3328 = vmatprep.subr.bf16.mxu0 %v2456
        %3329 = vmatpush1.bf16.msra.mxu0 %v2455
        %3330 = vmatprep.subr.bf16.mxu0 0
        %3331 = vmatpush1.bf16.msra.mxu0 0
        %3332 = vmatprep.subr.bf16.mxu0 0
        %3333 = vmatpush1.bf16.msra.mxu0 0
        %3334 = vmatprep.subr.bf16.mxu0 0
        %3335 = vmatpush1.bf16.msra.mxu0 0
        %3336 = vmatprep.subr.bf16.mxu0 0
        %3337 = vmatpush1.bf16.msra.mxu0 0
        %3338 = vmatprep.subr.bf16.mxu0 0
        %3339 = vmatpush1.bf16.msra.mxu0 0
        %3340 = vmatprep.subr.bf16.mxu0 0
        %3341 = vmatpush1.bf16.msra.mxu0 0
        %3342 = vmatprep.subr.bf16.mxu0 0
        %3343 = vmatpush1.bf16.msra.mxu0 0
        %3344 = vmatprep.subr.bf16.mxu0 0
        %3345 = vmatpush1.bf16.msra.mxu0 0
        %3346 = vmatprep.subr.bf16.mxu0 0
        %3347 = vmatpush1.bf16.msra.mxu0 0
        %3348 = vmatprep.subr.bf16.mxu0 0
        %3349 = vmatpush1.bf16.msra.mxu0 0
        %3350 = vmatprep.subr.bf16.mxu0 0
        %3351 = vmatpush1.bf16.msra.mxu0 0
        %3352 = vmatprep.subr.bf16.mxu0 0
        %3353 = vmatpush1.bf16.msra.mxu0 0
        %3354 = vmatprep.subr.bf16.mxu0 0
        %3355 = vmatpush1.bf16.msra.mxu0 0
        %3356 = vmatprep.subr.bf16.mxu0 0
        %3357 = vmatpush1.bf16.msra.mxu0 0
        %3358 = vmatprep.subr.bf16.mxu0 0
        %3359 = vmatpush1.bf16.msra.mxu0 0
        %3360 = vmatprep.mubr.bf16.mxu0 0
        %3361 = vmatmul.mubr.bf16.gmra.mrb[0].mxu0 %v2853
        %v3362 = vpop.f32.mrb[0].mxu0
        %v3363 = vadd.f32 %v3320, %v3362
        %v3364 = vpop.f32.mrb[0].mxu0
        %v3365 = vadd.f32 %v3322, %v3364
        %v3366 = vpop.f32.mrb[0].mxu0
        %v3367 = vadd.f32 %v3324, %v3366
        %v3368 = vpop.f32.mrb[0].mxu0
        %v3369 = vadd.f32 %v3326, %v3368
        %3370 = vdwg.mxu0
        %3371 = vmatprep.subr.bf16.mxu0 %v2074
        %3372 = vmatpush1.bf16.msra.mxu0 %v2073
        %3373 = vmatprep.subr.bf16.mxu0 %v2082
        %3374 = vmatpush1.bf16.msra.mxu0 %v2081
        %3375 = vmatprep.subr.bf16.mxu0 %v2090
        %3376 = vmatpush1.bf16.msra.mxu0 %v2089
        %3377 = vmatprep.subr.bf16.mxu0 %v2098
        %3378 = vmatpush1.bf16.msra.mxu0 %v2097
        %3379 = vmatprep.subr.bf16.mxu0 %v2106
        %3380 = vmatpush1.bf16.msra.mxu0 %v2105
        %3381 = vmatprep.subr.bf16.mxu0 %v2114
        %3382 = vmatpush1.bf16.msra.mxu0 %v2113
        %3383 = vmatprep.subr.bf16.mxu0 %v2122
        %3384 = vmatpush1.bf16.msra.mxu0 %v2121
        %3385 = vmatprep.subr.bf16.mxu0 %v2130
        %3386 = vmatpush1.bf16.msra.mxu0 %v2129
        %3387 = vmatprep.subr.bf16.mxu0 %v2138
        %3388 = vmatpush1.bf16.msra.mxu0 %v2137
        %3389 = vmatprep.subr.bf16.mxu0 %v2146
        %3390 = vmatpush1.bf16.msra.mxu0 %v2145
        %3391 = vmatprep.subr.bf16.mxu0 %v2154
        %3392 = vmatpush1.bf16.msra.mxu0 %v2153
        %3393 = vmatprep.subr.bf16.mxu0 %v2162
        %3394 = vmatpush1.bf16.msra.mxu0 %v2161
        %3395 = vmatprep.subr.bf16.mxu0 %v2170
        %3396 = vmatpush1.bf16.msra.mxu0 %v2169
        %3397 = vmatprep.subr.bf16.mxu0 %v2178
        %3398 = vmatpush1.bf16.msra.mxu0 %v2177
        %3399 = vmatprep.subr.bf16.mxu0 %v2186
        %3400 = vmatpush1.bf16.msra.mxu0 %v2185
        %3401 = vmatprep.subr.bf16.mxu0 %v2194
        %3402 = vmatpush1.bf16.msra.mxu0 %v2193
        %3403 = vmatprep.mubr.bf16.mxu0 %v451
        %3404 = vmatmul.mubr.bf16.gmra.mrb[0].mxu0 %v450
        %v3405 = vpop.f32.mrb[0].mxu0
        %v3406 = vadd.f32 %v878, %v3405
        %v3407 = vpop.f32.mrb[0].mxu0
        %v3408 = vadd.f32 %v882, %v3407
        %v3409 = vpop.f32.mrb[0].mxu0
        %v3410 = vadd.f32 %v878, %v3409
        %v3411 = vpop.f32.mrb[0].mxu0
        %v3412 = vadd.f32 %v882, %v3411
        %3413 = vdwg.mxu0
        %3414 = vmatprep.subr.bf16.mxu0 %v2202
        %3415 = vmatpush1.bf16.msra.mxu0 %v2201
        %3416 = vmatprep.subr.bf16.mxu0 %v2210
        %3417 = vmatpush1.bf16.msra.mxu0 %v2209
        %3418 = vmatprep.subr.bf16.mxu0 %v2218
        %3419 = vmatpush1.bf16.msra.mxu0 %v2217
        %3420 = vmatprep.subr.bf16.mxu0 %v2226
        %3421 = vmatpush1.bf16.msra.mxu0 %v2225
        %3422 = vmatprep.subr.bf16.mxu0 %v2234
        %3423 = vmatpush1.bf16.msra.mxu0 %v2233
        %3424 = vmatprep.subr.bf16.mxu0 %v2242
        %3425 = vmatpush1.bf16.msra.mxu0 %v2241
        %3426 = vmatprep.subr.bf16.mxu0 %v2250
        %3427 = vmatpush1.bf16.msra.mxu0 %v2249
        %3428 = vmatprep.subr.bf16.mxu0 %v2258
        %3429 = vmatpush1.bf16.msra.mxu0 %v2257
        %3430 = vmatprep.subr.bf16.mxu0 %v2266
        %3431 = vmatpush1.bf16.msra.mxu0 %v2265
        %3432 = vmatprep.subr.bf16.mxu0 %v2274
        %3433 = vmatpush1.bf16.msra.mxu0 %v2273
        %3434 = vmatprep.subr.bf16.mxu0 %v2282
        %3435 = vmatpush1.bf16.msra.mxu0 %v2281
        %3436 = vmatprep.subr.bf16.mxu0 %v2290
        %3437 = vmatpush1.bf16.msra.mxu0 %v2289
        %3438 = vmatprep.subr.bf16.mxu0 %v2298
        %3439 = vmatpush1.bf16.msra.mxu0 %v2297
        %3440 = vmatprep.subr.bf16.mxu0 %v2306
        %3441 = vmatpush1.bf16.msra.mxu0 %v2305
        %3442 = vmatprep.subr.bf16.mxu0 %v2314
        %3443 = vmatpush1.bf16.msra.mxu0 %v2313
        %3444 = vmatprep.subr.bf16.mxu0 %v2322
        %3445 = vmatpush1.bf16.msra.mxu0 %v2321
        %3446 = vmatprep.mubr.bf16.mxu0 %v453
        %3447 = vmatmul.mubr.bf16.gmra.mrb[0].mxu0 %v452
        %v3448 = vpop.f32.mrb[0].mxu0
        %v3449 = vadd.f32 %v3406, %v3448
        %v3450 = vpop.f32.mrb[0].mxu0
        %v3451 = vadd.f32 %v3408, %v3450
        %v3452 = vpop.f32.mrb[0].mxu0
        %v3453 = vadd.f32 %v3410, %v3452
        %v3454 = vpop.f32.mrb[0].mxu0
        %v3455 = vadd.f32 %v3412, %v3454
        %3456 = vdwg.mxu0
        %3457 = vmatprep.subr.bf16.mxu0 %v2330
        %3458 = vmatpush1.bf16.msra.mxu0 %v2329
        %3459 = vmatprep.subr.bf16.mxu0 %v2338
        %3460 = vmatpush1.bf16.msra.mxu0 %v2337
        %3461 = vmatprep.subr.bf16.mxu0 %v2346
        %3462 = vmatpush1.bf16.msra.mxu0 %v2345
        %3463 = vmatprep.subr.bf16.mxu0 %v2354
        %3464 = vmatpush1.bf16.msra.mxu0 %v2353
        %3465 = vmatprep.subr.bf16.mxu0 %v2362
        %3466 = vmatpush1.bf16.msra.mxu0 %v2361
        %3467 = vmatprep.subr.bf16.mxu0 %v2370
        %3468 = vmatpush1.bf16.msra.mxu0 %v2369
        %3469 = vmatprep.subr.bf16.mxu0 %v2378
        %3470 = vmatpush1.bf16.msra.mxu0 %v2377
        %3471 = vmatprep.subr.bf16.mxu0 %v2386
        %3472 = vmatpush1.bf16.msra.mxu0 %v2385
        %3473 = vmatprep.subr.bf16.mxu0 %v2394
        %3474 = vmatpush1.bf16.msra.mxu0 %v2393
        %3475 = vmatprep.subr.bf16.mxu0 %v2402
        %3476 = vmatpush1.bf16.msra.mxu0 %v2401
        %3477 = vmatprep.subr.bf16.mxu0 %v2410
        %3478 = vmatpush1.bf16.msra.mxu0 %v2409
        %3479 = vmatprep.subr.bf16.mxu0 %v2418
        %3480 = vmatpush1.bf16.msra.mxu0 %v2417
        %3481 = vmatprep.subr.bf16.mxu0 %v2426
        %3482 = vmatpush1.bf16.msra.mxu0 %v2425
        %3483 = vmatprep.subr.bf16.mxu0 %v2434
        %3484 = vmatpush1.bf16.msra.mxu0 %v2433
        %3485 = vmatprep.subr.bf16.mxu0 %v2442
        %3486 = vmatpush1.bf16.msra.mxu0 %v2441
        %3487 = vmatprep.subr.bf16.mxu0 %v2450
        %3488 = vmatpush1.bf16.msra.mxu0 %v2449
        %3489 = vmatprep.mubr.bf16.mxu0 %v455
        %3490 = vmatmul.mubr.bf16.gmra.mrb[0].mxu0 %v454
        %v3491 = vpop.f32.mrb[0].mxu0
        %v3492 = vadd.f32 %v3449, %v3491
        %v3493 = vpop.f32.mrb[0].mxu0
        %v3494 = vadd.f32 %v3451, %v3493
        %v3495 = vpop.f32.mrb[0].mxu0
        %v3496 = vadd.f32 %v3453, %v3495
        %v3497 = vpop.f32.mrb[0].mxu0
        %v3498 = vadd.f32 %v3455, %v3497
        %3499 = vdwg.mxu0
        %3500 = vmatprep.subr.bf16.mxu0 %v2458
        %3501 = vmatpush1.bf16.msra.mxu0 %v2457
        %3502 = vmatprep.subr.bf16.mxu0 0
        %3503 = vmatpush1.bf16.msra.mxu0 0
        %3504 = vmatprep.subr.bf16.mxu0 0
        %3505 = vmatpush1.bf16.msra.mxu0 0
        %3506 = vmatprep.subr.bf16.mxu0 0
        %3507 = vmatpush1.bf16.msra.mxu0 0
        %3508 = vmatprep.subr.bf16.mxu0 0
        %3509 = vmatpush1.bf16.msra.mxu0 0
        %3510 = vmatprep.subr.bf16.mxu0 0
        %3511 = vmatpush1.bf16.msra.mxu0 0
        %3512 = vmatprep.subr.bf16.mxu0 0
        %3513 = vmatpush1.bf16.msra.mxu0 0
        %3514 = vmatprep.subr.bf16.mxu0 0
        %3515 = vmatpush1.bf16.msra.mxu0 0
        %3516 = vmatprep.subr.bf16.mxu0 0
        %3517 = vmatpush1.bf16.msra.mxu0 0
        %3518 = vmatprep.subr.bf16.mxu0 0
        %3519 = vmatpush1.bf16.msra.mxu0 0
        %3520 = vmatprep.subr.bf16.mxu0 0
        %3521 = vmatpush1.bf16.msra.mxu0 0
        %3522 = vmatprep.subr.bf16.mxu0 0
        %3523 = vmatpush1.bf16.msra.mxu0 0
        %3524 = vmatprep.subr.bf16.mxu0 0
        %3525 = vmatpush1.bf16.msra.mxu0 0
        %3526 = vmatprep.subr.bf16.mxu0 0
        %3527 = vmatpush1.bf16.msra.mxu0 0
        %3528 = vmatprep.subr.bf16.mxu0 0
        %3529 = vmatpush1.bf16.msra.mxu0 0
        %3530 = vmatprep.subr.bf16.mxu0 0
        %3531 = vmatpush1.bf16.msra.mxu0 0
        %3532 = vmatprep.mubr.bf16.mxu0 0
        %3533 = vmatmul.mubr.bf16.gmra.mrb[0].mxu0 %v2853
        %v3534 = vpop.f32.mrb[0].mxu0
        %v3535 = vadd.f32 %v3492, %v3534
        %v3536 = vpop.f32.mrb[0].mxu0
        %v3537 = vadd.f32 %v3494, %v3536
        %v3538 = vpop.f32.mrb[0].mxu0
        %v3539 = vadd.f32 %v3496, %v3538
        %v3540 = vpop.f32.mrb[0].mxu0
        %v3541 = vadd.f32 %v3498, %v3540
        %3542 = vdwg.mxu0
        %vm3543 = vcmp.gt.f32.partialorder %v3019, 0.0
        %vm3544 = vcmp.gt.f32.partialorder %v3021, 0.0
        %vm3545 = vcmp.gt.f32.partialorder %v3191, 0.0
        %vm3546 = vcmp.gt.f32.partialorder %v3193, 0.0
        %vm3547 = vcmp.gt.f32.partialorder %v3363, 0.0
        %vm3548 = vcmp.gt.f32.partialorder %v3365, 0.0
        %vm3549 = vcmp.gt.f32.partialorder %v3535, 0.0
        %vm3550 = vcmp.gt.f32.partialorder %v3537, 0.0
        %vm3551 = vcmp.gt.f32.partialorder %v3023, 0.0
        %vm3552 = vcmp.gt.f32.partialorder %v3025, 0.0
        %vm3553 = vcmp.gt.f32.partialorder %v3195, 0.0
        %vm3554 = vcmp.gt.f32.partialorder %v3197, 0.0
        %vm3555 = vcmp.gt.f32.partialorder %v3367, 0.0
        %vm3556 = vcmp.gt.f32.partialorder %v3369, 0.0
        %vm3557 = vcmp.gt.f32.partialorder %v3539, 0.0
        %vm3558 = vcmp.gt.f32.partialorder %v3541, 0.0
        %v3559 = vmul.f32 %v3019, 0.2
        %v3560 = vmul.f32 %v3021, 0.2
        %v3561 = vmul.f32 %v3191, 0.2
        %v3562 = vmul.f32 %v3193, 0.2
        %v3563 = vmul.f32 %v3363, 0.2
        %v3564 = vmul.f32 %v3365, 0.2
        %v3565 = vmul.f32 %v3535, 0.2
        %v3566 = vmul.f32 %v3537, 0.2
        %v3567 = vmul.f32 %v3023, 0.2
        %v3568 = vmul.f32 %v3025, 0.2
        %v3569 = vmul.f32 %v3195, 0.2
        %v3570 = vmul.f32 %v3197, 0.2
        %v3571 = vmul.f32 %v3367, 0.2
        %v3572 = vmul.f32 %v3369, 0.2
        %v3573 = vmul.f32 %v3539, 0.2
        %v3574 = vmul.f32 %v3541, 0.2
        %v3575 = vsel %vm3543, %v3019, %v3559
        %v3576 = vsel %vm3544, %v3021, %v3560
        %v3577 = vsel %vm3545, %v3191, %v3561
        %v3578 = vsel %vm3546, %v3193, %v3562
        %v3579 = vsel %vm3547, %v3363, %v3563
        %v3580 = vsel %vm3548, %v3365, %v3564
        %v3581 = vsel %vm3549, %v3535, %v3565
        %v3582 = vsel %vm3550, %v3537, %v3566
        %v3583 = vsel %vm3551, %v3023, %v3567
        %v3584 = vsel %vm3552, %v3025, %v3568
        %v3585 = vsel %vm3553, %v3195, %v3569
        %v3586 = vsel %vm3554, %v3197, %v3570
        %v3587 = vsel %vm3555, %v3367, %v3571
        %v3588 = vsel %vm3556, %v3369, %v3572
        %v3589 = vsel %vm3557, %v3539, %v3573
        %v3590 = vsel %vm3558, %v3541, %v3574
        %v3591 = vpack.c.bf16 %v3583, %v3575
        %v3592 = vpack.c.bf16 %v3584, %v3576
        %v3593 = vpack.c.bf16 %v3585, %v3577
        %v3594 = vpack.c.bf16 %v3586, %v3578
        %v3595 = vpack.c.bf16 %v3587, %v3579
        %v3596 = vpack.c.bf16 %v3588, %v3580
        %v3597 = vpack.c.bf16 %v3589, %v3581
        %v3598 = vpack.c.bf16 %v3590, %v3582
        %v3599 = vld [vmem:[#allocation7] sm:$0xff]
        %v3600 = vld [vmem:[#allocation7 + $0x8] sm:$0xff]
        %v3601 = vld [vmem:[#allocation7 + $0x10] sm:$0xff]
        %v3602 = vld [vmem:[#allocation7 + $0x18] sm:$0xff]
        %v3603 = vld [vmem:[#allocation7 + $0x20] sm:$0xff]
        %v3604 = vld [vmem:[#allocation7 + $0x28] sm:$0xff]
        %v3605 = vld [vmem:[#allocation7 + $0x30] sm:$0xff]
        %v3606 = vld [vmem:[#allocation7 + $0x38] sm:$0xff]
        %v3607 = vld [vmem:[#allocation7 + $0x40] sm:$0xff]
        %v3608 = vld [vmem:[#allocation7 + $0x48] sm:$0xff]
        %v3609 = vld [vmem:[#allocation7 + $0x50] sm:$0xff]
        %v3610 = vld [vmem:[#allocation7 + $0x58] sm:$0xff]
        %v3611 = vld [vmem:[#allocation7 + $0x60] sm:$0xff]
        %v3612 = vld [vmem:[#allocation7 + $0x68] sm:$0xff]
        %v3613 = vld [vmem:[#allocation7 + $0x70] sm:$0xff]
        %v3614 = vld [vmem:[#allocation7 + $0x78] sm:$0xff]
        %v3615 = vld [vmem:[#allocation7 + $0x80] sm:$0xff]
        %v3616 = vld [vmem:[#allocation7 + $0x88] sm:$0xff]
        %v3617 = vld [vmem:[#allocation7 + $0x90] sm:$0xff]
        %v3618 = vld [vmem:[#allocation7 + $0x98] sm:$0xff]
        %v3619 = vld [vmem:[#allocation7 + $0xa0] sm:$0xff]
        %v3620 = vld [vmem:[#allocation7 + $0xa8] sm:$0xff]
        %v3621 = vld [vmem:[#allocation7 + $0xb0] sm:$0xff]
        %v3622 = vld [vmem:[#allocation7 + $0xb8] sm:$0xff]
        %v3623 = vld [vmem:[#allocation7 + $0xc0] sm:$0xff]
        %v3624 = vld [vmem:[#allocation7 + $0xc8] sm:$0xff]
        %v3625 = vld [vmem:[#allocation7 + $0xd0] sm:$0xff]
        %v3626 = vld [vmem:[#allocation7 + $0xd8] sm:$0xff]
        %v3627 = vld [vmem:[#allocation7 + $0xe0] sm:$0xff]
        %v3628 = vld [vmem:[#allocation7 + $0xe8] sm:$0xff]
        %v3629 = vld [vmem:[#allocation7 + $0xf0] sm:$0xff]
        %v3630 = vld [vmem:[#allocation7 + $0xf8] sm:$0xff]
        %v3631 = vld [vmem:[#allocation7 + $0x100] sm:$0xff]
        %v3632 = vld [vmem:[#allocation7 + $0x108] sm:$0xff]
        %v3633 = vld [vmem:[#allocation7 + $0x110] sm:$0xff]
        %v3634 = vld [vmem:[#allocation7 + $0x118] sm:$0xff]
        %v3635 = vld [vmem:[#allocation7 + $0x120] sm:$0xff]
        %v3636 = vld [vmem:[#allocation7 + $0x128] sm:$0xff]
        %v3637 = vld [vmem:[#allocation7 + $0x130] sm:$0xff]
        %v3638 = vld [vmem:[#allocation7 + $0x138] sm:$0xff]
        %v3639 = vld [vmem:[#allocation7 + $0x140] sm:$0xff]
        %v3640 = vld [vmem:[#allocation7 + $0x148] sm:$0xff]
        %v3641 = vld [vmem:[#allocation7 + $0x150] sm:$0xff]
        %v3642 = vld [vmem:[#allocation7 + $0x158] sm:$0xff]
        %v3643 = vld [vmem:[#allocation7 + $0x160] sm:$0xff]
        %v3644 = vld [vmem:[#allocation7 + $0x168] sm:$0xff]
        %v3645 = vld [vmem:[#allocation7 + $0x170] sm:$0xff]
        %v3646 = vld [vmem:[#allocation7 + $0x178] sm:$0xff]
        %v3647 = vld [vmem:[#allocation7 + $0x180] sm:$0xff]
        %v3648 = vld [vmem:[#allocation7 + $0x188] sm:$0xff]
        %v3649 = vld [vmem:[#allocation7 + $0x190] sm:$0xff]
        %v3650 = vld [vmem:[#allocation7 + $0x198] sm:$0xff]
        %v3651 = vld [vmem:[#allocation7 + $0x1a0] sm:$0xff]
        %v3652 = vld [vmem:[#allocation7 + $0x1a8] sm:$0xff]
        %v3653 = vld [vmem:[#allocation7 + $0x1b0] sm:$0xff]
        %v3654 = vld [vmem:[#allocation7 + $0x1b8] sm:$0xff]
        %v3655 = vld [vmem:[#allocation7 + $0x1c0] sm:$0xff]
        %v3656 = vld [vmem:[#allocation7 + $0x1c8] sm:$0xff]
        %v3657 = vld [vmem:[#allocation7 + $0x1d0] sm:$0xff]
        %v3658 = vld [vmem:[#allocation7 + $0x1d8] sm:$0xff]
        %v3659 = vld [vmem:[#allocation7 + $0x1e0] sm:$0xff]
        %v3660 = vld [vmem:[#allocation7 + $0x1e8] sm:$0xff]
        %v3661 = vld [vmem:[#allocation7 + $0x1f0] sm:$0xff]
        %v3662 = vld [vmem:[#allocation7 + $0x1f8] sm:$0xff]
        %v3663 = vld [vmem:[#allocation7 + $0x200] sm:$0xff]
        %v3664 = vld [vmem:[#allocation7 + $0x208] sm:$0xff]
        %v3665 = vld [vmem:[#allocation7 + $0x210] sm:$0xff]
        %v3666 = vld [vmem:[#allocation7 + $0x218] sm:$0xff]
        %v3667 = vld [vmem:[#allocation7 + $0x220] sm:$0xff]
        %v3668 = vld [vmem:[#allocation7 + $0x228] sm:$0xff]
        %v3669 = vld [vmem:[#allocation7 + $0x230] sm:$0xff]
        %v3670 = vld [vmem:[#allocation7 + $0x238] sm:$0xff]
        %v3671 = vld [vmem:[#allocation7 + $0x240] sm:$0xff]
        %v3672 = vld [vmem:[#allocation7 + $0x248] sm:$0xff]
        %v3673 = vld [vmem:[#allocation7 + $0x250] sm:$0xff]
        %v3674 = vld [vmem:[#allocation7 + $0x258] sm:$0xff]
        %v3675 = vld [vmem:[#allocation7 + $0x260] sm:$0xff]
        %v3676 = vld [vmem:[#allocation7 + $0x268] sm:$0xff]
        %v3677 = vld [vmem:[#allocation7 + $0x270] sm:$0xff]
        %v3678 = vld [vmem:[#allocation7 + $0x278] sm:$0xff]
        %v3679 = vld [vmem:[#allocation7 + $0x280] sm:$0xff]
        %v3680 = vld [vmem:[#allocation7 + $0x288] sm:$0xff]
        %v3681 = vld [vmem:[#allocation7 + $0x290] sm:$0xff]
        %v3682 = vld [vmem:[#allocation7 + $0x298] sm:$0xff]
        %v3683 = vld [vmem:[#allocation7 + $0x2a0] sm:$0xff]
        %v3684 = vld [vmem:[#allocation7 + $0x2a8] sm:$0xff]
        %v3685 = vld [vmem:[#allocation7 + $0x2b0] sm:$0xff]
        %v3686 = vld [vmem:[#allocation7 + $0x2b8] sm:$0xff]
        %v3687 = vld [vmem:[#allocation7 + $0x2c0] sm:$0xff]
        %v3688 = vld [vmem:[#allocation7 + $0x2c8] sm:$0xff]
        %v3689 = vld [vmem:[#allocation7 + $0x2d0] sm:$0xff]
        %v3690 = vld [vmem:[#allocation7 + $0x2d8] sm:$0xff]
        %v3691 = vld [vmem:[#allocation7 + $0x2e0] sm:$0xff]
        %v3692 = vld [vmem:[#allocation7 + $0x2e8] sm:$0xff]
        %v3693 = vld [vmem:[#allocation7 + $0x2f0] sm:$0xff]
        %v3694 = vld [vmem:[#allocation7 + $0x2f8] sm:$0xff]
        %v3695 = vld [vmem:[#allocation7 + $0x300] sm:$0xff]
        %v3696 = vld [vmem:[#allocation7 + $0x308] sm:$0xff]
        %v3697 = vld [vmem:[#allocation7 + $0x310] sm:$0xff]
        %v3698 = vld [vmem:[#allocation7 + $0x318] sm:$0xff]
        %v3699 = vld [vmem:[#allocation7 + $0x320] sm:$0xff]
        %v3700 = vld [vmem:[#allocation7 + $0x328] sm:$0xff]
        %v3701 = vld [vmem:[#allocation7 + $0x330] sm:$0xff]
        %v3702 = vld [vmem:[#allocation7 + $0x338] sm:$0xff]
        %v3703 = vld [vmem:[#allocation7 + $0x340] sm:$0xff]
        %v3704 = vld [vmem:[#allocation7 + $0x348] sm:$0xff]
        %v3705 = vld [vmem:[#allocation7 + $0x350] sm:$0xff]
        %v3706 = vld [vmem:[#allocation7 + $0x358] sm:$0xff]
        %v3707 = vld [vmem:[#allocation7 + $0x360] sm:$0xff]
        %v3708 = vld [vmem:[#allocation7 + $0x368] sm:$0xff]
        %v3709 = vld [vmem:[#allocation7 + $0x370] sm:$0xff]
        %v3710 = vld [vmem:[#allocation7 + $0x378] sm:$0xff]
        %v3711 = vld [vmem:[#allocation7 + $0x380] sm:$0xff]
        %v3712 = vld [vmem:[#allocation7 + $0x388] sm:$0xff]
        %v3713 = vld [vmem:[#allocation7 + $0x390] sm:$0xff]
        %v3714 = vld [vmem:[#allocation7 + $0x398] sm:$0xff]
        %v3715 = vld [vmem:[#allocation7 + $0x3a0] sm:$0xff]
        %v3716 = vld [vmem:[#allocation7 + $0x3a8] sm:$0xff]
        %v3717 = vld [vmem:[#allocation7 + $0x3b0] sm:$0xff]
        %v3718 = vld [vmem:[#allocation7 + $0x3b8] sm:$0xff]
        %v3719 = vld [vmem:[#allocation7 + $0x3c0] sm:$0xff]
        %v3720 = vld [vmem:[#allocation7 + $0x3c8] sm:$0xff]
        %v3721 = vld [vmem:[#allocation7 + $0x3d0] sm:$0xff]
        %v3722 = vld [vmem:[#allocation7 + $0x3d8] sm:$0xff]
        %v3723 = vld [vmem:[#allocation7 + $0x3e0] sm:$0xff]
        %v3724 = vld [vmem:[#allocation7 + $0x3e8] sm:$0xff]
        %v3725 = vld [vmem:[#allocation7 + $0x3f0] sm:$0xff]
        %v3726 = vld [vmem:[#allocation7 + $0x3f8] sm:$0xff]
        %v3727 = vld [vmem:[#allocation7 + $0x400] sm:$0xff]
        %v3728 = vld [vmem:[#allocation7 + $0x408] sm:$0xff]
        %v3729 = vld [vmem:[#allocation7 + $0x410] sm:$0xff]
        %v3730 = vld [vmem:[#allocation7 + $0x418] sm:$0xff]
        %v3731 = vld [vmem:[#allocation7 + $0x420] sm:$0xff]
        %v3732 = vld [vmem:[#allocation7 + $0x428] sm:$0xff]
        %v3733 = vld [vmem:[#allocation7 + $0x430] sm:$0xff]
        %v3734 = vld [vmem:[#allocation7 + $0x438] sm:$0xff]
        %v3735 = vld [vmem:[#allocation7 + $0x440] sm:$0xff]
        %v3736 = vld [vmem:[#allocation7 + $0x448] sm:$0xff]
        %v3737 = vld [vmem:[#allocation7 + $0x450] sm:$0xff]
        %v3738 = vld [vmem:[#allocation7 + $0x458] sm:$0xff]
        %v3739 = vld [vmem:[#allocation7 + $0x460] sm:$0xff]
        %v3740 = vld [vmem:[#allocation7 + $0x468] sm:$0xff]
        %v3741 = vld [vmem:[#allocation7 + $0x470] sm:$0xff]
        %v3742 = vld [vmem:[#allocation7 + $0x478] sm:$0xff]
        %v3743 = vld [vmem:[#allocation7 + $0x480] sm:$0xff]
        %v3744 = vld [vmem:[#allocation7 + $0x488] sm:$0xff]
        %v3745 = vld [vmem:[#allocation7 + $0x490] sm:$0xff]
        %v3746 = vld [vmem:[#allocation7 + $0x498] sm:$0xff]
        %v3747 = vld [vmem:[#allocation7 + $0x4a0] sm:$0xff]
        %v3748 = vld [vmem:[#allocation7 + $0x4a8] sm:$0xff]
        %v3749 = vld [vmem:[#allocation7 + $0x4b0] sm:$0xff]
        %v3750 = vld [vmem:[#allocation7 + $0x4b8] sm:$0xff]
        %v3751 = vld [vmem:[#allocation7 + $0x4c0] sm:$0xff]
        %v3752 = vld [vmem:[#allocation7 + $0x4c8] sm:$0xff]
        %v3753 = vld [vmem:[#allocation7 + $0x4d0] sm:$0xff]
        %v3754 = vld [vmem:[#allocation7 + $0x4d8] sm:$0xff]
        %v3755 = vld [vmem:[#allocation7 + $0x4e0] sm:$0xff]
        %v3756 = vld [vmem:[#allocation7 + $0x4e8] sm:$0xff]
        %v3757 = vld [vmem:[#allocation7 + $0x4f0] sm:$0xff]
        %v3758 = vld [vmem:[#allocation7 + $0x4f8] sm:$0xff]
        %v3759 = vld [vmem:[#allocation7 + $0x500] sm:$0xff]
        %v3760 = vld [vmem:[#allocation7 + $0x508] sm:$0xff]
        %v3761 = vld [vmem:[#allocation7 + $0x510] sm:$0xff]
        %v3762 = vld [vmem:[#allocation7 + $0x518] sm:$0xff]
        %v3763 = vld [vmem:[#allocation7 + $0x520] sm:$0xff]
        %v3764 = vld [vmem:[#allocation7 + $0x528] sm:$0xff]
        %v3765 = vld [vmem:[#allocation7 + $0x530] sm:$0xff]
        %v3766 = vld [vmem:[#allocation7 + $0x538] sm:$0xff]
        %v3767 = vld [vmem:[#allocation7 + $0x540] sm:$0xff]
        %v3768 = vld [vmem:[#allocation7 + $0x548] sm:$0xff]
        %v3769 = vld [vmem:[#allocation7 + $0x550] sm:$0xff]
        %v3770 = vld [vmem:[#allocation7 + $0x558] sm:$0xff]
        %v3771 = vld [vmem:[#allocation7 + $0x560] sm:$0xff]
        %v3772 = vld [vmem:[#allocation7 + $0x568] sm:$0xff]
        %v3773 = vld [vmem:[#allocation7 + $0x570] sm:$0xff]
        %v3774 = vld [vmem:[#allocation7 + $0x578] sm:$0xff]
        %v3775 = vld [vmem:[#allocation7 + $0x580] sm:$0xff]
        %v3776 = vld [vmem:[#allocation7 + $0x588] sm:$0xff]
        %v3777 = vld [vmem:[#allocation7 + $0x590] sm:$0xff]
        %v3778 = vld [vmem:[#allocation7 + $0x598] sm:$0xff]
        %v3779 = vld [vmem:[#allocation7 + $0x5a0] sm:$0xff]
        %v3780 = vld [vmem:[#allocation7 + $0x5a8] sm:$0xff]
        %v3781 = vld [vmem:[#allocation7 + $0x5b0] sm:$0xff]
        %v3782 = vld [vmem:[#allocation7 + $0x5b8] sm:$0xff]
        %v3783 = vld [vmem:[#allocation7 + $0x5c0] sm:$0xff]
        %v3784 = vld [vmem:[#allocation7 + $0x5c8] sm:$0xff]
        %v3785 = vld [vmem:[#allocation7 + $0x5d0] sm:$0xff]
        %v3786 = vld [vmem:[#allocation7 + $0x5d8] sm:$0xff]
        %v3787 = vld [vmem:[#allocation7 + $0x5e0] sm:$0xff]
        %v3788 = vld [vmem:[#allocation7 + $0x5e8] sm:$0xff]
        %v3789 = vld [vmem:[#allocation7 + $0x5f0] sm:$0xff]
        %v3790 = vld [vmem:[#allocation7 + $0x5f8] sm:$0xff]
        %v3791 = vld [vmem:[#allocation7 + $0x600] sm:$0xff]
        %v3792 = vld [vmem:[#allocation7 + $0x608] sm:$0xff]
        %v3793 = vld [vmem:[#allocation7 + $0x610] sm:$0xff]
        %v3794 = vld [vmem:[#allocation7 + $0x618] sm:$0xff]
        %v3795 = vld [vmem:[#allocation7 + $0x620] sm:$0xff]
        %v3796 = vld [vmem:[#allocation7 + $0x628] sm:$0xff]
        %v3797 = vld [vmem:[#allocation7 + $0x630] sm:$0xff]
        %v3798 = vld [vmem:[#allocation7 + $0x638] sm:$0xff]
        %v3799 = vld [vmem:[#allocation7 + $0x640] sm:$0xff]
        %v3800 = vld [vmem:[#allocation7 + $0x648] sm:$0xff]
        %v3801 = vld [vmem:[#allocation7 + $0x650] sm:$0xff]
        %v3802 = vld [vmem:[#allocation7 + $0x658] sm:$0xff]
        %v3803 = vld [vmem:[#allocation7 + $0x660] sm:$0xff]
        %v3804 = vld [vmem:[#allocation7 + $0x668] sm:$0xff]
        %v3805 = vld [vmem:[#allocation7 + $0x670] sm:$0xff]
        %v3806 = vld [vmem:[#allocation7 + $0x678] sm:$0xff]
        %v3807 = vld [vmem:[#allocation7 + $0x680] sm:$0xff]
        %v3808 = vld [vmem:[#allocation7 + $0x688] sm:$0xff]
        %v3809 = vld [vmem:[#allocation7 + $0x690] sm:$0xff]
        %v3810 = vld [vmem:[#allocation7 + $0x698] sm:$0xff]
        %v3811 = vld [vmem:[#allocation7 + $0x6a0] sm:$0xff]
        %v3812 = vld [vmem:[#allocation7 + $0x6a8] sm:$0xff]
        %v3813 = vld [vmem:[#allocation7 + $0x6b0] sm:$0xff]
        %v3814 = vld [vmem:[#allocation7 + $0x6b8] sm:$0xff]
        %v3815 = vld [vmem:[#allocation7 + $0x6c0] sm:$0xff]
        %v3816 = vld [vmem:[#allocation7 + $0x6c8] sm:$0xff]
        %v3817 = vld [vmem:[#allocation7 + $0x6d0] sm:$0xff]
        %v3818 = vld [vmem:[#allocation7 + $0x6d8] sm:$0xff]
        %v3819 = vld [vmem:[#allocation7 + $0x6e0] sm:$0xff]
        %v3820 = vld [vmem:[#allocation7 + $0x6e8] sm:$0xff]
        %v3821 = vld [vmem:[#allocation7 + $0x6f0] sm:$0xff]
        %v3822 = vld [vmem:[#allocation7 + $0x6f8] sm:$0xff]
        %v3823 = vld [vmem:[#allocation7 + $0x700] sm:$0xff]
        %v3824 = vld [vmem:[#allocation7 + $0x708] sm:$0xff]
        %v3825 = vld [vmem:[#allocation7 + $0x710] sm:$0xff]
        %v3826 = vld [vmem:[#allocation7 + $0x718] sm:$0xff]
        %v3827 = vld [vmem:[#allocation7 + $0x720] sm:$0xff]
        %v3828 = vld [vmem:[#allocation7 + $0x728] sm:$0xff]
        %v3829 = vld [vmem:[#allocation7 + $0x730] sm:$0xff]
        %v3830 = vld [vmem:[#allocation7 + $0x738] sm:$0xff]
        %v3831 = vld [vmem:[#allocation7 + $0x740] sm:$0xff]
        %v3832 = vld [vmem:[#allocation7 + $0x748] sm:$0xff]
        %v3833 = vld [vmem:[#allocation7 + $0x750] sm:$0xff]
        %v3834 = vld [vmem:[#allocation7 + $0x758] sm:$0xff]
        %v3835 = vld [vmem:[#allocation7 + $0x760] sm:$0xff]
        %v3836 = vld [vmem:[#allocation7 + $0x768] sm:$0xff]
        %v3837 = vld [vmem:[#allocation7 + $0x770] sm:$0xff]
        %v3838 = vld [vmem:[#allocation7 + $0x778] sm:$0xff]
        %v3839 = vld [vmem:[#allocation7 + $0x780] sm:$0xff]
        %v3840 = vld [vmem:[#allocation7 + $0x788] sm:$0xff]
        %v3841 = vld [vmem:[#allocation7 + $0x790] sm:$0xff]
        %v3842 = vld [vmem:[#allocation7 + $0x798] sm:$0xff]
        %v3843 = vld [vmem:[#allocation7 + $0x7a0] sm:$0xff]
        %v3844 = vld [vmem:[#allocation7 + $0x7a8] sm:$0xff]
        %v3845 = vld [vmem:[#allocation7 + $0x7b0] sm:$0xff]
        %v3846 = vld [vmem:[#allocation7 + $0x7b8] sm:$0xff]
        %v3847 = vld [vmem:[#allocation7 + $0x7c0] sm:$0xff]
        %v3848 = vld [vmem:[#allocation7 + $0x7c8] sm:$0xff]
        %v3849 = vld [vmem:[#allocation7 + $0x7d0] sm:$0xff]
        %v3850 = vld [vmem:[#allocation7 + $0x7d8] sm:$0xff]
        %v3851 = vld [vmem:[#allocation7 + $0x7e0] sm:$0xff]
        %v3852 = vld [vmem:[#allocation7 + $0x7e8] sm:$0xff]
        %v3853 = vld [vmem:[#allocation7 + $0x7f0] sm:$0xff]
        %v3854 = vld [vmem:[#allocation7 + $0x7f8] sm:$0xff]
        %v3855 = vld [vmem:[#allocation8] sm:$0xf]
        %v3857 = vlaneseq
        %v3858 = vshrl.u32 %v3857, 7
        %v3859 = vsub.s32 0, %v3858
        %v3860 = vrot.slane %v3855, %v3859
        %v3861 = vlaneseq
        %v3862 = vshrl.u32 %v3861, 7
        %v3863 = vsub.s32 1, %v3862
        %v3864 = vrot.slane %v3855, %v3863
        %v3865 = vlaneseq
        %v3866 = vshrl.u32 %v3865, 7
        %v3867 = vsub.s32 2, %v3866
        %v3868 = vrot.slane %v3855, %v3867
        %v3869 = vlaneseq
        %v3870 = vshrl.u32 %v3869, 7
        %v3871 = vsub.s32 3, %v3870
        %v3872 = vrot.slane %v3855, %v3871
        %v4133 = vunpack.c.l.b16 %v3599
        %v4134 = vunpack.c.h.b16 %v3599
        %v4135 = vunpack.c.l.b16 %v3600
        %v4136 = vunpack.c.h.b16 %v3600
        %v4137 = vunpack.c.l.b16 %v3601
        %v4138 = vunpack.c.h.b16 %v3601
        %v4139 = vunpack.c.l.b16 %v3602
        %v4140 = vunpack.c.h.b16 %v3602
        %v4141 = vunpack.c.l.b16 %v3603
        %v4142 = vunpack.c.h.b16 %v3603
        %v4143 = vunpack.c.l.b16 %v3604
        %v4144 = vunpack.c.h.b16 %v3604
        %v4145 = vunpack.c.l.b16 %v3605
        %v4146 = vunpack.c.h.b16 %v3605
        %v4147 = vunpack.c.l.b16 %v3606
        %v4148 = vunpack.c.h.b16 %v3606
        %v4149 = vunpack.c.l.b16 %v3607
        %v4150 = vunpack.c.h.b16 %v3607
        %v4151 = vunpack.c.l.b16 %v3608
        %v4152 = vunpack.c.h.b16 %v3608
        %v4153 = vunpack.c.l.b16 %v3609
        %v4154 = vunpack.c.h.b16 %v3609
        %v4155 = vunpack.c.l.b16 %v3610
        %v4156 = vunpack.c.h.b16 %v3610
        %v4157 = vunpack.c.l.b16 %v3611
        %v4158 = vunpack.c.h.b16 %v3611
        %v4159 = vunpack.c.l.b16 %v3612
        %v4160 = vunpack.c.h.b16 %v3612
        %v4161 = vunpack.c.l.b16 %v3613
        %v4162 = vunpack.c.h.b16 %v3613
        %v4163 = vunpack.c.l.b16 %v3614
        %v4164 = vunpack.c.h.b16 %v3614
        %v4165 = vunpack.c.l.b16 %v3615
        %v4166 = vunpack.c.h.b16 %v3615
        %v4167 = vunpack.c.l.b16 %v3616
        %v4168 = vunpack.c.h.b16 %v3616
        %v4169 = vunpack.c.l.b16 %v3617
        %v4170 = vunpack.c.h.b16 %v3617
        %v4171 = vunpack.c.l.b16 %v3618
        %v4172 = vunpack.c.h.b16 %v3618
        %v4173 = vunpack.c.l.b16 %v3619
        %v4174 = vunpack.c.h.b16 %v3619
        %v4175 = vunpack.c.l.b16 %v3620
        %v4176 = vunpack.c.h.b16 %v3620
        %v4177 = vunpack.c.l.b16 %v3621
        %v4178 = vunpack.c.h.b16 %v3621
        %v4179 = vunpack.c.l.b16 %v3622
        %v4180 = vunpack.c.h.b16 %v3622
        %v4181 = vunpack.c.l.b16 %v3623
        %v4182 = vunpack.c.h.b16 %v3623
        %v4183 = vunpack.c.l.b16 %v3624
        %v4184 = vunpack.c.h.b16 %v3624
        %v4185 = vunpack.c.l.b16 %v3625
        %v4186 = vunpack.c.h.b16 %v3625
        %v4187 = vunpack.c.l.b16 %v3626
        %v4188 = vunpack.c.h.b16 %v3626
        %v4189 = vunpack.c.l.b16 %v3627
        %v4190 = vunpack.c.h.b16 %v3627
        %v4191 = vunpack.c.l.b16 %v3628
        %v4192 = vunpack.c.h.b16 %v3628
        %v4193 = vunpack.c.l.b16 %v3629
        %v4194 = vunpack.c.h.b16 %v3629
        %v4195 = vunpack.c.l.b16 %v3630
        %v4196 = vunpack.c.h.b16 %v3630
        %v4197 = vunpack.c.l.b16 %v3631
        %v4198 = vunpack.c.h.b16 %v3631
        %v4199 = vunpack.c.l.b16 %v3632
        %v4200 = vunpack.c.h.b16 %v3632
        %v4201 = vunpack.c.l.b16 %v3633
        %v4202 = vunpack.c.h.b16 %v3633
        %v4203 = vunpack.c.l.b16 %v3634
        %v4204 = vunpack.c.h.b16 %v3634
        %v4205 = vunpack.c.l.b16 %v3635
        %v4206 = vunpack.c.h.b16 %v3635
        %v4207 = vunpack.c.l.b16 %v3636
        %v4208 = vunpack.c.h.b16 %v3636
        %v4209 = vunpack.c.l.b16 %v3637
        %v4210 = vunpack.c.h.b16 %v3637
        %v4211 = vunpack.c.l.b16 %v3638
        %v4212 = vunpack.c.h.b16 %v3638
        %v4213 = vunpack.c.l.b16 %v3639
        %v4214 = vunpack.c.h.b16 %v3639
        %v4215 = vunpack.c.l.b16 %v3640
        %v4216 = vunpack.c.h.b16 %v3640
        %v4217 = vunpack.c.l.b16 %v3641
        %v4218 = vunpack.c.h.b16 %v3641
        %v4219 = vunpack.c.l.b16 %v3642
        %v4220 = vunpack.c.h.b16 %v3642
        %v4221 = vunpack.c.l.b16 %v3643
        %v4222 = vunpack.c.h.b16 %v3643
        %v4223 = vunpack.c.l.b16 %v3644
        %v4224 = vunpack.c.h.b16 %v3644
        %v4225 = vunpack.c.l.b16 %v3645
        %v4226 = vunpack.c.h.b16 %v3645
        %v4227 = vunpack.c.l.b16 %v3646
        %v4228 = vunpack.c.h.b16 %v3646
        %v4229 = vunpack.c.l.b16 %v3647
        %v4230 = vunpack.c.h.b16 %v3647
        %v4231 = vunpack.c.l.b16 %v3648
        %v4232 = vunpack.c.h.b16 %v3648
        %v4233 = vunpack.c.l.b16 %v3649
        %v4234 = vunpack.c.h.b16 %v3649
        %v4235 = vunpack.c.l.b16 %v3650
        %v4236 = vunpack.c.h.b16 %v3650
        %v4237 = vunpack.c.l.b16 %v3651
        %v4238 = vunpack.c.h.b16 %v3651
        %v4239 = vunpack.c.l.b16 %v3652
        %v4240 = vunpack.c.h.b16 %v3652
        %v4241 = vunpack.c.l.b16 %v3653
        %v4242 = vunpack.c.h.b16 %v3653
        %v4243 = vunpack.c.l.b16 %v3654
        %v4244 = vunpack.c.h.b16 %v3654
        %v4245 = vunpack.c.l.b16 %v3655
        %v4246 = vunpack.c.h.b16 %v3655
        %v4247 = vunpack.c.l.b16 %v3656
        %v4248 = vunpack.c.h.b16 %v3656
        %v4249 = vunpack.c.l.b16 %v3657
        %v4250 = vunpack.c.h.b16 %v3657
        %v4251 = vunpack.c.l.b16 %v3658
        %v4252 = vunpack.c.h.b16 %v3658
        %v4253 = vunpack.c.l.b16 %v3659
        %v4254 = vunpack.c.h.b16 %v3659
        %v4255 = vunpack.c.l.b16 %v3660
        %v4256 = vunpack.c.h.b16 %v3660
        %v4257 = vunpack.c.l.b16 %v3661
        %v4258 = vunpack.c.h.b16 %v3661
        %v4259 = vunpack.c.l.b16 %v3662
        %v4260 = vunpack.c.h.b16 %v3662
        %v4261 = vunpack.c.l.b16 %v3663
        %v4262 = vunpack.c.h.b16 %v3663
        %v4263 = vunpack.c.l.b16 %v3664
        %v4264 = vunpack.c.h.b16 %v3664
        %v4265 = vunpack.c.l.b16 %v3665
        %v4266 = vunpack.c.h.b16 %v3665
        %v4267 = vunpack.c.l.b16 %v3666
        %v4268 = vunpack.c.h.b16 %v3666
        %v4269 = vunpack.c.l.b16 %v3667
        %v4270 = vunpack.c.h.b16 %v3667
        %v4271 = vunpack.c.l.b16 %v3668
        %v4272 = vunpack.c.h.b16 %v3668
        %v4273 = vunpack.c.l.b16 %v3669
        %v4274 = vunpack.c.h.b16 %v3669
        %v4275 = vunpack.c.l.b16 %v3670
        %v4276 = vunpack.c.h.b16 %v3670
        %v4277 = vunpack.c.l.b16 %v3671
        %v4278 = vunpack.c.h.b16 %v3671
        %v4279 = vunpack.c.l.b16 %v3672
        %v4280 = vunpack.c.h.b16 %v3672
        %v4281 = vunpack.c.l.b16 %v3673
        %v4282 = vunpack.c.h.b16 %v3673
        %v4283 = vunpack.c.l.b16 %v3674
        %v4284 = vunpack.c.h.b16 %v3674
        %v4285 = vunpack.c.l.b16 %v3675
        %v4286 = vunpack.c.h.b16 %v3675
        %v4287 = vunpack.c.l.b16 %v3676
        %v4288 = vunpack.c.h.b16 %v3676
        %v4289 = vunpack.c.l.b16 %v3677
        %v4290 = vunpack.c.h.b16 %v3677
        %v4291 = vunpack.c.l.b16 %v3678
        %v4292 = vunpack.c.h.b16 %v3678
        %v4293 = vunpack.c.l.b16 %v3679
        %v4294 = vunpack.c.h.b16 %v3679
        %v4295 = vunpack.c.l.b16 %v3680
        %v4296 = vunpack.c.h.b16 %v3680
        %v4297 = vunpack.c.l.b16 %v3681
        %v4298 = vunpack.c.h.b16 %v3681
        %v4299 = vunpack.c.l.b16 %v3682
        %v4300 = vunpack.c.h.b16 %v3682
        %v4301 = vunpack.c.l.b16 %v3683
        %v4302 = vunpack.c.h.b16 %v3683
        %v4303 = vunpack.c.l.b16 %v3684
        %v4304 = vunpack.c.h.b16 %v3684
        %v4305 = vunpack.c.l.b16 %v3685
        %v4306 = vunpack.c.h.b16 %v3685
        %v4307 = vunpack.c.l.b16 %v3686
        %v4308 = vunpack.c.h.b16 %v3686
        %v4309 = vunpack.c.l.b16 %v3687
        %v4310 = vunpack.c.h.b16 %v3687
        %v4311 = vunpack.c.l.b16 %v3688
        %v4312 = vunpack.c.h.b16 %v3688
        %v4313 = vunpack.c.l.b16 %v3689
        %v4314 = vunpack.c.h.b16 %v3689
        %v4315 = vunpack.c.l.b16 %v3690
        %v4316 = vunpack.c.h.b16 %v3690
        %v4317 = vunpack.c.l.b16 %v3691
        %v4318 = vunpack.c.h.b16 %v3691
        %v4319 = vunpack.c.l.b16 %v3692
        %v4320 = vunpack.c.h.b16 %v3692
        %v4321 = vunpack.c.l.b16 %v3693
        %v4322 = vunpack.c.h.b16 %v3693
        %v4323 = vunpack.c.l.b16 %v3694
        %v4324 = vunpack.c.h.b16 %v3694
        %v4325 = vunpack.c.l.b16 %v3695
        %v4326 = vunpack.c.h.b16 %v3695
        %v4327 = vunpack.c.l.b16 %v3696
        %v4328 = vunpack.c.h.b16 %v3696
        %v4329 = vunpack.c.l.b16 %v3697
        %v4330 = vunpack.c.h.b16 %v3697
        %v4331 = vunpack.c.l.b16 %v3698
        %v4332 = vunpack.c.h.b16 %v3698
        %v4333 = vunpack.c.l.b16 %v3699
        %v4334 = vunpack.c.h.b16 %v3699
        %v4335 = vunpack.c.l.b16 %v3700
        %v4336 = vunpack.c.h.b16 %v3700
        %v4337 = vunpack.c.l.b16 %v3701
        %v4338 = vunpack.c.h.b16 %v3701
        %v4339 = vunpack.c.l.b16 %v3702
        %v4340 = vunpack.c.h.b16 %v3702
        %v4341 = vunpack.c.l.b16 %v3703
        %v4342 = vunpack.c.h.b16 %v3703
        %v4343 = vunpack.c.l.b16 %v3704
        %v4344 = vunpack.c.h.b16 %v3704
        %v4345 = vunpack.c.l.b16 %v3705
        %v4346 = vunpack.c.h.b16 %v3705
        %v4347 = vunpack.c.l.b16 %v3706
        %v4348 = vunpack.c.h.b16 %v3706
        %v4349 = vunpack.c.l.b16 %v3707
        %v4350 = vunpack.c.h.b16 %v3707
        %v4351 = vunpack.c.l.b16 %v3708
        %v4352 = vunpack.c.h.b16 %v3708
        %v4353 = vunpack.c.l.b16 %v3709
        %v4354 = vunpack.c.h.b16 %v3709
        %v4355 = vunpack.c.l.b16 %v3710
        %v4356 = vunpack.c.h.b16 %v3710
        %v4357 = vunpack.c.l.b16 %v3711
        %v4358 = vunpack.c.h.b16 %v3711
        %v4359 = vunpack.c.l.b16 %v3712
        %v4360 = vunpack.c.h.b16 %v3712
        %v4361 = vunpack.c.l.b16 %v3713
        %v4362 = vunpack.c.h.b16 %v3713
        %v4363 = vunpack.c.l.b16 %v3714
        %v4364 = vunpack.c.h.b16 %v3714
        %v4365 = vunpack.c.l.b16 %v3715
        %v4366 = vunpack.c.h.b16 %v3715
        %v4367 = vunpack.c.l.b16 %v3716
        %v4368 = vunpack.c.h.b16 %v3716
        %v4369 = vunpack.c.l.b16 %v3717
        %v4370 = vunpack.c.h.b16 %v3717
        %v4371 = vunpack.c.l.b16 %v3718
        %v4372 = vunpack.c.h.b16 %v3718
        %v4373 = vunpack.c.l.b16 %v3719
        %v4374 = vunpack.c.h.b16 %v3719
        %v4375 = vunpack.c.l.b16 %v3720
        %v4376 = vunpack.c.h.b16 %v3720
        %v4377 = vunpack.c.l.b16 %v3721
        %v4378 = vunpack.c.h.b16 %v3721
        %v4379 = vunpack.c.l.b16 %v3722
        %v4380 = vunpack.c.h.b16 %v3722
        %v4381 = vunpack.c.l.b16 %v3723
        %v4382 = vunpack.c.h.b16 %v3723
        %v4383 = vunpack.c.l.b16 %v3724
        %v4384 = vunpack.c.h.b16 %v3724
        %v4385 = vunpack.c.l.b16 %v3725
        %v4386 = vunpack.c.h.b16 %v3725
        %v4387 = vunpack.c.l.b16 %v3726
        %v4388 = vunpack.c.h.b16 %v3726
        %v4389 = vunpack.c.l.b16 %v3727
        %v4390 = vunpack.c.h.b16 %v3727
        %v4391 = vunpack.c.l.b16 %v3728
        %v4392 = vunpack.c.h.b16 %v3728
        %v4393 = vunpack.c.l.b16 %v3729
        %v4394 = vunpack.c.h.b16 %v3729
        %v4395 = vunpack.c.l.b16 %v3730
        %v4396 = vunpack.c.h.b16 %v3730
        %v4397 = vunpack.c.l.b16 %v3731
        %v4398 = vunpack.c.h.b16 %v3731
        %v4399 = vunpack.c.l.b16 %v3732
        %v4400 = vunpack.c.h.b16 %v3732
        %v4401 = vunpack.c.l.b16 %v3733
        %v4402 = vunpack.c.h.b16 %v3733
        %v4403 = vunpack.c.l.b16 %v3734
        %v4404 = vunpack.c.h.b16 %v3734
        %v4405 = vunpack.c.l.b16 %v3735
        %v4406 = vunpack.c.h.b16 %v3735
        %v4407 = vunpack.c.l.b16 %v3736
        %v4408 = vunpack.c.h.b16 %v3736
        %v4409 = vunpack.c.l.b16 %v3737
        %v4410 = vunpack.c.h.b16 %v3737
        %v4411 = vunpack.c.l.b16 %v3738
        %v4412 = vunpack.c.h.b16 %v3738
        %v4413 = vunpack.c.l.b16 %v3739
        %v4414 = vunpack.c.h.b16 %v3739
        %v4415 = vunpack.c.l.b16 %v3740
        %v4416 = vunpack.c.h.b16 %v3740
        %v4417 = vunpack.c.l.b16 %v3741
        %v4418 = vunpack.c.h.b16 %v3741
        %v4419 = vunpack.c.l.b16 %v3742
        %v4420 = vunpack.c.h.b16 %v3742
        %v4421 = vunpack.c.l.b16 %v3743
        %v4422 = vunpack.c.h.b16 %v3743
        %v4423 = vunpack.c.l.b16 %v3744
        %v4424 = vunpack.c.h.b16 %v3744
        %v4425 = vunpack.c.l.b16 %v3745
        %v4426 = vunpack.c.h.b16 %v3745
        %v4427 = vunpack.c.l.b16 %v3746
        %v4428 = vunpack.c.h.b16 %v3746
        %v4429 = vunpack.c.l.b16 %v3747
        %v4430 = vunpack.c.h.b16 %v3747
        %v4431 = vunpack.c.l.b16 %v3748
        %v4432 = vunpack.c.h.b16 %v3748
        %v4433 = vunpack.c.l.b16 %v3749
        %v4434 = vunpack.c.h.b16 %v3749
        %v4435 = vunpack.c.l.b16 %v3750
        %v4436 = vunpack.c.h.b16 %v3750
        %v4437 = vunpack.c.l.b16 %v3751
        %v4438 = vunpack.c.h.b16 %v3751
        %v4439 = vunpack.c.l.b16 %v3752
        %v4440 = vunpack.c.h.b16 %v3752
        %v4441 = vunpack.c.l.b16 %v3753
        %v4442 = vunpack.c.h.b16 %v3753
        %v4443 = vunpack.c.l.b16 %v3754
        %v4444 = vunpack.c.h.b16 %v3754
        %v4445 = vunpack.c.l.b16 %v3755
        %v4446 = vunpack.c.h.b16 %v3755
        %v4447 = vunpack.c.l.b16 %v3756
        %v4448 = vunpack.c.h.b16 %v3756
        %v4449 = vunpack.c.l.b16 %v3757
        %v4450 = vunpack.c.h.b16 %v3757
        %v4451 = vunpack.c.l.b16 %v3758
        %v4452 = vunpack.c.h.b16 %v3758
        %v4453 = vunpack.c.l.b16 %v3759
        %v4454 = vunpack.c.h.b16 %v3759
        %v4455 = vunpack.c.l.b16 %v3760
        %v4456 = vunpack.c.h.b16 %v3760
        %v4457 = vunpack.c.l.b16 %v3761
        %v4458 = vunpack.c.h.b16 %v3761
        %v4459 = vunpack.c.l.b16 %v3762
        %v4460 = vunpack.c.h.b16 %v3762
        %v4461 = vunpack.c.l.b16 %v3763
        %v4462 = vunpack.c.h.b16 %v3763
        %v4463 = vunpack.c.l.b16 %v3764
        %v4464 = vunpack.c.h.b16 %v3764
        %v4465 = vunpack.c.l.b16 %v3765
        %v4466 = vunpack.c.h.b16 %v3765
        %v4467 = vunpack.c.l.b16 %v3766
        %v4468 = vunpack.c.h.b16 %v3766
        %v4469 = vunpack.c.l.b16 %v3767
        %v4470 = vunpack.c.h.b16 %v3767
        %v4471 = vunpack.c.l.b16 %v3768
        %v4472 = vunpack.c.h.b16 %v3768
        %v4473 = vunpack.c.l.b16 %v3769
        %v4474 = vunpack.c.h.b16 %v3769
        %v4475 = vunpack.c.l.b16 %v3770
        %v4476 = vunpack.c.h.b16 %v3770
        %v4477 = vunpack.c.l.b16 %v3771
        %v4478 = vunpack.c.h.b16 %v3771
        %v4479 = vunpack.c.l.b16 %v3772
        %v4480 = vunpack.c.h.b16 %v3772
        %v4481 = vunpack.c.l.b16 %v3773
        %v4482 = vunpack.c.h.b16 %v3773
        %v4483 = vunpack.c.l.b16 %v3774
        %v4484 = vunpack.c.h.b16 %v3774
        %v4485 = vunpack.c.l.b16 %v3775
        %v4486 = vunpack.c.h.b16 %v3775
        %v4487 = vunpack.c.l.b16 %v3776
        %v4488 = vunpack.c.h.b16 %v3776
        %v4489 = vunpack.c.l.b16 %v3777
        %v4490 = vunpack.c.h.b16 %v3777
        %v4491 = vunpack.c.l.b16 %v3778
        %v4492 = vunpack.c.h.b16 %v3778
        %v4493 = vunpack.c.l.b16 %v3779
        %v4494 = vunpack.c.h.b16 %v3779
        %v4495 = vunpack.c.l.b16 %v3780
        %v4496 = vunpack.c.h.b16 %v3780
        %v4497 = vunpack.c.l.b16 %v3781
        %v4498 = vunpack.c.h.b16 %v3781
        %v4499 = vunpack.c.l.b16 %v3782
        %v4500 = vunpack.c.h.b16 %v3782
        %v4501 = vunpack.c.l.b16 %v3783
        %v4502 = vunpack.c.h.b16 %v3783
        %v4503 = vunpack.c.l.b16 %v3784
        %v4504 = vunpack.c.h.b16 %v3784
        %v4505 = vunpack.c.l.b16 %v3785
        %v4506 = vunpack.c.h.b16 %v3785
        %v4507 = vunpack.c.l.b16 %v3786
        %v4508 = vunpack.c.h.b16 %v3786
        %v4509 = vunpack.c.l.b16 %v3787
        %v4510 = vunpack.c.h.b16 %v3787
        %v4511 = vunpack.c.l.b16 %v3788
        %v4512 = vunpack.c.h.b16 %v3788
        %v4513 = vunpack.c.l.b16 %v3789
        %v4514 = vunpack.c.h.b16 %v3789
        %v4515 = vunpack.c.l.b16 %v3790
        %v4516 = vunpack.c.h.b16 %v3790
        %v4517 = vunpack.c.l.b16 %v3791
        %v4518 = vunpack.c.h.b16 %v3791
        %v4519 = vunpack.c.l.b16 %v3792
        %v4520 = vunpack.c.h.b16 %v3792
        %v4521 = vunpack.c.l.b16 %v3793
        %v4522 = vunpack.c.h.b16 %v3793
        %v4523 = vunpack.c.l.b16 %v3794
        %v4524 = vunpack.c.h.b16 %v3794
        %v4525 = vunpack.c.l.b16 %v3795
        %v4526 = vunpack.c.h.b16 %v3795
        %v4527 = vunpack.c.l.b16 %v3796
        %v4528 = vunpack.c.h.b16 %v3796
        %v4529 = vunpack.c.l.b16 %v3797
        %v4530 = vunpack.c.h.b16 %v3797
        %v4531 = vunpack.c.l.b16 %v3798
        %v4532 = vunpack.c.h.b16 %v3798
        %v4533 = vunpack.c.l.b16 %v3799
        %v4534 = vunpack.c.h.b16 %v3799
        %v4535 = vunpack.c.l.b16 %v3800
        %v4536 = vunpack.c.h.b16 %v3800
        %v4537 = vunpack.c.l.b16 %v3801
        %v4538 = vunpack.c.h.b16 %v3801
        %v4539 = vunpack.c.l.b16 %v3802
        %v4540 = vunpack.c.h.b16 %v3802
        %v4541 = vunpack.c.l.b16 %v3803
        %v4542 = vunpack.c.h.b16 %v3803
        %v4543 = vunpack.c.l.b16 %v3804
        %v4544 = vunpack.c.h.b16 %v3804
        %v4545 = vunpack.c.l.b16 %v3805
        %v4546 = vunpack.c.h.b16 %v3805
        %v4547 = vunpack.c.l.b16 %v3806
        %v4548 = vunpack.c.h.b16 %v3806
        %v4549 = vunpack.c.l.b16 %v3807
        %v4550 = vunpack.c.h.b16 %v3807
        %v4551 = vunpack.c.l.b16 %v3808
        %v4552 = vunpack.c.h.b16 %v3808
        %v4553 = vunpack.c.l.b16 %v3809
        %v4554 = vunpack.c.h.b16 %v3809
        %v4555 = vunpack.c.l.b16 %v3810
        %v4556 = vunpack.c.h.b16 %v3810
        %v4557 = vunpack.c.l.b16 %v3811
        %v4558 = vunpack.c.h.b16 %v3811
        %v4559 = vunpack.c.l.b16 %v3812
        %v4560 = vunpack.c.h.b16 %v3812
        %v4561 = vunpack.c.l.b16 %v3813
        %v4562 = vunpack.c.h.b16 %v3813
        %v4563 = vunpack.c.l.b16 %v3814
        %v4564 = vunpack.c.h.b16 %v3814
        %v4565 = vunpack.c.l.b16 %v3815
        %v4566 = vunpack.c.h.b16 %v3815
        %v4567 = vunpack.c.l.b16 %v3816
        %v4568 = vunpack.c.h.b16 %v3816
        %v4569 = vunpack.c.l.b16 %v3817
        %v4570 = vunpack.c.h.b16 %v3817
        %v4571 = vunpack.c.l.b16 %v3818
        %v4572 = vunpack.c.h.b16 %v3818
        %v4573 = vunpack.c.l.b16 %v3819
        %v4574 = vunpack.c.h.b16 %v3819
        %v4575 = vunpack.c.l.b16 %v3820
        %v4576 = vunpack.c.h.b16 %v3820
        %v4577 = vunpack.c.l.b16 %v3821
        %v4578 = vunpack.c.h.b16 %v3821
        %v4579 = vunpack.c.l.b16 %v3822
        %v4580 = vunpack.c.h.b16 %v3822
        %v4581 = vunpack.c.l.b16 %v3823
        %v4582 = vunpack.c.h.b16 %v3823
        %v4583 = vunpack.c.l.b16 %v3824
        %v4584 = vunpack.c.h.b16 %v3824
        %v4585 = vunpack.c.l.b16 %v3825
        %v4586 = vunpack.c.h.b16 %v3825
        %v4587 = vunpack.c.l.b16 %v3826
        %v4588 = vunpack.c.h.b16 %v3826
        %v4589 = vunpack.c.l.b16 %v3827
        %v4590 = vunpack.c.h.b16 %v3827
        %v4591 = vunpack.c.l.b16 %v3828
        %v4592 = vunpack.c.h.b16 %v3828
        %v4593 = vunpack.c.l.b16 %v3829
        %v4594 = vunpack.c.h.b16 %v3829
        %v4595 = vunpack.c.l.b16 %v3830
        %v4596 = vunpack.c.h.b16 %v3830
        %v4597 = vunpack.c.l.b16 %v3831
        %v4598 = vunpack.c.h.b16 %v3831
        %v4599 = vunpack.c.l.b16 %v3832
        %v4600 = vunpack.c.h.b16 %v3832
        %v4601 = vunpack.c.l.b16 %v3833
        %v4602 = vunpack.c.h.b16 %v3833
        %v4603 = vunpack.c.l.b16 %v3834
        %v4604 = vunpack.c.h.b16 %v3834
        %v4605 = vunpack.c.l.b16 %v3835
        %v4606 = vunpack.c.h.b16 %v3835
        %v4607 = vunpack.c.l.b16 %v3836
        %v4608 = vunpack.c.h.b16 %v3836
        %v4609 = vunpack.c.l.b16 %v3837
        %v4610 = vunpack.c.h.b16 %v3837
        %v4611 = vunpack.c.l.b16 %v3838
        %v4612 = vunpack.c.h.b16 %v3838
        %v4613 = vunpack.c.l.b16 %v3839
        %v4614 = vunpack.c.h.b16 %v3839
        %v4615 = vunpack.c.l.b16 %v3840
        %v4616 = vunpack.c.h.b16 %v3840
        %v4617 = vunpack.c.l.b16 %v3841
        %v4618 = vunpack.c.h.b16 %v3841
        %v4619 = vunpack.c.l.b16 %v3842
        %v4620 = vunpack.c.h.b16 %v3842
        %v4621 = vunpack.c.l.b16 %v3843
        %v4622 = vunpack.c.h.b16 %v3843
        %v4623 = vunpack.c.l.b16 %v3844
        %v4624 = vunpack.c.h.b16 %v3844
        %v4625 = vunpack.c.l.b16 %v3845
        %v4626 = vunpack.c.h.b16 %v3845
        %v4627 = vunpack.c.l.b16 %v3846
        %v4628 = vunpack.c.h.b16 %v3846
        %v4629 = vunpack.c.l.b16 %v3847
        %v4630 = vunpack.c.h.b16 %v3847
        %v4631 = vunpack.c.l.b16 %v3848
        %v4632 = vunpack.c.h.b16 %v3848
        %v4633 = vunpack.c.l.b16 %v3849
        %v4634 = vunpack.c.h.b16 %v3849
        %v4635 = vunpack.c.l.b16 %v3850
        %v4636 = vunpack.c.h.b16 %v3850
        %v4637 = vunpack.c.l.b16 %v3851
        %v4638 = vunpack.c.h.b16 %v3851
        %v4639 = vunpack.c.l.b16 %v3852
        %v4640 = vunpack.c.h.b16 %v3852
        %v4641 = vunpack.c.l.b16 %v3853
        %v4642 = vunpack.c.h.b16 %v3853
        %v4643 = vunpack.c.l.b16 %v3854
        %v4644 = vunpack.c.h.b16 %v3854
        %v4645 = vpack.c.b16 %v4137, %v4133
        %v4646 = vpack.c.b16 %v4138, %v4134
        %v4647 = vpack.c.b16 %v4139, %v4135
        %v4648 = vpack.c.b16 %v4140, %v4136
        %v4649 = vpack.c.b16 %v4145, %v4141
        %v4650 = vpack.c.b16 %v4146, %v4142
        %v4651 = vpack.c.b16 %v4147, %v4143
        %v4652 = vpack.c.b16 %v4148, %v4144
        %v4653 = vpack.c.b16 %v4153, %v4149
        %v4654 = vpack.c.b16 %v4154, %v4150
        %v4655 = vpack.c.b16 %v4155, %v4151
        %v4656 = vpack.c.b16 %v4156, %v4152
        %v4657 = vpack.c.b16 %v4161, %v4157
        %v4658 = vpack.c.b16 %v4162, %v4158
        %v4659 = vpack.c.b16 %v4163, %v4159
        %v4660 = vpack.c.b16 %v4164, %v4160
        %v4661 = vpack.c.b16 %v4169, %v4165
        %v4662 = vpack.c.b16 %v4170, %v4166
        %v4663 = vpack.c.b16 %v4171, %v4167
        %v4664 = vpack.c.b16 %v4172, %v4168
        %v4665 = vpack.c.b16 %v4177, %v4173
        %v4666 = vpack.c.b16 %v4178, %v4174
        %v4667 = vpack.c.b16 %v4179, %v4175
        %v4668 = vpack.c.b16 %v4180, %v4176
        %v4669 = vpack.c.b16 %v4185, %v4181
        %v4670 = vpack.c.b16 %v4186, %v4182
        %v4671 = vpack.c.b16 %v4187, %v4183
        %v4672 = vpack.c.b16 %v4188, %v4184
        %v4673 = vpack.c.b16 %v4193, %v4189
        %v4674 = vpack.c.b16 %v4194, %v4190
        %v4675 = vpack.c.b16 %v4195, %v4191
        %v4676 = vpack.c.b16 %v4196, %v4192
        %v4677 = vpack.c.b16 %v4201, %v4197
        %v4678 = vpack.c.b16 %v4202, %v4198
        %v4679 = vpack.c.b16 %v4203, %v4199
        %v4680 = vpack.c.b16 %v4204, %v4200
        %v4681 = vpack.c.b16 %v4209, %v4205
        %v4682 = vpack.c.b16 %v4210, %v4206
        %v4683 = vpack.c.b16 %v4211, %v4207
        %v4684 = vpack.c.b16 %v4212, %v4208
        %v4685 = vpack.c.b16 %v4217, %v4213
        %v4686 = vpack.c.b16 %v4218, %v4214
        %v4687 = vpack.c.b16 %v4219, %v4215
        %v4688 = vpack.c.b16 %v4220, %v4216
        %v4689 = vpack.c.b16 %v4225, %v4221
        %v4690 = vpack.c.b16 %v4226, %v4222
        %v4691 = vpack.c.b16 %v4227, %v4223
        %v4692 = vpack.c.b16 %v4228, %v4224
        %v4693 = vpack.c.b16 %v4233, %v4229
        %v4694 = vpack.c.b16 %v4234, %v4230
        %v4695 = vpack.c.b16 %v4235, %v4231
        %v4696 = vpack.c.b16 %v4236, %v4232
        %v4697 = vpack.c.b16 %v4241, %v4237
        %v4698 = vpack.c.b16 %v4242, %v4238
        %v4699 = vpack.c.b16 %v4243, %v4239
        %v4700 = vpack.c.b16 %v4244, %v4240
        %v4701 = vpack.c.b16 %v4249, %v4245
        %v4702 = vpack.c.b16 %v4250, %v4246
        %v4703 = vpack.c.b16 %v4251, %v4247
        %v4704 = vpack.c.b16 %v4252, %v4248
        %v4705 = vpack.c.b16 %v4257, %v4253
        %v4706 = vpack.c.b16 %v4258, %v4254
        %v4707 = vpack.c.b16 %v4259, %v4255
        %v4708 = vpack.c.b16 %v4260, %v4256
        %v4709 = vpack.c.b16 %v4265, %v4261
        %v4710 = vpack.c.b16 %v4266, %v4262
        %v4711 = vpack.c.b16 %v4267, %v4263
        %v4712 = vpack.c.b16 %v4268, %v4264
        %v4713 = vpack.c.b16 %v4273, %v4269
        %v4714 = vpack.c.b16 %v4274, %v4270
        %v4715 = vpack.c.b16 %v4275, %v4271
        %v4716 = vpack.c.b16 %v4276, %v4272
        %v4717 = vpack.c.b16 %v4281, %v4277
        %v4718 = vpack.c.b16 %v4282, %v4278
        %v4719 = vpack.c.b16 %v4283, %v4279
        %v4720 = vpack.c.b16 %v4284, %v4280
        %v4721 = vpack.c.b16 %v4289, %v4285
        %v4722 = vpack.c.b16 %v4290, %v4286
        %v4723 = vpack.c.b16 %v4291, %v4287
        %v4724 = vpack.c.b16 %v4292, %v4288
        %v4725 = vpack.c.b16 %v4297, %v4293
        %v4726 = vpack.c.b16 %v4298, %v4294
        %v4727 = vpack.c.b16 %v4299, %v4295
        %v4728 = vpack.c.b16 %v4300, %v4296
        %v4729 = vpack.c.b16 %v4305, %v4301
        %v4730 = vpack.c.b16 %v4306, %v4302
        %v4731 = vpack.c.b16 %v4307, %v4303
        %v4732 = vpack.c.b16 %v4308, %v4304
        %v4733 = vpack.c.b16 %v4313, %v4309
        %v4734 = vpack.c.b16 %v4314, %v4310
        %v4735 = vpack.c.b16 %v4315, %v4311
        %v4736 = vpack.c.b16 %v4316, %v4312
        %v4737 = vpack.c.b16 %v4321, %v4317
        %v4738 = vpack.c.b16 %v4322, %v4318
        %v4739 = vpack.c.b16 %v4323, %v4319
        %v4740 = vpack.c.b16 %v4324, %v4320
        %v4741 = vpack.c.b16 %v4329, %v4325
        %v4742 = vpack.c.b16 %v4330, %v4326
        %v4743 = vpack.c.b16 %v4331, %v4327
        %v4744 = vpack.c.b16 %v4332, %v4328
        %v4745 = vpack.c.b16 %v4337, %v4333
        %v4746 = vpack.c.b16 %v4338, %v4334
        %v4747 = vpack.c.b16 %v4339, %v4335
        %v4748 = vpack.c.b16 %v4340, %v4336
        %v4749 = vpack.c.b16 %v4345, %v4341
        %v4750 = vpack.c.b16 %v4346, %v4342
        %v4751 = vpack.c.b16 %v4347, %v4343
        %v4752 = vpack.c.b16 %v4348, %v4344
        %v4753 = vpack.c.b16 %v4353, %v4349
        %v4754 = vpack.c.b16 %v4354, %v4350
        %v4755 = vpack.c.b16 %v4355, %v4351
        %v4756 = vpack.c.b16 %v4356, %v4352
        %v4757 = vpack.c.b16 %v4361, %v4357
        %v4758 = vpack.c.b16 %v4362, %v4358
        %v4759 = vpack.c.b16 %v4363, %v4359
        %v4760 = vpack.c.b16 %v4364, %v4360
        %v4761 = vpack.c.b16 %v4369, %v4365
        %v4762 = vpack.c.b16 %v4370, %v4366
        %v4763 = vpack.c.b16 %v4371, %v4367
        %v4764 = vpack.c.b16 %v4372, %v4368
        %v4765 = vpack.c.b16 %v4377, %v4373
        %v4766 = vpack.c.b16 %v4378, %v4374
        %v4767 = vpack.c.b16 %v4379, %v4375
        %v4768 = vpack.c.b16 %v4380, %v4376
        %v4769 = vpack.c.b16 %v4385, %v4381
        %v4770 = vpack.c.b16 %v4386, %v4382
        %v4771 = vpack.c.b16 %v4387, %v4383
        %v4772 = vpack.c.b16 %v4388, %v4384
        %v4773 = vpack.c.b16 %v4393, %v4389
        %v4774 = vpack.c.b16 %v4394, %v4390
        %v4775 = vpack.c.b16 %v4395, %v4391
        %v4776 = vpack.c.b16 %v4396, %v4392
        %v4777 = vpack.c.b16 %v4401, %v4397
        %v4778 = vpack.c.b16 %v4402, %v4398
        %v4779 = vpack.c.b16 %v4403, %v4399
        %v4780 = vpack.c.b16 %v4404, %v4400
        %v4781 = vpack.c.b16 %v4409, %v4405
        %v4782 = vpack.c.b16 %v4410, %v4406
        %v4783 = vpack.c.b16 %v4411, %v4407
        %v4784 = vpack.c.b16 %v4412, %v4408
        %v4785 = vpack.c.b16 %v4417, %v4413
        %v4786 = vpack.c.b16 %v4418, %v4414
        %v4787 = vpack.c.b16 %v4419, %v4415
        %v4788 = vpack.c.b16 %v4420, %v4416
        %v4789 = vpack.c.b16 %v4425, %v4421
        %v4790 = vpack.c.b16 %v4426, %v4422
        %v4791 = vpack.c.b16 %v4427, %v4423
        %v4792 = vpack.c.b16 %v4428, %v4424
        %v4793 = vpack.c.b16 %v4433, %v4429
        %v4794 = vpack.c.b16 %v4434, %v4430
        %v4795 = vpack.c.b16 %v4435, %v4431
        %v4796 = vpack.c.b16 %v4436, %v4432
        %v4797 = vpack.c.b16 %v4441, %v4437
        %v4798 = vpack.c.b16 %v4442, %v4438
        %v4799 = vpack.c.b16 %v4443, %v4439
        %v4800 = vpack.c.b16 %v4444, %v4440
        %v4801 = vpack.c.b16 %v4449, %v4445
        %v4802 = vpack.c.b16 %v4450, %v4446
        %v4803 = vpack.c.b16 %v4451, %v4447
        %v4804 = vpack.c.b16 %v4452, %v4448
        %v4805 = vpack.c.b16 %v4457, %v4453
        %v4806 = vpack.c.b16 %v4458, %v4454
        %v4807 = vpack.c.b16 %v4459, %v4455
        %v4808 = vpack.c.b16 %v4460, %v4456
        %v4809 = vpack.c.b16 %v4465, %v4461
        %v4810 = vpack.c.b16 %v4466, %v4462
        %v4811 = vpack.c.b16 %v4467, %v4463
        %v4812 = vpack.c.b16 %v4468, %v4464
        %v4813 = vpack.c.b16 %v4473, %v4469
        %v4814 = vpack.c.b16 %v4474, %v4470
        %v4815 = vpack.c.b16 %v4475, %v4471
        %v4816 = vpack.c.b16 %v4476, %v4472
        %v4817 = vpack.c.b16 %v4481, %v4477
        %v4818 = vpack.c.b16 %v4482, %v4478
        %v4819 = vpack.c.b16 %v4483, %v4479
        %v4820 = vpack.c.b16 %v4484, %v4480
        %v4821 = vpack.c.b16 %v4489, %v4485
        %v4822 = vpack.c.b16 %v4490, %v4486
        %v4823 = vpack.c.b16 %v4491, %v4487
        %v4824 = vpack.c.b16 %v4492, %v4488
        %v4825 = vpack.c.b16 %v4497, %v4493
        %v4826 = vpack.c.b16 %v4498, %v4494
        %v4827 = vpack.c.b16 %v4499, %v4495
        %v4828 = vpack.c.b16 %v4500, %v4496
        %v4829 = vpack.c.b16 %v4505, %v4501
        %v4830 = vpack.c.b16 %v4506, %v4502
        %v4831 = vpack.c.b16 %v4507, %v4503
        %v4832 = vpack.c.b16 %v4508, %v4504
        %v4833 = vpack.c.b16 %v4513, %v4509
        %v4834 = vpack.c.b16 %v4514, %v4510
        %v4835 = vpack.c.b16 %v4515, %v4511
        %v4836 = vpack.c.b16 %v4516, %v4512
        %v4837 = vpack.c.b16 %v4521, %v4517
        %v4838 = vpack.c.b16 %v4522, %v4518
        %v4839 = vpack.c.b16 %v4523, %v4519
        %v4840 = vpack.c.b16 %v4524, %v4520
        %v4841 = vpack.c.b16 %v4529, %v4525
        %v4842 = vpack.c.b16 %v4530, %v4526
        %v4843 = vpack.c.b16 %v4531, %v4527
        %v4844 = vpack.c.b16 %v4532, %v4528
        %v4845 = vpack.c.b16 %v4537, %v4533
        %v4846 = vpack.c.b16 %v4538, %v4534
        %v4847 = vpack.c.b16 %v4539, %v4535
        %v4848 = vpack.c.b16 %v4540, %v4536
        %v4849 = vpack.c.b16 %v4545, %v4541
        %v4850 = vpack.c.b16 %v4546, %v4542
        %v4851 = vpack.c.b16 %v4547, %v4543
        %v4852 = vpack.c.b16 %v4548, %v4544
        %v4853 = vpack.c.b16 %v4553, %v4549
        %v4854 = vpack.c.b16 %v4554, %v4550
        %v4855 = vpack.c.b16 %v4555, %v4551
        %v4856 = vpack.c.b16 %v4556, %v4552
        %v4857 = vpack.c.b16 %v4561, %v4557
        %v4858 = vpack.c.b16 %v4562, %v4558
        %v4859 = vpack.c.b16 %v4563, %v4559
        %v4860 = vpack.c.b16 %v4564, %v4560
        %v4861 = vpack.c.b16 %v4569, %v4565
        %v4862 = vpack.c.b16 %v4570, %v4566
        %v4863 = vpack.c.b16 %v4571, %v4567
        %v4864 = vpack.c.b16 %v4572, %v4568
        %v4865 = vpack.c.b16 %v4577, %v4573
        %v4866 = vpack.c.b16 %v4578, %v4574
        %v4867 = vpack.c.b16 %v4579, %v4575
        %v4868 = vpack.c.b16 %v4580, %v4576
        %v4869 = vpack.c.b16 %v4585, %v4581
        %v4870 = vpack.c.b16 %v4586, %v4582
        %v4871 = vpack.c.b16 %v4587, %v4583
        %v4872 = vpack.c.b16 %v4588, %v4584
        %v4873 = vpack.c.b16 %v4593, %v4589
        %v4874 = vpack.c.b16 %v4594, %v4590
        %v4875 = vpack.c.b16 %v4595, %v4591
        %v4876 = vpack.c.b16 %v4596, %v4592
        %v4877 = vpack.c.b16 %v4601, %v4597
        %v4878 = vpack.c.b16 %v4602, %v4598
        %v4879 = vpack.c.b16 %v4603, %v4599
        %v4880 = vpack.c.b16 %v4604, %v4600
        %v4881 = vpack.c.b16 %v4609, %v4605
        %v4882 = vpack.c.b16 %v4610, %v4606
        %v4883 = vpack.c.b16 %v4611, %v4607
        %v4884 = vpack.c.b16 %v4612, %v4608
        %v4885 = vpack.c.b16 %v4617, %v4613
        %v4886 = vpack.c.b16 %v4618, %v4614
        %v4887 = vpack.c.b16 %v4619, %v4615
        %v4888 = vpack.c.b16 %v4620, %v4616
        %v4889 = vpack.c.b16 %v4625, %v4621
        %v4890 = vpack.c.b16 %v4626, %v4622
        %v4891 = vpack.c.b16 %v4627, %v4623
        %v4892 = vpack.c.b16 %v4628, %v4624
        %v4893 = vpack.c.b16 %v4633, %v4629
        %v4894 = vpack.c.b16 %v4634, %v4630
        %v4895 = vpack.c.b16 %v4635, %v4631
        %v4896 = vpack.c.b16 %v4636, %v4632
        %v4897 = vpack.c.b16 %v4641, %v4637
        %v4898 = vpack.c.b16 %v4642, %v4638
        %v4899 = vpack.c.b16 %v4643, %v4639
        %v4900 = vpack.c.b16 %v4644, %v4640
        %5157 = vmatprep.subr.bf16.mxu0 %v4646
        %5158 = vmatpush1.bf16.msra.mxu0 %v4645
        %5159 = vmatprep.subr.bf16.mxu0 %v4650
        %5160 = vmatpush1.bf16.msra.mxu0 %v4649
        %5161 = vmatprep.subr.bf16.mxu0 %v4654
        %5162 = vmatpush1.bf16.msra.mxu0 %v4653
        %5163 = vmatprep.subr.bf16.mxu0 %v4658
        %5164 = vmatpush1.bf16.msra.mxu0 %v4657
        %5165 = vmatprep.subr.bf16.mxu0 %v4662
        %5166 = vmatpush1.bf16.msra.mxu0 %v4661
        %5167 = vmatprep.subr.bf16.mxu0 %v4666
        %5168 = vmatpush1.bf16.msra.mxu0 %v4665
        %5169 = vmatprep.subr.bf16.mxu0 %v4670
        %5170 = vmatpush1.bf16.msra.mxu0 %v4669
        %5171 = vmatprep.subr.bf16.mxu0 %v4674
        %5172 = vmatpush1.bf16.msra.mxu0 %v4673
        %5173 = vmatprep.subr.bf16.mxu0 %v4678
        %5174 = vmatpush1.bf16.msra.mxu0 %v4677
        %5175 = vmatprep.subr.bf16.mxu0 %v4682
        %5176 = vmatpush1.bf16.msra.mxu0 %v4681
        %5177 = vmatprep.subr.bf16.mxu0 %v4686
        %5178 = vmatpush1.bf16.msra.mxu0 %v4685
        %5179 = vmatprep.subr.bf16.mxu0 %v4690
        %5180 = vmatpush1.bf16.msra.mxu0 %v4689
        %5181 = vmatprep.subr.bf16.mxu0 %v4694
        %5182 = vmatpush1.bf16.msra.mxu0 %v4693
        %5183 = vmatprep.subr.bf16.mxu0 %v4698
        %5184 = vmatpush1.bf16.msra.mxu0 %v4697
        %5185 = vmatprep.subr.bf16.mxu0 %v4702
        %5186 = vmatpush1.bf16.msra.mxu0 %v4701
        %5187 = vmatprep.subr.bf16.mxu0 %v4706
        %5188 = vmatpush1.bf16.msra.mxu0 %v4705
        %5189 = vmatprep.mubr.bf16.mxu0 %v3592
        %5190 = vmatmul.mubr.bf16.gmra.mrb[0].mxu0 %v3591
        %v5191 = vpop.f32.mrb[0].mxu0
        %v5192 = vadd.f32 %v3860, %v5191
        %v5193 = vpop.f32.mrb[0].mxu0
        %v5194 = vadd.f32 %v3864, %v5193
        %v5195 = vpop.f32.mrb[0].mxu0
        %v5196 = vadd.f32 %v3860, %v5195
        %v5197 = vpop.f32.mrb[0].mxu0
        %v5198 = vadd.f32 %v3864, %v5197
        %5199 = vdwg.mxu0
        %5200 = vmatprep.subr.bf16.mxu0 %v4710
        %5201 = vmatpush1.bf16.msra.mxu0 %v4709
        %5202 = vmatprep.subr.bf16.mxu0 %v4714
        %5203 = vmatpush1.bf16.msra.mxu0 %v4713
        %5204 = vmatprep.subr.bf16.mxu0 %v4718
        %5205 = vmatpush1.bf16.msra.mxu0 %v4717
        %5206 = vmatprep.subr.bf16.mxu0 %v4722
        %5207 = vmatpush1.bf16.msra.mxu0 %v4721
        %5208 = vmatprep.subr.bf16.mxu0 %v4726
        %5209 = vmatpush1.bf16.msra.mxu0 %v4725
        %5210 = vmatprep.subr.bf16.mxu0 %v4730
        %5211 = vmatpush1.bf16.msra.mxu0 %v4729
        %5212 = vmatprep.subr.bf16.mxu0 %v4734
        %5213 = vmatpush1.bf16.msra.mxu0 %v4733
        %5214 = vmatprep.subr.bf16.mxu0 %v4738
        %5215 = vmatpush1.bf16.msra.mxu0 %v4737
        %5216 = vmatprep.subr.bf16.mxu0 %v4742
        %5217 = vmatpush1.bf16.msra.mxu0 %v4741
        %5218 = vmatprep.subr.bf16.mxu0 %v4746
        %5219 = vmatpush1.bf16.msra.mxu0 %v4745
        %5220 = vmatprep.subr.bf16.mxu0 %v4750
        %5221 = vmatpush1.bf16.msra.mxu0 %v4749
        %5222 = vmatprep.subr.bf16.mxu0 %v4754
        %5223 = vmatpush1.bf16.msra.mxu0 %v4753
        %5224 = vmatprep.subr.bf16.mxu0 %v4758
        %5225 = vmatpush1.bf16.msra.mxu0 %v4757
        %5226 = vmatprep.subr.bf16.mxu0 %v4762
        %5227 = vmatpush1.bf16.msra.mxu0 %v4761
        %5228 = vmatprep.subr.bf16.mxu0 %v4766
        %5229 = vmatpush1.bf16.msra.mxu0 %v4765
        %5230 = vmatprep.subr.bf16.mxu0 %v4770
        %5231 = vmatpush1.bf16.msra.mxu0 %v4769
        %5232 = vmatprep.mubr.bf16.mxu0 %v3594
        %5233 = vmatmul.mubr.bf16.gmra.mrb[0].mxu0 %v3593
        %v5234 = vpop.f32.mrb[0].mxu0
        %v5235 = vadd.f32 %v5192, %v5234
        %v5236 = vpop.f32.mrb[0].mxu0
        %v5237 = vadd.f32 %v5194, %v5236
        %v5238 = vpop.f32.mrb[0].mxu0
        %v5239 = vadd.f32 %v5196, %v5238
        %v5240 = vpop.f32.mrb[0].mxu0
        %v5241 = vadd.f32 %v5198, %v5240
        %5242 = vdwg.mxu0
        %5243 = vmatprep.subr.bf16.mxu0 %v4774
        %5244 = vmatpush1.bf16.msra.mxu0 %v4773
        %5245 = vmatprep.subr.bf16.mxu0 %v4778
        %5246 = vmatpush1.bf16.msra.mxu0 %v4777
        %5247 = vmatprep.subr.bf16.mxu0 %v4782
        %5248 = vmatpush1.bf16.msra.mxu0 %v4781
        %5249 = vmatprep.subr.bf16.mxu0 %v4786
        %5250 = vmatpush1.bf16.msra.mxu0 %v4785
        %5251 = vmatprep.subr.bf16.mxu0 %v4790
        %5252 = vmatpush1.bf16.msra.mxu0 %v4789
        %5253 = vmatprep.subr.bf16.mxu0 %v4794
        %5254 = vmatpush1.bf16.msra.mxu0 %v4793
        %5255 = vmatprep.subr.bf16.mxu0 %v4798
        %5256 = vmatpush1.bf16.msra.mxu0 %v4797
        %5257 = vmatprep.subr.bf16.mxu0 %v4802
        %5258 = vmatpush1.bf16.msra.mxu0 %v4801
        %5259 = vmatprep.subr.bf16.mxu0 %v4806
        %5260 = vmatpush1.bf16.msra.mxu0 %v4805
        %5261 = vmatprep.subr.bf16.mxu0 %v4810
        %5262 = vmatpush1.bf16.msra.mxu0 %v4809
        %5263 = vmatprep.subr.bf16.mxu0 %v4814
        %5264 = vmatpush1.bf16.msra.mxu0 %v4813
        %5265 = vmatprep.subr.bf16.mxu0 %v4818
        %5266 = vmatpush1.bf16.msra.mxu0 %v4817
        %5267 = vmatprep.subr.bf16.mxu0 %v4822
        %5268 = vmatpush1.bf16.msra.mxu0 %v4821
        %5269 = vmatprep.subr.bf16.mxu0 %v4826
        %5270 = vmatpush1.bf16.msra.mxu0 %v4825
        %5271 = vmatprep.subr.bf16.mxu0 %v4830
        %5272 = vmatpush1.bf16.msra.mxu0 %v4829
        %5273 = vmatprep.subr.bf16.mxu0 %v4834
        %5274 = vmatpush1.bf16.msra.mxu0 %v4833
        %5275 = vmatprep.mubr.bf16.mxu0 %v3596
        %5276 = vmatmul.mubr.bf16.gmra.mrb[0].mxu0 %v3595
        %v5277 = vpop.f32.mrb[0].mxu0
        %v5278 = vadd.f32 %v5235, %v5277
        %v5279 = vpop.f32.mrb[0].mxu0
        %v5280 = vadd.f32 %v5237, %v5279
        %v5281 = vpop.f32.mrb[0].mxu0
        %v5282 = vadd.f32 %v5239, %v5281
        %v5283 = vpop.f32.mrb[0].mxu0
        %v5284 = vadd.f32 %v5241, %v5283
        %5285 = vdwg.mxu0
        %5286 = vmatprep.subr.bf16.mxu0 %v4838
        %5287 = vmatpush1.bf16.msra.mxu0 %v4837
        %5288 = vmatprep.subr.bf16.mxu0 %v4842
        %5289 = vmatpush1.bf16.msra.mxu0 %v4841
        %5290 = vmatprep.subr.bf16.mxu0 %v4846
        %5291 = vmatpush1.bf16.msra.mxu0 %v4845
        %5292 = vmatprep.subr.bf16.mxu0 %v4850
        %5293 = vmatpush1.bf16.msra.mxu0 %v4849
        %5294 = vmatprep.subr.bf16.mxu0 %v4854
        %5295 = vmatpush1.bf16.msra.mxu0 %v4853
        %5296 = vmatprep.subr.bf16.mxu0 %v4858
        %5297 = vmatpush1.bf16.msra.mxu0 %v4857
        %5298 = vmatprep.subr.bf16.mxu0 %v4862
        %5299 = vmatpush1.bf16.msra.mxu0 %v4861
        %5300 = vmatprep.subr.bf16.mxu0 %v4866
        %5301 = vmatpush1.bf16.msra.mxu0 %v4865
        %5302 = vmatprep.subr.bf16.mxu0 %v4870
        %5303 = vmatpush1.bf16.msra.mxu0 %v4869
        %5304 = vmatprep.subr.bf16.mxu0 %v4874
        %5305 = vmatpush1.bf16.msra.mxu0 %v4873
        %5306 = vmatprep.subr.bf16.mxu0 %v4878
        %5307 = vmatpush1.bf16.msra.mxu0 %v4877
        %5308 = vmatprep.subr.bf16.mxu0 %v4882
        %5309 = vmatpush1.bf16.msra.mxu0 %v4881
        %5310 = vmatprep.subr.bf16.mxu0 %v4886
        %5311 = vmatpush1.bf16.msra.mxu0 %v4885
        %5312 = vmatprep.subr.bf16.mxu0 %v4890
        %5313 = vmatpush1.bf16.msra.mxu0 %v4889
        %5314 = vmatprep.subr.bf16.mxu0 %v4894
        %5315 = vmatpush1.bf16.msra.mxu0 %v4893
        %5316 = vmatprep.subr.bf16.mxu0 %v4898
        %5317 = vmatpush1.bf16.msra.mxu0 %v4897
        %5318 = vmatprep.mubr.bf16.mxu0 %v3598
        %5319 = vmatmul.mubr.bf16.gmra.mrb[0].mxu0 %v3597
        %v5320 = vpop.f32.mrb[0].mxu0
        %v5321 = vadd.f32 %v5278, %v5320
        %v5322 = vpop.f32.mrb[0].mxu0
        %v5323 = vadd.f32 %v5280, %v5322
        %v5324 = vpop.f32.mrb[0].mxu0
        %v5325 = vadd.f32 %v5282, %v5324
        %v5326 = vpop.f32.mrb[0].mxu0
        %v5327 = vadd.f32 %v5284, %v5326
        %5328 = vdwg.mxu0
        %5329 = vmatprep.subr.bf16.mxu0 %v4648
        %5330 = vmatpush1.bf16.msra.mxu0 %v4647
        %5331 = vmatprep.subr.bf16.mxu0 %v4652
        %5332 = vmatpush1.bf16.msra.mxu0 %v4651
        %5333 = vmatprep.subr.bf16.mxu0 %v4656
        %5334 = vmatpush1.bf16.msra.mxu0 %v4655
        %5335 = vmatprep.subr.bf16.mxu0 %v4660
        %5336 = vmatpush1.bf16.msra.mxu0 %v4659
        %5337 = vmatprep.subr.bf16.mxu0 %v4664
        %5338 = vmatpush1.bf16.msra.mxu0 %v4663
        %5339 = vmatprep.subr.bf16.mxu0 %v4668
        %5340 = vmatpush1.bf16.msra.mxu0 %v4667
        %5341 = vmatprep.subr.bf16.mxu0 %v4672
        %5342 = vmatpush1.bf16.msra.mxu0 %v4671
        %5343 = vmatprep.subr.bf16.mxu0 %v4676
        %5344 = vmatpush1.bf16.msra.mxu0 %v4675
        %5345 = vmatprep.subr.bf16.mxu0 %v4680
        %5346 = vmatpush1.bf16.msra.mxu0 %v4679
        %5347 = vmatprep.subr.bf16.mxu0 %v4684
        %5348 = vmatpush1.bf16.msra.mxu0 %v4683
        %5349 = vmatprep.subr.bf16.mxu0 %v4688
        %5350 = vmatpush1.bf16.msra.mxu0 %v4687
        %5351 = vmatprep.subr.bf16.mxu0 %v4692
        %5352 = vmatpush1.bf16.msra.mxu0 %v4691
        %5353 = vmatprep.subr.bf16.mxu0 %v4696
        %5354 = vmatpush1.bf16.msra.mxu0 %v4695
        %5355 = vmatprep.subr.bf16.mxu0 %v4700
        %5356 = vmatpush1.bf16.msra.mxu0 %v4699
        %5357 = vmatprep.subr.bf16.mxu0 %v4704
        %5358 = vmatpush1.bf16.msra.mxu0 %v4703
        %5359 = vmatprep.subr.bf16.mxu0 %v4708
        %5360 = vmatpush1.bf16.msra.mxu0 %v4707
        %5361 = vmatprep.mubr.bf16.mxu0 %v3592
        %5362 = vmatmul.mubr.bf16.gmra.mrb[0].mxu0 %v3591
        %v5363 = vpop.f32.mrb[0].mxu0
        %v5364 = vadd.f32 %v3868, %v5363
        %v5365 = vpop.f32.mrb[0].mxu0
        %v5366 = vadd.f32 %v3872, %v5365
        %v5367 = vpop.f32.mrb[0].mxu0
        %v5368 = vadd.f32 %v3868, %v5367
        %v5369 = vpop.f32.mrb[0].mxu0
        %v5370 = vadd.f32 %v3872, %v5369
        %5371 = vdwg.mxu0
        %5372 = vmatprep.subr.bf16.mxu0 %v4712
        %5373 = vmatpush1.bf16.msra.mxu0 %v4711
        %5374 = vmatprep.subr.bf16.mxu0 %v4716
        %5375 = vmatpush1.bf16.msra.mxu0 %v4715
        %5376 = vmatprep.subr.bf16.mxu0 %v4720
        %5377 = vmatpush1.bf16.msra.mxu0 %v4719
        %5378 = vmatprep.subr.bf16.mxu0 %v4724
        %5379 = vmatpush1.bf16.msra.mxu0 %v4723
        %5380 = vmatprep.subr.bf16.mxu0 %v4728
        %5381 = vmatpush1.bf16.msra.mxu0 %v4727
        %5382 = vmatprep.subr.bf16.mxu0 %v4732
        %5383 = vmatpush1.bf16.msra.mxu0 %v4731
        %5384 = vmatprep.subr.bf16.mxu0 %v4736
        %5385 = vmatpush1.bf16.msra.mxu0 %v4735
        %5386 = vmatprep.subr.bf16.mxu0 %v4740
        %5387 = vmatpush1.bf16.msra.mxu0 %v4739
        %5388 = vmatprep.subr.bf16.mxu0 %v4744
        %5389 = vmatpush1.bf16.msra.mxu0 %v4743
        %5390 = vmatprep.subr.bf16.mxu0 %v4748
        %5391 = vmatpush1.bf16.msra.mxu0 %v4747
        %5392 = vmatprep.subr.bf16.mxu0 %v4752
        %5393 = vmatpush1.bf16.msra.mxu0 %v4751
        %5394 = vmatprep.subr.bf16.mxu0 %v4756
        %5395 = vmatpush1.bf16.msra.mxu0 %v4755
        %5396 = vmatprep.subr.bf16.mxu0 %v4760
        %5397 = vmatpush1.bf16.msra.mxu0 %v4759
        %5398 = vmatprep.subr.bf16.mxu0 %v4764
        %5399 = vmatpush1.bf16.msra.mxu0 %v4763
        %5400 = vmatprep.subr.bf16.mxu0 %v4768
        %5401 = vmatpush1.bf16.msra.mxu0 %v4767
        %5402 = vmatprep.subr.bf16.mxu0 %v4772
        %5403 = vmatpush1.bf16.msra.mxu0 %v4771
        %5404 = vmatprep.mubr.bf16.mxu0 %v3594
        %5405 = vmatmul.mubr.bf16.gmra.mrb[0].mxu0 %v3593
        %v5406 = vpop.f32.mrb[0].mxu0
        %v5407 = vadd.f32 %v5364, %v5406
        %v5408 = vpop.f32.mrb[0].mxu0
        %v5409 = vadd.f32 %v5366, %v5408
        %v5410 = vpop.f32.mrb[0].mxu0
        %v5411 = vadd.f32 %v5368, %v5410
        %v5412 = vpop.f32.mrb[0].mxu0
        %v5413 = vadd.f32 %v5370, %v5412
        %5414 = vdwg.mxu0
        %5415 = vmatprep.subr.bf16.mxu0 %v4776
        %5416 = vmatpush1.bf16.msra.mxu0 %v4775
        %5417 = vmatprep.subr.bf16.mxu0 %v4780
        %5418 = vmatpush1.bf16.msra.mxu0 %v4779
        %5419 = vmatprep.subr.bf16.mxu0 %v4784
        %5420 = vmatpush1.bf16.msra.mxu0 %v4783
        %5421 = vmatprep.subr.bf16.mxu0 %v4788
        %5422 = vmatpush1.bf16.msra.mxu0 %v4787
        %5423 = vmatprep.subr.bf16.mxu0 %v4792
        %5424 = vmatpush1.bf16.msra.mxu0 %v4791
        %5425 = vmatprep.subr.bf16.mxu0 %v4796
        %5426 = vmatpush1.bf16.msra.mxu0 %v4795
        %5427 = vmatprep.subr.bf16.mxu0 %v4800
        %5428 = vmatpush1.bf16.msra.mxu0 %v4799
        %5429 = vmatprep.subr.bf16.mxu0 %v4804
        %5430 = vmatpush1.bf16.msra.mxu0 %v4803
        %5431 = vmatprep.subr.bf16.mxu0 %v4808
        %5432 = vmatpush1.bf16.msra.mxu0 %v4807
        %5433 = vmatprep.subr.bf16.mxu0 %v4812
        %5434 = vmatpush1.bf16.msra.mxu0 %v4811
        %5435 = vmatprep.subr.bf16.mxu0 %v4816
        %5436 = vmatpush1.bf16.msra.mxu0 %v4815
        %5437 = vmatprep.subr.bf16.mxu0 %v4820
        %5438 = vmatpush1.bf16.msra.mxu0 %v4819
        %5439 = vmatprep.subr.bf16.mxu0 %v4824
        %5440 = vmatpush1.bf16.msra.mxu0 %v4823
        %5441 = vmatprep.subr.bf16.mxu0 %v4828
        %5442 = vmatpush1.bf16.msra.mxu0 %v4827
        %5443 = vmatprep.subr.bf16.mxu0 %v4832
        %5444 = vmatpush1.bf16.msra.mxu0 %v4831
        %5445 = vmatprep.subr.bf16.mxu0 %v4836
        %5446 = vmatpush1.bf16.msra.mxu0 %v4835
        %5447 = vmatprep.mubr.bf16.mxu0 %v3596
        %5448 = vmatmul.mubr.bf16.gmra.mrb[0].mxu0 %v3595
        %v5449 = vpop.f32.mrb[0].mxu0
        %v5450 = vadd.f32 %v5407, %v5449
        %v5451 = vpop.f32.mrb[0].mxu0
        %v5452 = vadd.f32 %v5409, %v5451
        %v5453 = vpop.f32.mrb[0].mxu0
        %v5454 = vadd.f32 %v5411, %v5453
        %v5455 = vpop.f32.mrb[0].mxu0
        %v5456 = vadd.f32 %v5413, %v5455
        %5457 = vdwg.mxu0
        %5458 = vmatprep.subr.bf16.mxu0 %v4840
        %5459 = vmatpush1.bf16.msra.mxu0 %v4839
        %5460 = vmatprep.subr.bf16.mxu0 %v4844
        %5461 = vmatpush1.bf16.msra.mxu0 %v4843
        %5462 = vmatprep.subr.bf16.mxu0 %v4848
        %5463 = vmatpush1.bf16.msra.mxu0 %v4847
        %5464 = vmatprep.subr.bf16.mxu0 %v4852
        %5465 = vmatpush1.bf16.msra.mxu0 %v4851
        %5466 = vmatprep.subr.bf16.mxu0 %v4856
        %5467 = vmatpush1.bf16.msra.mxu0 %v4855
        %5468 = vmatprep.subr.bf16.mxu0 %v4860
        %5469 = vmatpush1.bf16.msra.mxu0 %v4859
        %5470 = vmatprep.subr.bf16.mxu0 %v4864
        %5471 = vmatpush1.bf16.msra.mxu0 %v4863
        %5472 = vmatprep.subr.bf16.mxu0 %v4868
        %5473 = vmatpush1.bf16.msra.mxu0 %v4867
        %5474 = vmatprep.subr.bf16.mxu0 %v4872
        %5475 = vmatpush1.bf16.msra.mxu0 %v4871
        %5476 = vmatprep.subr.bf16.mxu0 %v4876
        %5477 = vmatpush1.bf16.msra.mxu0 %v4875
        %5478 = vmatprep.subr.bf16.mxu0 %v4880
        %5479 = vmatpush1.bf16.msra.mxu0 %v4879
        %5480 = vmatprep.subr.bf16.mxu0 %v4884
        %5481 = vmatpush1.bf16.msra.mxu0 %v4883
        %5482 = vmatprep.subr.bf16.mxu0 %v4888
        %5483 = vmatpush1.bf16.msra.mxu0 %v4887
        %5484 = vmatprep.subr.bf16.mxu0 %v4892
        %5485 = vmatpush1.bf16.msra.mxu0 %v4891
        %5486 = vmatprep.subr.bf16.mxu0 %v4896
        %5487 = vmatpush1.bf16.msra.mxu0 %v4895
        %5488 = vmatprep.subr.bf16.mxu0 %v4900
        %5489 = vmatpush1.bf16.msra.mxu0 %v4899
        %5490 = vmatprep.mubr.bf16.mxu0 %v3598
        %5491 = vmatmul.mubr.bf16.gmra.mrb[0].mxu0 %v3597
        %v5492 = vpop.f32.mrb[0].mxu0
        %v5493 = vadd.f32 %v5450, %v5492
        %v5494 = vpop.f32.mrb[0].mxu0
        %v5495 = vadd.f32 %v5452, %v5494
        %v5496 = vpop.f32.mrb[0].mxu0
        %v5497 = vadd.f32 %v5454, %v5496
        %v5498 = vpop.f32.mrb[0].mxu0
        %v5499 = vadd.f32 %v5456, %v5498
        %5500 = vdwg.mxu0
        %vm5501 = vcmp.gt.f32.partialorder %v5321, 0.0
        %vm5502 = vcmp.gt.f32.partialorder %v5323, 0.0
        %vm5503 = vcmp.gt.f32.partialorder %v5493, 0.0
        %vm5504 = vcmp.gt.f32.partialorder %v5495, 0.0
        %vm5505 = vcmp.gt.f32.partialorder %v5325, 0.0
        %vm5506 = vcmp.gt.f32.partialorder %v5327, 0.0
        %vm5507 = vcmp.gt.f32.partialorder %v5497, 0.0
        %vm5508 = vcmp.gt.f32.partialorder %v5499, 0.0
        %v5509 = vmul.f32 %v5321, 0.2
        %v5510 = vmul.f32 %v5323, 0.2
        %v5511 = vmul.f32 %v5493, 0.2
        %v5512 = vmul.f32 %v5495, 0.2
        %v5513 = vmul.f32 %v5325, 0.2
        %v5514 = vmul.f32 %v5327, 0.2
        %v5515 = vmul.f32 %v5497, 0.2
        %v5516 = vmul.f32 %v5499, 0.2
        %v5517 = vsel %vm5501, %v5321, %v5509
        %v5518 = vsel %vm5502, %v5323, %v5510
        %v5519 = vsel %vm5503, %v5493, %v5511
        %v5520 = vsel %vm5504, %v5495, %v5512
        %v5521 = vsel %vm5505, %v5325, %v5513
        %v5522 = vsel %vm5506, %v5327, %v5514
        %v5523 = vsel %vm5507, %v5497, %v5515
        %v5524 = vsel %vm5508, %v5499, %v5516
        %v5525 = vpack.c.bf16 %v5521, %v5517
        %v5526 = vpack.c.bf16 %v5522, %v5518
        %v5527 = vpack.c.bf16 %v5523, %v5519
        %v5528 = vpack.c.bf16 %v5524, %v5520
        %v5529 = vld [vmem:[#allocation10] sm:$0xff]
        %v5530 = vld [vmem:[#allocation10 + $0x8] sm:$0xff]
        %v5531 = vld [vmem:[#allocation10 + $0x10] sm:$0xff]
        %v5532 = vld [vmem:[#allocation10 + $0x18] sm:$0xff]
        %v5533 = vld [vmem:[#allocation10 + $0x20] sm:$0xff]
        %v5534 = vld [vmem:[#allocation10 + $0x28] sm:$0xff]
        %v5535 = vld [vmem:[#allocation10 + $0x30] sm:$0xff]
        %v5536 = vld [vmem:[#allocation10 + $0x38] sm:$0xff]
        %v5537 = vld [vmem:[#allocation10 + $0x40] sm:$0xff]
        %v5538 = vld [vmem:[#allocation10 + $0x48] sm:$0xff]
        %v5539 = vld [vmem:[#allocation10 + $0x50] sm:$0xff]
        %v5540 = vld [vmem:[#allocation10 + $0x58] sm:$0xff]
        %v5541 = vld [vmem:[#allocation10 + $0x60] sm:$0xff]
        %v5542 = vld [vmem:[#allocation10 + $0x68] sm:$0xff]
        %v5543 = vld [vmem:[#allocation10 + $0x70] sm:$0xff]
        %v5544 = vld [vmem:[#allocation10 + $0x78] sm:$0xff]
        %v5545 = vld [vmem:[#allocation10 + $0x80] sm:$0xff]
        %v5546 = vld [vmem:[#allocation10 + $0x88] sm:$0xff]
        %v5547 = vld [vmem:[#allocation10 + $0x90] sm:$0xff]
        %v5548 = vld [vmem:[#allocation10 + $0x98] sm:$0xff]
        %v5549 = vld [vmem:[#allocation10 + $0xa0] sm:$0xff]
        %v5550 = vld [vmem:[#allocation10 + $0xa8] sm:$0xff]
        %v5551 = vld [vmem:[#allocation10 + $0xb0] sm:$0xff]
        %v5552 = vld [vmem:[#allocation10 + $0xb8] sm:$0xff]
        %v5553 = vld [vmem:[#allocation10 + $0xc0] sm:$0xff]
        %v5554 = vld [vmem:[#allocation10 + $0xc8] sm:$0xff]
        %v5555 = vld [vmem:[#allocation10 + $0xd0] sm:$0xff]
        %v5556 = vld [vmem:[#allocation10 + $0xd8] sm:$0xff]
        %v5557 = vld [vmem:[#allocation10 + $0xe0] sm:$0xff]
        %v5558 = vld [vmem:[#allocation10 + $0xe8] sm:$0xff]
        %v5559 = vld [vmem:[#allocation10 + $0xf0] sm:$0xff]
        %v5560 = vld [vmem:[#allocation10 + $0xf8] sm:$0xff]
        %v5561 = vld [vmem:[#allocation10 + $0x100] sm:$0xff]
        %v5562 = vld [vmem:[#allocation10 + $0x108] sm:$0xff]
        %v5563 = vld [vmem:[#allocation10 + $0x110] sm:$0xff]
        %v5564 = vld [vmem:[#allocation10 + $0x118] sm:$0xff]
        %v5565 = vld [vmem:[#allocation10 + $0x120] sm:$0xff]
        %v5566 = vld [vmem:[#allocation10 + $0x128] sm:$0xff]
        %v5567 = vld [vmem:[#allocation10 + $0x130] sm:$0xff]
        %v5568 = vld [vmem:[#allocation10 + $0x138] sm:$0xff]
        %v5569 = vld [vmem:[#allocation10 + $0x140] sm:$0xff]
        %v5570 = vld [vmem:[#allocation10 + $0x148] sm:$0xff]
        %v5571 = vld [vmem:[#allocation10 + $0x150] sm:$0xff]
        %v5572 = vld [vmem:[#allocation10 + $0x158] sm:$0xff]
        %v5573 = vld [vmem:[#allocation10 + $0x160] sm:$0xff]
        %v5574 = vld [vmem:[#allocation10 + $0x168] sm:$0xff]
        %v5575 = vld [vmem:[#allocation10 + $0x170] sm:$0xff]
        %v5576 = vld [vmem:[#allocation10 + $0x178] sm:$0xff]
        %v5577 = vld [vmem:[#allocation10 + $0x180] sm:$0xff]
        %v5578 = vld [vmem:[#allocation10 + $0x188] sm:$0xff]
        %v5579 = vld [vmem:[#allocation10 + $0x190] sm:$0xff]
        %v5580 = vld [vmem:[#allocation10 + $0x198] sm:$0xff]
        %v5581 = vld [vmem:[#allocation10 + $0x1a0] sm:$0xff]
        %v5582 = vld [vmem:[#allocation10 + $0x1a8] sm:$0xff]
        %v5583 = vld [vmem:[#allocation10 + $0x1b0] sm:$0xff]
        %v5584 = vld [vmem:[#allocation10 + $0x1b8] sm:$0xff]
        %v5585 = vld [vmem:[#allocation10 + $0x1c0] sm:$0xff]
        %v5586 = vld [vmem:[#allocation10 + $0x1c8] sm:$0xff]
        %v5587 = vld [vmem:[#allocation10 + $0x1d0] sm:$0xff]
        %v5588 = vld [vmem:[#allocation10 + $0x1d8] sm:$0xff]
        %v5589 = vld [vmem:[#allocation10 + $0x1e0] sm:$0xff]
        %v5590 = vld [vmem:[#allocation10 + $0x1e8] sm:$0xff]
        %v5591 = vld [vmem:[#allocation10 + $0x1f0] sm:$0xff]
        %v5592 = vld [vmem:[#allocation10 + $0x1f8] sm:$0xff]
        %v5593 = vld [vmem:[#allocation11] sm:$0x3]
        %v5595 = vlaneseq
        %v5596 = vshrl.u32 %v5595, 7
        %v5597 = vsub.s32 0, %v5596
        %v5598 = vrot.slane %v5593, %v5597
        %v5599 = vlaneseq
        %v5600 = vshrl.u32 %v5599, 7
        %v5601 = vsub.s32 1, %v5600
        %v5602 = vrot.slane %v5593, %v5601
        %v5669 = vunpack.c.l.b16 %v5529
        %v5670 = vunpack.c.h.b16 %v5529
        %v5671 = vunpack.c.l.b16 %v5530
        %v5672 = vunpack.c.h.b16 %v5530
        %v5673 = vunpack.c.l.b16 %v5531
        %v5674 = vunpack.c.h.b16 %v5531
        %v5675 = vunpack.c.l.b16 %v5532
        %v5676 = vunpack.c.h.b16 %v5532
        %v5677 = vunpack.c.l.b16 %v5533
        %v5678 = vunpack.c.h.b16 %v5533
        %v5679 = vunpack.c.l.b16 %v5534
        %v5680 = vunpack.c.h.b16 %v5534
        %v5681 = vunpack.c.l.b16 %v5535
        %v5682 = vunpack.c.h.b16 %v5535
        %v5683 = vunpack.c.l.b16 %v5536
        %v5684 = vunpack.c.h.b16 %v5536
        %v5685 = vunpack.c.l.b16 %v5537
        %v5686 = vunpack.c.h.b16 %v5537
        %v5687 = vunpack.c.l.b16 %v5538
        %v5688 = vunpack.c.h.b16 %v5538
        %v5689 = vunpack.c.l.b16 %v5539
        %v5690 = vunpack.c.h.b16 %v5539
        %v5691 = vunpack.c.l.b16 %v5540
        %v5692 = vunpack.c.h.b16 %v5540
        %v5693 = vunpack.c.l.b16 %v5541
        %v5694 = vunpack.c.h.b16 %v5541
        %v5695 = vunpack.c.l.b16 %v5542
        %v5696 = vunpack.c.h.b16 %v5542
        %v5697 = vunpack.c.l.b16 %v5543
        %v5698 = vunpack.c.h.b16 %v5543
        %v5699 = vunpack.c.l.b16 %v5544
        %v5700 = vunpack.c.h.b16 %v5544
        %v5701 = vunpack.c.l.b16 %v5545
        %v5702 = vunpack.c.h.b16 %v5545
        %v5703 = vunpack.c.l.b16 %v5546
        %v5704 = vunpack.c.h.b16 %v5546
        %v5705 = vunpack.c.l.b16 %v5547
        %v5706 = vunpack.c.h.b16 %v5547
        %v5707 = vunpack.c.l.b16 %v5548
        %v5708 = vunpack.c.h.b16 %v5548
        %v5709 = vunpack.c.l.b16 %v5549
        %v5710 = vunpack.c.h.b16 %v5549
        %v5711 = vunpack.c.l.b16 %v5550
        %v5712 = vunpack.c.h.b16 %v5550
        %v5713 = vunpack.c.l.b16 %v5551
        %v5714 = vunpack.c.h.b16 %v5551
        %v5715 = vunpack.c.l.b16 %v5552
        %v5716 = vunpack.c.h.b16 %v5552
        %v5717 = vunpack.c.l.b16 %v5553
        %v5718 = vunpack.c.h.b16 %v5553
        %v5719 = vunpack.c.l.b16 %v5554
        %v5720 = vunpack.c.h.b16 %v5554
        %v5721 = vunpack.c.l.b16 %v5555
        %v5722 = vunpack.c.h.b16 %v5555
        %v5723 = vunpack.c.l.b16 %v5556
        %v5724 = vunpack.c.h.b16 %v5556
        %v5725 = vunpack.c.l.b16 %v5557
        %v5726 = vunpack.c.h.b16 %v5557
        %v5727 = vunpack.c.l.b16 %v5558
        %v5728 = vunpack.c.h.b16 %v5558
        %v5729 = vunpack.c.l.b16 %v5559
        %v5730 = vunpack.c.h.b16 %v5559
        %v5731 = vunpack.c.l.b16 %v5560
        %v5732 = vunpack.c.h.b16 %v5560
        %v5733 = vunpack.c.l.b16 %v5561
        %v5734 = vunpack.c.h.b16 %v5561
        %v5735 = vunpack.c.l.b16 %v5562
        %v5736 = vunpack.c.h.b16 %v5562
        %v5737 = vunpack.c.l.b16 %v5563
        %v5738 = vunpack.c.h.b16 %v5563
        %v5739 = vunpack.c.l.b16 %v5564
        %v5740 = vunpack.c.h.b16 %v5564
        %v5741 = vunpack.c.l.b16 %v5565
        %v5742 = vunpack.c.h.b16 %v5565
        %v5743 = vunpack.c.l.b16 %v5566
        %v5744 = vunpack.c.h.b16 %v5566
        %v5745 = vunpack.c.l.b16 %v5567
        %v5746 = vunpack.c.h.b16 %v5567
        %v5747 = vunpack.c.l.b16 %v5568
        %v5748 = vunpack.c.h.b16 %v5568
        %v5749 = vunpack.c.l.b16 %v5569
        %v5750 = vunpack.c.h.b16 %v5569
        %v5751 = vunpack.c.l.b16 %v5570
        %v5752 = vunpack.c.h.b16 %v5570
        %v5753 = vunpack.c.l.b16 %v5571
        %v5754 = vunpack.c.h.b16 %v5571
        %v5755 = vunpack.c.l.b16 %v5572
        %v5756 = vunpack.c.h.b16 %v5572
        %v5757 = vunpack.c.l.b16 %v5573
        %v5758 = vunpack.c.h.b16 %v5573
        %v5759 = vunpack.c.l.b16 %v5574
        %v5760 = vunpack.c.h.b16 %v5574
        %v5761 = vunpack.c.l.b16 %v5575
        %v5762 = vunpack.c.h.b16 %v5575
        %v5763 = vunpack.c.l.b16 %v5576
        %v5764 = vunpack.c.h.b16 %v5576
        %v5765 = vunpack.c.l.b16 %v5577
        %v5766 = vunpack.c.h.b16 %v5577
        %v5767 = vunpack.c.l.b16 %v5578
        %v5768 = vunpack.c.h.b16 %v5578
        %v5769 = vunpack.c.l.b16 %v5579
        %v5770 = vunpack.c.h.b16 %v5579
        %v5771 = vunpack.c.l.b16 %v5580
        %v5772 = vunpack.c.h.b16 %v5580
        %v5773 = vunpack.c.l.b16 %v5581
        %v5774 = vunpack.c.h.b16 %v5581
        %v5775 = vunpack.c.l.b16 %v5582
        %v5776 = vunpack.c.h.b16 %v5582
        %v5777 = vunpack.c.l.b16 %v5583
        %v5778 = vunpack.c.h.b16 %v5583
        %v5779 = vunpack.c.l.b16 %v5584
        %v5780 = vunpack.c.h.b16 %v5584
        %v5781 = vunpack.c.l.b16 %v5585
        %v5782 = vunpack.c.h.b16 %v5585
        %v5783 = vunpack.c.l.b16 %v5586
        %v5784 = vunpack.c.h.b16 %v5586
        %v5785 = vunpack.c.l.b16 %v5587
        %v5786 = vunpack.c.h.b16 %v5587
        %v5787 = vunpack.c.l.b16 %v5588
        %v5788 = vunpack.c.h.b16 %v5588
        %v5789 = vunpack.c.l.b16 %v5589
        %v5790 = vunpack.c.h.b16 %v5589
        %v5791 = vunpack.c.l.b16 %v5590
        %v5792 = vunpack.c.h.b16 %v5590
        %v5793 = vunpack.c.l.b16 %v5591
        %v5794 = vunpack.c.h.b16 %v5591
        %v5795 = vunpack.c.l.b16 %v5592
        %v5796 = vunpack.c.h.b16 %v5592
        %v5797 = vpack.c.b16 %v5671, %v5669
        %v5798 = vpack.c.b16 %v5672, %v5670
        %v5799 = vpack.c.b16 %v5675, %v5673
        %v5800 = vpack.c.b16 %v5676, %v5674
        %v5801 = vpack.c.b16 %v5679, %v5677
        %v5802 = vpack.c.b16 %v5680, %v5678
        %v5803 = vpack.c.b16 %v5683, %v5681
        %v5804 = vpack.c.b16 %v5684, %v5682
        %v5805 = vpack.c.b16 %v5687, %v5685
        %v5806 = vpack.c.b16 %v5688, %v5686
        %v5807 = vpack.c.b16 %v5691, %v5689
        %v5808 = vpack.c.b16 %v5692, %v5690
        %v5809 = vpack.c.b16 %v5695, %v5693
        %v5810 = vpack.c.b16 %v5696, %v5694
        %v5811 = vpack.c.b16 %v5699, %v5697
        %v5812 = vpack.c.b16 %v5700, %v5698
        %v5813 = vpack.c.b16 %v5703, %v5701
        %v5814 = vpack.c.b16 %v5704, %v5702
        %v5815 = vpack.c.b16 %v5707, %v5705
        %v5816 = vpack.c.b16 %v5708, %v5706
        %v5817 = vpack.c.b16 %v5711, %v5709
        %v5818 = vpack.c.b16 %v5712, %v5710
        %v5819 = vpack.c.b16 %v5715, %v5713
        %v5820 = vpack.c.b16 %v5716, %v5714
        %v5821 = vpack.c.b16 %v5719, %v5717
        %v5822 = vpack.c.b16 %v5720, %v5718
        %v5823 = vpack.c.b16 %v5723, %v5721
        %v5824 = vpack.c.b16 %v5724, %v5722
        %v5825 = vpack.c.b16 %v5727, %v5725
        %v5826 = vpack.c.b16 %v5728, %v5726
        %v5827 = vpack.c.b16 %v5731, %v5729
        %v5828 = vpack.c.b16 %v5732, %v5730
        %v5829 = vpack.c.b16 %v5735, %v5733
        %v5830 = vpack.c.b16 %v5736, %v5734
        %v5831 = vpack.c.b16 %v5739, %v5737
        %v5832 = vpack.c.b16 %v5740, %v5738
        %v5833 = vpack.c.b16 %v5743, %v5741
        %v5834 = vpack.c.b16 %v5744, %v5742
        %v5835 = vpack.c.b16 %v5747, %v5745
        %v5836 = vpack.c.b16 %v5748, %v5746
        %v5837 = vpack.c.b16 %v5751, %v5749
        %v5838 = vpack.c.b16 %v5752, %v5750
        %v5839 = vpack.c.b16 %v5755, %v5753
        %v5840 = vpack.c.b16 %v5756, %v5754
        %v5841 = vpack.c.b16 %v5759, %v5757
        %v5842 = vpack.c.b16 %v5760, %v5758
        %v5843 = vpack.c.b16 %v5763, %v5761
        %v5844 = vpack.c.b16 %v5764, %v5762
        %v5845 = vpack.c.b16 %v5767, %v5765
        %v5846 = vpack.c.b16 %v5768, %v5766
        %v5847 = vpack.c.b16 %v5771, %v5769
        %v5848 = vpack.c.b16 %v5772, %v5770
        %v5849 = vpack.c.b16 %v5775, %v5773
        %v5850 = vpack.c.b16 %v5776, %v5774
        %v5851 = vpack.c.b16 %v5779, %v5777
        %v5852 = vpack.c.b16 %v5780, %v5778
        %v5853 = vpack.c.b16 %v5783, %v5781
        %v5854 = vpack.c.b16 %v5784, %v5782
        %v5855 = vpack.c.b16 %v5787, %v5785
        %v5856 = vpack.c.b16 %v5788, %v5786
        %v5857 = vpack.c.b16 %v5791, %v5789
        %v5858 = vpack.c.b16 %v5792, %v5790
        %v5859 = vpack.c.b16 %v5795, %v5793
        %v5860 = vpack.c.b16 %v5796, %v5794
        %5925 = vmatprep.subr.bf16.mxu0 %v5798
        %5926 = vmatpush1.bf16.msra.mxu0 %v5797
        %5927 = vmatprep.subr.bf16.mxu0 %v5800
        %5928 = vmatpush1.bf16.msra.mxu0 %v5799
        %5929 = vmatprep.subr.bf16.mxu0 %v5802
        %5930 = vmatpush1.bf16.msra.mxu0 %v5801
        %5931 = vmatprep.subr.bf16.mxu0 %v5804
        %5932 = vmatpush1.bf16.msra.mxu0 %v5803
        %5933 = vmatprep.subr.bf16.mxu0 %v5806
        %5934 = vmatpush1.bf16.msra.mxu0 %v5805
        %5935 = vmatprep.subr.bf16.mxu0 %v5808
        %5936 = vmatpush1.bf16.msra.mxu0 %v5807
        %5937 = vmatprep.subr.bf16.mxu0 %v5810
        %5938 = vmatpush1.bf16.msra.mxu0 %v5809
        %5939 = vmatprep.subr.bf16.mxu0 %v5812
        %5940 = vmatpush1.bf16.msra.mxu0 %v5811
        %5941 = vmatprep.subr.bf16.mxu0 %v5814
        %5942 = vmatpush1.bf16.msra.mxu0 %v5813
        %5943 = vmatprep.subr.bf16.mxu0 %v5816
        %5944 = vmatpush1.bf16.msra.mxu0 %v5815
        %5945 = vmatprep.subr.bf16.mxu0 %v5818
        %5946 = vmatpush1.bf16.msra.mxu0 %v5817
        %5947 = vmatprep.subr.bf16.mxu0 %v5820
        %5948 = vmatpush1.bf16.msra.mxu0 %v5819
        %5949 = vmatprep.subr.bf16.mxu0 %v5822
        %5950 = vmatpush1.bf16.msra.mxu0 %v5821
        %5951 = vmatprep.subr.bf16.mxu0 %v5824
        %5952 = vmatpush1.bf16.msra.mxu0 %v5823
        %5953 = vmatprep.subr.bf16.mxu0 %v5826
        %5954 = vmatpush1.bf16.msra.mxu0 %v5825
        %5955 = vmatprep.subr.bf16.mxu0 %v5828
        %5956 = vmatpush1.bf16.msra.mxu0 %v5827
        %5957 = vmatprep.mubr.bf16.mxu0 %v5526
        %5958 = vmatmul.mubr.bf16.gmra.mrb[0].mxu0 %v5525
        %v5959 = vpop.f32.mrb[0].mxu0
        %v5960 = vadd.f32 %v5598, %v5959
        %v5961 = vpop.f32.mrb[0].mxu0
        %v5962 = vadd.f32 %v5602, %v5961
        %v5963 = vpop.f32.mrb[0].mxu0
        %v5964 = vadd.f32 %v5598, %v5963
        %v5965 = vpop.f32.mrb[0].mxu0
        %v5966 = vadd.f32 %v5602, %v5965
        %5967 = vdwg.mxu0
        %5968 = vmatprep.subr.bf16.mxu0 %v5830
        %5969 = vmatpush1.bf16.msra.mxu0 %v5829
        %5970 = vmatprep.subr.bf16.mxu0 %v5832
        %5971 = vmatpush1.bf16.msra.mxu0 %v5831
        %5972 = vmatprep.subr.bf16.mxu0 %v5834
        %5973 = vmatpush1.bf16.msra.mxu0 %v5833
        %5974 = vmatprep.subr.bf16.mxu0 %v5836
        %5975 = vmatpush1.bf16.msra.mxu0 %v5835
        %5976 = vmatprep.subr.bf16.mxu0 %v5838
        %5977 = vmatpush1.bf16.msra.mxu0 %v5837
        %5978 = vmatprep.subr.bf16.mxu0 %v5840
        %5979 = vmatpush1.bf16.msra.mxu0 %v5839
        %5980 = vmatprep.subr.bf16.mxu0 %v5842
        %5981 = vmatpush1.bf16.msra.mxu0 %v5841
        %5982 = vmatprep.subr.bf16.mxu0 %v5844
        %5983 = vmatpush1.bf16.msra.mxu0 %v5843
        %5984 = vmatprep.subr.bf16.mxu0 %v5846
        %5985 = vmatpush1.bf16.msra.mxu0 %v5845
        %5986 = vmatprep.subr.bf16.mxu0 %v5848
        %5987 = vmatpush1.bf16.msra.mxu0 %v5847
        %5988 = vmatprep.subr.bf16.mxu0 %v5850
        %5989 = vmatpush1.bf16.msra.mxu0 %v5849
        %5990 = vmatprep.subr.bf16.mxu0 %v5852
        %5991 = vmatpush1.bf16.msra.mxu0 %v5851
        %5992 = vmatprep.subr.bf16.mxu0 %v5854
        %5993 = vmatpush1.bf16.msra.mxu0 %v5853
        %5994 = vmatprep.subr.bf16.mxu0 %v5856
        %5995 = vmatpush1.bf16.msra.mxu0 %v5855
        %5996 = vmatprep.subr.bf16.mxu0 %v5858
        %5997 = vmatpush1.bf16.msra.mxu0 %v5857
        %5998 = vmatprep.subr.bf16.mxu0 %v5860
        %5999 = vmatpush1.bf16.msra.mxu0 %v5859
        %6000 = vmatprep.mubr.bf16.mxu0 %v5528
        %6001 = vmatmul.mubr.bf16.gmra.mrb[0].mxu0 %v5527
        %v6002 = vpop.f32.mrb[0].mxu0
        %v6003 = vadd.f32 %v5960, %v6002
        %v6004 = vpop.f32.mrb[0].mxu0
        %v6005 = vadd.f32 %v5962, %v6004
        %v6006 = vpop.f32.mrb[0].mxu0
        %v6007 = vadd.f32 %v5964, %v6006
        %v6008 = vpop.f32.mrb[0].mxu0
        %v6009 = vadd.f32 %v5966, %v6008
        %6010 = vdwg.mxu0
        %vm6011 = vcmp.gt.f32.partialorder %v6003, 0.0
        %vm6012 = vcmp.gt.f32.partialorder %v6005, 0.0
        %vm6013 = vcmp.gt.f32.partialorder %v6007, 0.0
        %vm6014 = vcmp.gt.f32.partialorder %v6009, 0.0
        %v6015 = vmul.f32 %v6003, 0.2
        %v6016 = vmul.f32 %v6005, 0.2
        %v6017 = vmul.f32 %v6007, 0.2
        %v6018 = vmul.f32 %v6009, 0.2
        %v6019 = vsel %vm6011, %v6003, %v6015
        %v6020 = vsel %vm6012, %v6005, %v6016
        %v6021 = vsel %vm6013, %v6007, %v6017
        %v6022 = vsel %vm6014, %v6009, %v6018
        %v6023 = vld [vmem:[#allocation13] sm:$0x3]
        %v6025 = vlaneseq
        %v6026 = vshrl.u32 %v6025, 7
        %v6027 = vsub.s32 0, %v6026
        %v6028 = vrot.slane %v6023, %v6027
        %v6029 = vlaneseq
        %v6030 = vshrl.u32 %v6029, 7
        %v6031 = vsub.s32 1, %v6030
        %v6032 = vrot.slane %v6023, %v6031
        %v6035 = vmul.f32 %v6019, %v6028
        %v6036 = vmul.f32 %v6020, %v6032
        %v6037 = vmul.f32 %v6021, %v6028
        %v6038 = vmul.f32 %v6022, %v6032
        %v6039 = vadd.f32 %v6035, %v6036
        %6040 = vadd.xlane.f32.xlu0 %v6039
        %v6041 = vpop.xlane.xlu0 %6040
        %v6042 = vadd.f32 %v6037, %v6038
        %6043 = vadd.xlane.f32.xlu0 %v6042
        %v6044 = vpop.xlane.xlu0 %6043
        %v6045 = vld [vmem:[#allocation2] sm:$0x1]
        %v6047 = vlaneseq
        %v6048 = vshrl.u32 %v6047, 7
        %v6049 = vsub.s32 0, %v6048
        %v6050 = vrot.slane %v6045, %v6049
        %v6052 = vadd.f32 %v6041, %v6050
        %v6053 = vadd.f32 %v6044, %v6050
        %v6054 = vxor.u32 %v6052, 2147483648
        %v6055 = vxor.u32 %v6053, 2147483648
        %v6056 = vmul.f32 %v6054, 1.442695
        %v6057 = vpow.pop %v6056
        %v6058 = vmul.f32 %v6055, 1.442695
        %v6059 = vpow.pop %v6058
        %v6060 = vadd.f32 %v6057, 1.0
        %v6061 = vadd.f32 %v6059, 1.0
        %v6062 = vrcp.pop %v6060
        %v6063 = vmul.f32 1.0, %v6062
        %v6064 = vrcp.pop %v6061
        %v6065 = vmul.f32 1.0, %v6064
        %vm6066 = vcmask 7168
        %6067 = vst.msk [vmem:[%s433] sm:$0xff] %vm6066, %v6063
        %6068 = vst.msk [vmem:[%s433 + $0x8] sm:$0xff] %vm6066, %v6065
        %s6069 = smul.u32 2, %s26
        %p6070 = scmp.lt.s32.totalorder %s6069, 3
        %s6071 = scalar_select %p6070, %s6069, 3
        %s6072 = smul.addr %s6071, 8
        %s6073 = scalar_lea.vmem %s9, %s6072
        // Predicated region
        $region85: #{discriminator_forward.1} parent=55 // pred_check
          %p6074 = pneg %p238
        $region86: #{discriminator_forward.1} parent=55 // pred_check_branch
          %6076 = sbr.rel (%p6074) target = $region88
        $region87: #{discriminator_forward.1} parent=55 // pred_region
          %s6077 = smul.u32 2, %s26
        $region88: #{discriminator_forward.1} parent=55 // pred_fallthru
          _
      $region56: #{discriminator_forward.1} parent=5 // pred_fallthru
        _
      %p6078 = scmp.le.s32.totalorder 2, %s21
      // Predicated region
      $region89: #{discriminator_forward.1} parent=5 // pred_check
        %p6079 = pneg %p6078
      $region90: #{discriminator_forward.1} parent=5 // pred_check_branch
        %6081 = sbr.rel (%p6079) target = $region92
      $region91: #{discriminator_forward.1} parent=5 // pred_region
        %s6082 = ssub.s32 %s21, 2
        // Predicated region
        $region93: #{discriminator_forward.1} parent=91 // pred_check
          %p6083 = pneg %p244
        $region94: #{discriminator_forward.1} parent=91 // pred_check_branch
          %6085 = sbr.rel (%p6083) target = $region96
        $region95: #{discriminator_forward.1} parent=91 // pred_region
          %s6086 = smul.u32 2, %s27
          %p6087 = scmp.lt.s32.totalorder %s6086, 3
          %s6088 = scalar_select %p6087, %s6086, 3
          %s6089 = smul.addr %s6088, 8
          %s6090 = scalar_lea.vmem %s9, %s6089
        $region96: #{discriminator_forward.1} parent=91 // pred_fallthru
          _
      $region92: #{discriminator_forward.1} parent=5 // pred_fallthru
        _
    $region6: #{discriminator_forward.1} parent=1 // loop_footer
      %s25 = sadd.s32 1, %s21
    $region7: #{discriminator_forward.1} parent=1 // loop_footer_branch
      %20 = sbr.rel target = $region3
    $region8: #{discriminator_forward.1} parent=1 // loop_exit
      _
    %6091 = vsyncpa [#allocation4], 1
    %s6092 = scalar_lea.sflag [#allocation4], 1
    %6093 = vsyncpa %s6092, 1
    %6094 = vsyncpa [#allocation6], 1
    %6095 = vsyncpa [#allocation9], 1
    %6096 = vsyncpa [#allocation12], 1

</llo_original>
